<compile_context>
chip_gen: v7x
topology: tpu7x:2x2x1
jax: 0.10.0
libtpu: 0.0.40
codegen_flags: <defaults>
</compile_context>

<pallas_src>
import functools

import jax
import jax.numpy as jnp
from jax.experimental import pallas as pl
from jax.experimental.pallas import tpu as pltpu


def _silu(v):
    # x * sigmoid(x); exp and the reciprocal both run on the EUP slot,
    # keeping the VALU free for the BN scale/bias and accumulation adds.
    return v * pl.reciprocal(1.0 + jnp.exp(-v))


def merge_kernel(x1_ref, x2_ref, w1a_ref, w1b_ref, s1_ref, b1_ref,
                 w2_ref, s2_ref, b2_ref, o_ref, *, width):
    # x1_ref / x2_ref : (S, C1)   flattened spatial, channels on lanes
    # w1a / w1b       : (C1, C2)  conv1 weight split over the channel concat
    # s1/b1, s2/b2    : (1, C2)   folded BatchNorm scale / bias (f32)
    # w2_ref          : (C2, 9*C2) all nine 3x3 taps stacked along the output axis
    # o_ref           : (S, C2)
    S = x1_ref.shape[0]
    C2 = o_ref.shape[-1]
    W = width

    # ---- conv1 (1x1) on the channel concat, fused:
    #      cat(x1, x2) @ W1 == x1 @ W1[:C1] + x2 @ W1[C1:]
    y = jnp.dot(x1_ref[...], w1a_ref[...], preferred_element_type=jnp.float32)
    y = y + jnp.dot(x2_ref[...], w1b_ref[...], preferred_element_type=jnp.float32)
    y = _silu(y * s1_ref[...] + b1_ref[...])                 # folded BN1 + SiLU (f32)

    # ---- conv2 (3x3, pad=1): one tap-stacked MXU matmul, then 9 XLU rolls +
    #      border masks.  shift(y) @ W == shift(y @ W) because the matmul is
    #      row-independent, so no padded scratch / misaligned loads are needed.
    prod = jnp.dot(y.astype(w2_ref.dtype), w2_ref[...],
                   preferred_element_type=jnp.float32)        # (S, 9*C2)

    idx = jax.lax.broadcasted_iota(jnp.int32, (S, 1), 0)      # flat pixel index s
    col = idx % W                                             # w = s mod W
    acc = jnp.zeros((S, C2), jnp.float32)
    for dy in range(3):
        for dx in range(3):
            t = 3 * dy + dx
            p = prod[:, t * C2:(t + 1) * C2]
            # output pixel s pulls conv1(y) at [h+dy-1, w+dx-1] -> flat offset d
            d = (dy - 1) * W + (dx - 1)
            v = p if d == 0 else pltpu.roll(p, (-d) % S, axis=0)
            # zero contributions whose source pixel is outside the image
            valid = None
            if dy == 0:
                valid = idx >= W                  # needs row h-1
            elif dy == 2:
                valid = idx < S - W               # needs row h+1
            if dx == 0:
                m = col >= 1                      # needs column w-1
                valid = m if valid is None else jnp.logical_and(valid, m)
            elif dx == 2:
                m = col <= W - 2                  # needs column w+1
                valid = m if valid is None else jnp.logical_and(valid, m)
            acc = acc + (v if valid is None else jnp.where(valid, v, 0.0))

    z = _silu(acc * s2_ref[...] + b2_ref[...])                # folded BN2 + SiLU (f32)
    o_ref[...] = z.astype(o_ref.dtype)


def _fold_bn(gamma, beta, mean, var, eps):
    s = gamma / jnp.sqrt(var + eps)
    b = beta - mean * s
    return s.reshape(1, -1).astype(jnp.float32), b.reshape(1, -1).astype(jnp.float32)


def merge_forward_nhwc(x1, x2, params):
    """Merge forward, NHWC in / NHWC out. x1, x2: (N, H, W, C1) -> (N, H, W, C2)."""
    N, H, W, C1 = x1.shape
    C2 = params["w1"].shape[0]
    dt = x1.dtype
    S = H * W

    # Flatten spatial so the kernel works on 2D (S, C) blocks with no reshapes.
    x1f = x1.reshape(N, S, C1)
    x2f = x2.reshape(N, S, C1)

    # conv1 weight (C2, 2*C1, 1, 1) -> (2*C1, C2), split to fuse the concat.
    w1 = params["w1"].reshape(C2, 2 * C1).T.astype(dt)
    w1a, w1b = w1[:C1], w1[C1:]
    s1, b1 = _fold_bn(params["g1"], params["be1"], params["m1"], params["v1"],
                      params["eps"])
    # conv2 weight (O, I, 3, 3) -> (I, 9*O): all taps stacked along the matmul
    # output axis, column block t = 3*dy + dx holds W2[:, :, dy, dx].T.
    w2 = jnp.transpose(params["w2"], (1, 2, 3, 0)).reshape(C2, 9 * C2).astype(dt)
    s2, b2 = _fold_bn(params["g2"], params["be2"], params["m2"], params["v2"],
                      params["eps"])

    itemsize = jnp.dtype(dt).itemsize
    cost = pl.CostEstimate(
        flops=N * S * (2 * (2 * C1) * C2 + 2 * 9 * C2 * C2),
        transcendentals=2 * N * S * C2,
        bytes_accessed=(2 * S * C1 + S * C2) * N * itemsize
        + (2 * C1 * C2 + 9 * C2 * C2) * itemsize + 4 * 4 * C2,
    )

    # Per-step VMEM footprint: double-buffered in/out blocks, resident weights
    # (still double-buffered by default), f32 activation / tap-product temporaries.
    block_bytes = (2 * 2 * S * C1 * itemsize          # x1, x2 blocks
                   + 2 * S * C2 * itemsize            # out block
                   + 2 * (2 * C1 * C2 + 9 * C2 * C2 + 4 * C2) * itemsize
                   + 4 * S * C2 * 4 + S * 9 * C2 * 4)  # y/acc + tap products (f32)
    vmem_limit = int(min(max(2 * block_bytes, 32 << 20), 64 << 20))

    resident = lambda n: (0, 0)
    per_image = lambda n: (n, 0, 0)

    out = pl.pallas_call(
        functools.partial(merge_kernel, width=W),
        out_shape=jax.ShapeDtypeStruct((N, S, C2), dt),
        grid=(N,),
        in_specs=[
            pl.BlockSpec((None, S, C1), per_image),     # x1
            pl.BlockSpec((None, S, C1), per_image),     # x2
            pl.BlockSpec((C1, C2), resident),           # w1a (VMEM-resident)
            pl.BlockSpec((C1, C2), resident),           # w1b
            pl.BlockSpec((1, C2), resident),            # bn1 scale
            pl.BlockSpec((1, C2), resident),            # bn1 bias
            pl.BlockSpec((C2, 9 * C2), resident),       # w2 (all taps, resident)
            pl.BlockSpec((1, C2), resident),            # bn2 scale
            pl.BlockSpec((1, C2), resident),            # bn2 bias
        ],
        out_specs=pl.BlockSpec((None, S, C2), per_image),
        compiler_params=pltpu.CompilerParams(
            dimension_semantics=("parallel",),
            vmem_limit_bytes=vmem_limit),
        cost_estimate=cost,
    )(x1f, x2f, w1a, w1b, s1, b1, w2, s2, b2)

    return out.reshape(N, H, W, C2)


def merge_forward(x1_nchw, x2_nchw, params):
    """PyTorch-layout wrapper: (N, C1, H, W) -> (N, C2, H, W).

    Prefer merge_forward_nhwc inside an NHWC end-to-end model: these transposes
    are pure HBM-bandwidth glue for the NCHW interface.
    """
    x1 = jnp.transpose(x1_nchw, (0, 2, 3, 1))
    x2 = jnp.transpose(x2_nchw, (0, 2, 3, 1))
    out = merge_forward_nhwc(x1, x2, params)
    return jnp.transpose(out, (0, 3, 1, 2))


def reference_forward(x1, x2, params):
    # Pure-JAX reference of the PyTorch module (eval-mode BN) for verification.
    eps = params["eps"]

    def conv_bn_silu(x, w, gamma, beta, mean, var, pad):
        y = jax.lax.conv_general_dilated(
            x, w, window_strides=(1, 1), padding=[(pad, pad), (pad, pad)],
            dimension_numbers=("NCHW", "OIHW", "NCHW"),
            precision=jax.lax.Precision.HIGHEST)
        s = gamma / jnp.sqrt(var + eps)
        b = beta - mean * s
        y = y * s[None, :, None, None] + b[None, :, None, None]
        return y * jax.nn.sigmoid(y)

    x3 = jnp.concatenate([x1, x2], axis=1)
    y = conv_bn_silu(x3, params["w1"], params["g1"], params["be1"],
                     params["m1"], params["v1"], 0)
    y = conv_bn_silu(y, params["w2"], params["g2"], params["be2"],
                     params["m2"], params["v2"], 1)
    return y


if __name__ == "__main__":
    key = jax.random.PRNGKey(0)
    ks = jax.random.split(key, 12)

    N, C1, C2, H, W = 2, 4, 8, 16, 16

    x1 = jax.random.normal(ks[0], (N, C1, H, W), dtype=jnp.float32)
    x2 = jax.random.normal(ks[1], (N, C1, H, W), dtype=jnp.float32)

    params = dict(
        w1=jax.random.normal(ks[2], (C2, 2 * C1, 1, 1), jnp.float32) * 0.1,
        g1=1.0 + 0.1 * jax.random.normal(ks[3], (C2,), jnp.float32),
        be1=0.1 * jax.random.normal(ks[4], (C2,), jnp.float32),
        m1=0.1 * jax.random.normal(ks[5], (C2,), jnp.float32),
        v1=jax.random.uniform(ks[6], (C2,), jnp.float32, 0.5, 1.5),
        w2=jax.random.normal(ks[7], (C2, C2, 3, 3), jnp.float32) * 0.1,
        g2=1.0 + 0.1 * jax.random.normal(ks[8], (C2,), jnp.float32),
        be2=0.1 * jax.random.normal(ks[9], (C2,), jnp.float32),
        m2=0.1 * jax.random.normal(ks[10], (C2,), jnp.float32),
        v2=jax.random.uniform(ks[11], (C2,), jnp.float32, 0.5, 1.5),
        eps=1e-5,
    )

    out = merge_forward(x1, x2, params)
    out = jax.block_until_ready(out)

    ref = reference_forward(x1, x2, params)
    assert out.shape == (N, C2, H, W), out.shape
    err = float(jnp.max(jnp.abs(out - ref)))
    assert jnp.allclose(out, ref, atol=1e-4, rtol=1e-4), err

    print("KERNEL_OK")
</pallas_src>

<mosaic_0001>
module attributes {stable_mosaic.version = 11 : i64} {
  func.func @merge_kernel(%arg0: i32, %arg1: memref<1x256x4xf32, #tpu.memory_space<vmem>>, %arg2: memref<1x256x4xf32, #tpu.memory_space<vmem>>, %arg3: memref<4x8xf32, #tpu.memory_space<vmem>>, %arg4: memref<4x8xf32, #tpu.memory_space<vmem>>, %arg5: memref<1x8xf32, #tpu.memory_space<vmem>>, %arg6: memref<1x8xf32, #tpu.memory_space<vmem>>, %arg7: memref<8x72xf32, #tpu.memory_space<vmem>>, %arg8: memref<1x8xf32, #tpu.memory_space<vmem>>, %arg9: memref<1x8xf32, #tpu.memory_space<vmem>>, %arg10: memref<1x256x8xf32, #tpu.memory_space<vmem>>) attributes {dimension_semantics = [#tpu.dimension_semantics<parallel>], iteration_bounds = array<i64: 2>, scalar_prefetch = 0 : i64, scratch_operands = 0 : i64, tpu.core_type = #tpu.core_type<tc>, window_params = [{transform_indices = @transform_0, window_bounds = array<i64: 1, 256, 4>}, {transform_indices = @transform_1, window_bounds = array<i64: 1, 256, 4>}, {pipeline_mode = #tpu.pipeline_mode<synchronous>, transform_indices = @transform_2, window_bounds = array<i64: 4, 8>}, {pipeline_mode = #tpu.pipeline_mode<synchronous>, transform_indices = @transform_3, window_bounds = array<i64: 4, 8>}, {pipeline_mode = #tpu.pipeline_mode<synchronous>, transform_indices = @transform_4, window_bounds = array<i64: 1, 8>}, {pipeline_mode = #tpu.pipeline_mode<synchronous>, transform_indices = @transform_5, window_bounds = array<i64: 1, 8>}, {pipeline_mode = #tpu.pipeline_mode<synchronous>, transform_indices = @transform_6, window_bounds = array<i64: 8, 72>}, {pipeline_mode = #tpu.pipeline_mode<synchronous>, transform_indices = @transform_7, window_bounds = array<i64: 1, 8>}, {pipeline_mode = #tpu.pipeline_mode<synchronous>, transform_indices = @transform_8, window_bounds = array<i64: 1, 8>}, {transform_indices = @transform_9, window_bounds = array<i64: 1, 256, 8>}]} {
    %c0 = arith.constant 0 : index
    %c0_0 = arith.constant 0 : index
    %c0_1 = arith.constant 0 : index
    %0 = vector.load %arg1[%c0, %c0_0, %c0_1] : memref<1x256x4xf32, #tpu.memory_space<vmem>>, vector<1x256x4xf32>
    %1 = vector.shape_cast %0 : vector<1x256x4xf32> to vector<256x4xf32>
    %c0_2 = arith.constant 0 : index
    %c0_3 = arith.constant 0 : index
    %2 = vector.load %arg3[%c0_2, %c0_3] : memref<4x8xf32, #tpu.memory_space<vmem>>, vector<4x8xf32>
    %cst = arith.constant dense<0.000000e+00> : vector<256x8xf32>
    %3 = tpu.matmul %1, %2, %cst {dimension_numbers = #tpu.dot_dimension_numbers<[1], [0], [0], [1], [0, 0, 1, 1], [], []>} : vector<256x4xf32>, vector<4x8xf32>, vector<256x8xf32> -> vector<256x8xf32>
    %c0_4 = arith.constant 0 : index
    %c0_5 = arith.constant 0 : index
    %c0_6 = arith.constant 0 : index
    %4 = vector.load %arg2[%c0_4, %c0_5, %c0_6] : memref<1x256x4xf32, #tpu.memory_space<vmem>>, vector<1x256x4xf32>
    %5 = vector.shape_cast %4 : vector<1x256x4xf32> to vector<256x4xf32>
    %c0_7 = arith.constant 0 : index
    %c0_8 = arith.constant 0 : index
    %6 = vector.load %arg4[%c0_7, %c0_8] : memref<4x8xf32, #tpu.memory_space<vmem>>, vector<4x8xf32>
    %cst_9 = arith.constant dense<0.000000e+00> : vector<256x8xf32>
    %7 = tpu.matmul %5, %6, %cst_9 {dimension_numbers = #tpu.dot_dimension_numbers<[1], [0], [0], [1], [0, 0, 1, 1], [], []>} : vector<256x4xf32>, vector<4x8xf32>, vector<256x8xf32> -> vector<256x8xf32>
    %8 = arith.addf %3, %7 : vector<256x8xf32>
    %c0_10 = arith.constant 0 : index
    %c0_11 = arith.constant 0 : index
    %9 = vector.load %arg5[%c0_10, %c0_11] : memref<1x8xf32, #tpu.memory_space<vmem>>, vector<1x8xf32>
    %10 = vector.broadcast %9 : vector<1x8xf32> to vector<256x8xf32>
    %11 = arith.mulf %8, %10 : vector<256x8xf32>
    %c0_12 = arith.constant 0 : index
    %c0_13 = arith.constant 0 : index
    %12 = vector.load %arg6[%c0_12, %c0_13] : memref<1x8xf32, #tpu.memory_space<vmem>>, vector<1x8xf32>
    %13 = vector.broadcast %12 : vector<1x8xf32> to vector<256x8xf32>
    %14 = arith.addf %11, %13 : vector<256x8xf32>
    %cst_14 = arith.constant 0.000000e+00 : f32
    %15 = vector.broadcast %cst_14 : f32 to vector<256x8xf32>
    %16 = arith.subf %15, %14 : vector<256x8xf32>
    %17 = math.exp %16 : vector<256x8xf32>
    %cst_15 = arith.constant 1.000000e+00 : f32
    %18 = vector.broadcast %cst_15 : f32 to vector<256x8xf32>
    %19 = arith.addf %18, %17 : vector<256x8xf32>
    %20 = tpu.reciprocal %19 : vector<256x8xf32> -> vector<256x8xf32>
    %21 = arith.mulf %14, %20 : vector<256x8xf32>
    %c0_16 = arith.constant 0 : index
    %c0_17 = arith.constant 0 : index
    %22 = vector.load %arg7[%c0_16, %c0_17] : memref<8x72xf32, #tpu.memory_space<vmem>>, vector<8x72xf32>
    %cst_18 = arith.constant dense<0.000000e+00> : vector<256x72xf32>
    %23 = tpu.matmul %21, %22, %cst_18 {dimension_numbers = #tpu.dot_dimension_numbers<[1], [0], [0], [1], [0, 0, 1, 1], [], []>} : vector<256x8xf32>, vector<8x72xf32>, vector<256x72xf32> -> vector<256x72xf32>
    %24 = tpu.iota {dimensions = array<i32: 0>} : vector<256x1xi32>
    %c16_i32 = arith.constant 16 : i32
    %c0_i32 = arith.constant 0 : i32
    %25 = arith.cmpi eq, %c16_i32, %c0_i32 : i32
    %c1_i32 = arith.constant 1 : i32
    %26 = arith.select %25, %c1_i32, %c16_i32 : i32
    %27 = vector.broadcast %26 : i32 to vector<256x1xi32>
    %28 = arith.remsi %24, %27 : vector<256x1xi32>
    %c0_i32_19 = arith.constant 0 : i32
    %29 = vector.broadcast %c0_i32_19 : i32 to vector<256x1xi32>
    %30 = arith.cmpi ne, %28, %29 : vector<256x1xi32>
    %c0_i32_20 = arith.constant 0 : i32
    %31 = vector.broadcast %c0_i32_20 : i32 to vector<256x1xi32>
    %32 = arith.cmpi slt, %28, %31 : vector<256x1xi32>
    %c0_i32_21 = arith.constant 0 : i32
    %33 = arith.cmpi slt, %26, %c0_i32_21 : i32
    %34 = vector.broadcast %33 : i1 to vector<256x1xi1>
    %35 = vector.broadcast %34 : vector<256x1xi1> to vector<256x1xi1>
    %36 = arith.xori %32, %35 : vector<256x1xi1>
    %37 = arith.andi %36, %30 : vector<256x1xi1>
    %38 = vector.broadcast %26 : i32 to vector<256x1xi32>
    %39 = arith.addi %28, %38 : vector<256x1xi32>
    %40 = arith.select %37, %39, %28 : vector<256x1xi1>, vector<256x1xi32>
    %cst_22 = arith.constant 0.000000e+00 : f32
    %41 = vector.broadcast %cst_22 : f32 to vector<256x8xf32>
    %42 = vector.extract_strided_slice %23 {offsets = [0, 0], sizes = [256, 8], strides = [1, 1]} : vector<256x72xf32> to vector<256x8xf32>
    %c17_i32 = arith.constant 17 : i32
    %43 = tpu.dynamic_rotate %42 by %c17_i32 dim 0 : vector<256x8xf32>, i32 -> vector<256x8xf32>
    %c16_i32_23 = arith.constant 16 : i32
    %44 = vector.broadcast %c16_i32_23 : i32 to vector<256x1xi32>
    %45 = arith.cmpi sge, %24, %44 : vector<256x1xi32>
    %c1_i32_24 = arith.constant 1 : i32
    %46 = vector.broadcast %c1_i32_24 : i32 to vector<256x1xi32>
    %47 = arith.cmpi sge, %40, %46 : vector<256x1xi32>
    %48 = arith.andi %45, %47 : vector<256x1xi1>
    %cst_25 = arith.constant 0.000000e+00 : f32
    %49 = vector.shape_cast %48 : vector<256x1xi1> to vector<256x1xi1>
    %50 = vector.broadcast %49 : vector<256x1xi1> to vector<256x8xi1>
    %51 = vector.broadcast %cst_25 : f32 to vector<256x8xf32>
    %52 = arith.select %50, %43, %51 : vector<256x8xi1>, vector<256x8xf32>
    %53 = arith.addf %41, %52 : vector<256x8xf32>
    %54 = vector.extract_strided_slice %23 {offsets = [0, 8], sizes = [256, 8], strides = [1, 1]} : vector<256x72xf32> to vector<256x8xf32>
    %c16_i32_26 = arith.constant 16 : i32
    %55 = tpu.dynamic_rotate %54 by %c16_i32_26 dim 0 : vector<256x8xf32>, i32 -> vector<256x8xf32>
    %c16_i32_27 = arith.constant 16 : i32
    %56 = vector.broadcast %c16_i32_27 : i32 to vector<256x1xi32>
    %57 = arith.cmpi sge, %24, %56 : vector<256x1xi32>
    %cst_28 = arith.constant 0.000000e+00 : f32
    %58 = vector.shape_cast %57 : vector<256x1xi1> to vector<256x1xi1>
    %59 = vector.broadcast %58 : vector<256x1xi1> to vector<256x8xi1>
    %60 = vector.broadcast %cst_28 : f32 to vector<256x8xf32>
    %61 = arith.select %59, %55, %60 : vector<256x8xi1>, vector<256x8xf32>
    %62 = arith.addf %53, %61 : vector<256x8xf32>
    %63 = vector.extract_strided_slice %23 {offsets = [0, 16], sizes = [256, 8], strides = [1, 1]} : vector<256x72xf32> to vector<256x8xf32>
    %c15_i32 = arith.constant 15 : i32
    %64 = tpu.dynamic_rotate %63 by %c15_i32 dim 0 : vector<256x8xf32>, i32 -> vector<256x8xf32>
    %c16_i32_29 = arith.constant 16 : i32
    %65 = vector.broadcast %c16_i32_29 : i32 to vector<256x1xi32>
    %66 = arith.cmpi sge, %24, %65 : vector<256x1xi32>
    %c14_i32 = arith.constant 14 : i32
    %67 = vector.broadcast %c14_i32 : i32 to vector<256x1xi32>
    %68 = arith.cmpi sle, %40, %67 : vector<256x1xi32>
    %69 = arith.andi %66, %68 : vector<256x1xi1>
    %cst_30 = arith.constant 0.000000e+00 : f32
    %70 = vector.shape_cast %69 : vector<256x1xi1> to vector<256x1xi1>
    %71 = vector.broadcast %70 : vector<256x1xi1> to vector<256x8xi1>
    %72 = vector.broadcast %cst_30 : f32 to vector<256x8xf32>
    %73 = arith.select %71, %64, %72 : vector<256x8xi1>, vector<256x8xf32>
    %74 = arith.addf %62, %73 : vector<256x8xf32>
    %75 = vector.extract_strided_slice %23 {offsets = [0, 24], sizes = [256, 8], strides = [1, 1]} : vector<256x72xf32> to vector<256x8xf32>
    %c1_i32_31 = arith.constant 1 : i32
    %76 = tpu.dynamic_rotate %75 by %c1_i32_31 dim 0 : vector<256x8xf32>, i32 -> vector<256x8xf32>
    %c1_i32_32 = arith.constant 1 : i32
    %77 = vector.broadcast %c1_i32_32 : i32 to vector<256x1xi32>
    %78 = arith.cmpi sge, %40, %77 : vector<256x1xi32>
    %cst_33 = arith.constant 0.000000e+00 : f32
    %79 = vector.shape_cast %78 : vector<256x1xi1> to vector<256x1xi1>
    %80 = vector.broadcast %79 : vector<256x1xi1> to vector<256x8xi1>
    %81 = vector.broadcast %cst_33 : f32 to vector<256x8xf32>
    %82 = arith.select %80, %76, %81 : vector<256x8xi1>, vector<256x8xf32>
    %83 = arith.addf %74, %82 : vector<256x8xf32>
    %84 = vector.extract_strided_slice %23 {offsets = [0, 32], sizes = [256, 8], strides = [1, 1]} : vector<256x72xf32> to vector<256x8xf32>
    %85 = arith.addf %83, %84 : vector<256x8xf32>
    %86 = vector.extract_strided_slice %23 {offsets = [0, 40], sizes = [256, 8], strides = [1, 1]} : vector<256x72xf32> to vector<256x8xf32>
    %c255_i32 = arith.constant 255 : i32
    %87 = tpu.dynamic_rotate %86 by %c255_i32 dim 0 : vector<256x8xf32>, i32 -> vector<256x8xf32>
    %c14_i32_34 = arith.constant 14 : i32
    %88 = vector.broadcast %c14_i32_34 : i32 to vector<256x1xi32>
    %89 = arith.cmpi sle, %40, %88 : vector<256x1xi32>
    %cst_35 = arith.constant 0.000000e+00 : f32
    %90 = vector.shape_cast %89 : vector<256x1xi1> to vector<256x1xi1>
    %91 = vector.broadcast %90 : vector<256x1xi1> to vector<256x8xi1>
    %92 = vector.broadcast %cst_35 : f32 to vector<256x8xf32>
    %93 = arith.select %91, %87, %92 : vector<256x8xi1>, vector<256x8xf32>
    %94 = arith.addf %85, %93 : vector<256x8xf32>
    %95 = vector.extract_strided_slice %23 {offsets = [0, 48], sizes = [256, 8], strides = [1, 1]} : vector<256x72xf32> to vector<256x8xf32>
    %c241_i32 = arith.constant 241 : i32
    %96 = tpu.dynamic_rotate %95 by %c241_i32 dim 0 : vector<256x8xf32>, i32 -> vector<256x8xf32>
    %c240_i32 = arith.constant 240 : i32
    %97 = vector.broadcast %c240_i32 : i32 to vector<256x1xi32>
    %98 = arith.cmpi slt, %24, %97 : vector<256x1xi32>
    %c1_i32_36 = arith.constant 1 : i32
    %99 = vector.broadcast %c1_i32_36 : i32 to vector<256x1xi32>
    %100 = arith.cmpi sge, %40, %99 : vector<256x1xi32>
    %101 = arith.andi %98, %100 : vector<256x1xi1>
    %cst_37 = arith.constant 0.000000e+00 : f32
    %102 = vector.shape_cast %101 : vector<256x1xi1> to vector<256x1xi1>
    %103 = vector.broadcast %102 : vector<256x1xi1> to vector<256x8xi1>
    %104 = vector.broadcast %cst_37 : f32 to vector<256x8xf32>
    %105 = arith.select %103, %96, %104 : vector<256x8xi1>, vector<256x8xf32>
    %106 = arith.addf %94, %105 : vector<256x8xf32>
    %107 = vector.extract_strided_slice %23 {offsets = [0, 56], sizes = [256, 8], strides = [1, 1]} : vector<256x72xf32> to vector<256x8xf32>
    %c240_i32_38 = arith.constant 240 : i32
    %108 = tpu.dynamic_rotate %107 by %c240_i32_38 dim 0 : vector<256x8xf32>, i32 -> vector<256x8xf32>
    %c240_i32_39 = arith.constant 240 : i32
    %109 = vector.broadcast %c240_i32_39 : i32 to vector<256x1xi32>
    %110 = arith.cmpi slt, %24, %109 : vector<256x1xi32>
    %cst_40 = arith.constant 0.000000e+00 : f32
    %111 = vector.shape_cast %110 : vector<256x1xi1> to vector<256x1xi1>
    %112 = vector.broadcast %111 : vector<256x1xi1> to vector<256x8xi1>
    %113 = vector.broadcast %cst_40 : f32 to vector<256x8xf32>
    %114 = arith.select %112, %108, %113 : vector<256x8xi1>, vector<256x8xf32>
    %115 = arith.addf %106, %114 : vector<256x8xf32>
    %116 = vector.extract_strided_slice %23 {offsets = [0, 64], sizes = [256, 8], strides = [1, 1]} : vector<256x72xf32> to vector<256x8xf32>
    %c239_i32 = arith.constant 239 : i32
    %117 = tpu.dynamic_rotate %116 by %c239_i32 dim 0 : vector<256x8xf32>, i32 -> vector<256x8xf32>
    %c240_i32_41 = arith.constant 240 : i32
    %118 = vector.broadcast %c240_i32_41 : i32 to vector<256x1xi32>
    %119 = arith.cmpi slt, %24, %118 : vector<256x1xi32>
    %c14_i32_42 = arith.constant 14 : i32
    %120 = vector.broadcast %c14_i32_42 : i32 to vector<256x1xi32>
    %121 = arith.cmpi sle, %40, %120 : vector<256x1xi32>
    %122 = arith.andi %119, %121 : vector<256x1xi1>
    %cst_43 = arith.constant 0.000000e+00 : f32
    %123 = vector.shape_cast %122 : vector<256x1xi1> to vector<256x1xi1>
    %124 = vector.broadcast %123 : vector<256x1xi1> to vector<256x8xi1>
    %125 = vector.broadcast %cst_43 : f32 to vector<256x8xf32>
    %126 = arith.select %124, %117, %125 : vector<256x8xi1>, vector<256x8xf32>
    %127 = arith.addf %115, %126 : vector<256x8xf32>
    %c0_44 = arith.constant 0 : index
    %c0_45 = arith.constant 0 : index
    %128 = vector.load %arg8[%c0_44, %c0_45] : memref<1x8xf32, #tpu.memory_space<vmem>>, vector<1x8xf32>
    %129 = vector.broadcast %128 : vector<1x8xf32> to vector<256x8xf32>
    %130 = arith.mulf %127, %129 : vector<256x8xf32>
    %c0_46 = arith.constant 0 : index
    %c0_47 = arith.constant 0 : index
    %131 = vector.load %arg9[%c0_46, %c0_47] : memref<1x8xf32, #tpu.memory_space<vmem>>, vector<1x8xf32>
    %132 = vector.broadcast %131 : vector<1x8xf32> to vector<256x8xf32>
    %133 = arith.addf %130, %132 : vector<256x8xf32>
    %cst_48 = arith.constant 0.000000e+00 : f32
    %134 = vector.broadcast %cst_48 : f32 to vector<256x8xf32>
    %135 = arith.subf %134, %133 : vector<256x8xf32>
    %136 = math.exp %135 : vector<256x8xf32>
    %cst_49 = arith.constant 1.000000e+00 : f32
    %137 = vector.broadcast %cst_49 : f32 to vector<256x8xf32>
    %138 = arith.addf %137, %136 : vector<256x8xf32>
    %139 = tpu.reciprocal %138 : vector<256x8xf32> -> vector<256x8xf32>
    %140 = arith.mulf %133, %139 : vector<256x8xf32>
    %c0_50 = arith.constant 0 : index
    %c0_51 = arith.constant 0 : index
    %c0_52 = arith.constant 0 : index
    %141 = vector.load %arg10[%c0_50, %c0_51, %c0_52] : memref<1x256x8xf32, #tpu.memory_space<vmem>>, vector<1x256x8xf32>
    %142 = vector.shape_cast %141 : vector<1x256x8xf32> to vector<256x8xf32>
    %143 = vector.shape_cast %140 : vector<256x8xf32> to vector<1x256x8xf32>
    tpu.vector_store %arg10[%c0_50, %c0_51, %c0_52], %143 {strides = array<i32>} : memref<1x256x8xf32, #tpu.memory_space<vmem>>, vector<1x256x8xf32>,
    return
  }
  func.func @transform_0(%arg0: i32) -> (i32, i32, i32) {
    %c0_i32 = arith.constant 0 : i32
    %c0_i32_0 = arith.constant 0 : i32
    %c0_i32_1 = arith.constant 0 : i32
    return %arg0, %c0_i32, %c0_i32_0 : i32, i32, i32
  }
  func.func @transform_1(%arg0: i32) -> (i32, i32, i32) {
    %c0_i32 = arith.constant 0 : i32
    %c0_i32_0 = arith.constant 0 : i32
    %c0_i32_1 = arith.constant 0 : i32
    return %arg0, %c0_i32, %c0_i32_0 : i32, i32, i32
  }
  func.func @transform_2(%arg0: i32) -> (i32, i32) {
    %c0_i32 = arith.constant 0 : i32
    %c0_i32_0 = arith.constant 0 : i32
    %c0_i32_1 = arith.constant 0 : i32
    return %c0_i32, %c0_i32_0 : i32, i32
  }
  func.func @transform_3(%arg0: i32) -> (i32, i32) {
    %c0_i32 = arith.constant 0 : i32
    %c0_i32_0 = arith.constant 0 : i32
    %c0_i32_1 = arith.constant 0 : i32
    return %c0_i32, %c0_i32_0 : i32, i32
  }
  func.func @transform_4(%arg0: i32) -> (i32, i32) {
    %c0_i32 = arith.constant 0 : i32
    %c0_i32_0 = arith.constant 0 : i32
    %c0_i32_1 = arith.constant 0 : i32
    return %c0_i32, %c0_i32_0 : i32, i32
  }
  func.func @transform_5(%arg0: i32) -> (i32, i32) {
    %c0_i32 = arith.constant 0 : i32
    %c0_i32_0 = arith.constant 0 : i32
    %c0_i32_1 = arith.constant 0 : i32
    return %c0_i32, %c0_i32_0 : i32, i32
  }
  func.func @transform_6(%arg0: i32) -> (i32, i32) {
    %c0_i32 = arith.constant 0 : i32
    %c0_i32_0 = arith.constant 0 : i32
    %c0_i32_1 = arith.constant 0 : i32
    return %c0_i32, %c0_i32_0 : i32, i32
  }
  func.func @transform_7(%arg0: i32) -> (i32, i32) {
    %c0_i32 = arith.constant 0 : i32
    %c0_i32_0 = arith.constant 0 : i32
    %c0_i32_1 = arith.constant 0 : i32
    return %c0_i32, %c0_i32_0 : i32, i32
  }
  func.func @transform_8(%arg0: i32) -> (i32, i32) {
    %c0_i32 = arith.constant 0 : i32
    %c0_i32_0 = arith.constant 0 : i32
    %c0_i32_1 = arith.constant 0 : i32
    return %c0_i32, %c0_i32_0 : i32, i32
  }
  func.func @transform_9(%arg0: i32) -> (i32, i32, i32) {
    %c0_i32 = arith.constant 0 : i32
    %c0_i32_0 = arith.constant 0 : i32
    %c0_i32_1 = arith.constant 0 : i32
    return %arg0, %c0_i32, %c0_i32_0 : i32, i32, i32
  }
}

</mosaic_0001>

<llo_original>
// kernel: tpu_custom_call.1
$region0: #{tpu_custom_call.1}
  #allocation0 [shape = 'u32[]', space=smem, size = 0x4, offset = 0x4, fixed_abs, tag = 'smem constant byte address 0x4 - core index']
  #allocation1 [shape = 'u32[144,128]{1,0:T(1,128)}', space=vmem, size = 0x12000, scoped, tag = 'internal scratch']
  %s0 = inlined_call_operand.vmem [shape: f32[2,256,4], index: 0, kind: input, shape index: {}]
  %s1 = inlined_call_operand.vmem [shape: f32[2,256,4], index: 1, kind: input, shape index: {}]
  %s2 = inlined_call_operand.vmem [shape: f32[4,8], index: 2, kind: input, shape index: {}]
  %s3 = inlined_call_operand.vmem [shape: f32[4,8], index: 3, kind: input, shape index: {}]
  %s4 = inlined_call_operand.vmem [shape: f32[1,8], index: 4, kind: input, shape index: {}]
  %s5 = inlined_call_operand.vmem [shape: f32[1,8], index: 5, kind: input, shape index: {}]
  %s6 = inlined_call_operand.vmem [shape: f32[8,72], index: 6, kind: input, shape index: {}]
  %s7 = inlined_call_operand.vmem [shape: f32[1,8], index: 7, kind: input, shape index: {}]
  %s8 = inlined_call_operand.vmem [shape: f32[1,8], index: 8, kind: input, shape index: {}]
  %s9 = inlined_call_operand.vmem [shape: f32[2,256,8], index: 9, kind: output, shape index: {}]
  %s10 = sld [smem:[#allocation0]]
  $region69: #{tpu_custom_call.1} parent=0
    _
  %s12 = ssub.s32 1, %s10
  %s13 = scalar_select 0, %s12, %s10
  loop: start=0, step=1, limit=4
  $region2: #{tpu_custom_call.1} parent=0 // loop_pre_header
    _
  $region3: #{tpu_custom_call.1} parent=0 // loop_header
    %s15 = sphi 0, %s19
    %p16 = scmp.ge.s32.totalorder %s15, 4
    %s25 = sphi 0, %s27
    %s28 = sphi 0, %s25
    %s29 = sphi 0, %s28
    %s45 = sphi 0, %s29
    %s51 = sphi 0, %s53
    %s54 = sphi 0, %s51
    %s55 = sphi 0, %s54
    %s71 = sphi 0, %s55
    %s75 = sphi 0, %s75
    %s77 = sphi 0, %s75
    %s78 = sphi 0, %s77
    %s92 = sphi 0, %s78
    %s96 = sphi 0, %s96
    %s98 = sphi 0, %s96
    %s99 = sphi 0, %s98
    %s113 = sphi 0, %s99
    %s117 = sphi 0, %s117
    %s119 = sphi 0, %s117
    %s120 = sphi 0, %s119
    %s134 = sphi 0, %s120
    %s138 = sphi 0, %s138
    %s140 = sphi 0, %s138
    %s141 = sphi 0, %s140
    %s155 = sphi 0, %s141
    %s159 = sphi 0, %s159
    %s161 = sphi 0, %s159
    %s162 = sphi 0, %s161
    %s176 = sphi 0, %s162
    %s180 = sphi 0, %s180
    %s182 = sphi 0, %s180
    %s183 = sphi 0, %s182
    %s197 = sphi 0, %s183
    %s201 = sphi 0, %s201
    %s203 = sphi 0, %s201
    %s204 = sphi 0, %s203
    %s218 = sphi 0, %s204
    %s224 = sphi 0, %s226
    %s227 = sphi 0, %s224
    %s228 = sphi 0, %s227
    %s244 = sphi 0, %s228
  $region4: #{tpu_custom_call.1} parent=0 // loop_header_branch
    %18 = sbr.rel (%p16) target = $region8
  $region5: #{tpu_custom_call.1} parent=0 // loop_body
    %s20 = ssub.s32 %s15, 1
    %s21 = ssub.s32 %s15, 2
    %s22 = sadd.s32 %s15, 1
    %s23 = ssub.s32 %s15, %s22
    %p24 = scmp.eq.s32.totalorder %s23, 0
    %s26 = sadd.s32 %s25, 1
    %s27 = scalar_select %p24, %s25, %s26
    %p30 = pneg %p24
    %p31 = scmp.eq.s32.totalorder %s15, 1
    %p32 = por %p30, %p31
    %p33 = scmp.ne.s32.totalorder %s25, %s28
    %p34 = scmp.eq.s32.totalorder %s15, 0
    %p35 = por %p33, %p34
    %p36 = scmp.ne.s32.totalorder %s25, %s28
    %p37 = scmp.eq.s32.totalorder %s20, 1
    %p38 = por %p36, %p37
    %p39 = scmp.ne.s32.totalorder %s28, %s29
    %p40 = scmp.eq.s32.totalorder %s20, 0
    %p41 = por %p39, %p40
    %p42 = scmp.ne.s32.totalorder %s28, %s29
    %p43 = scmp.eq.s32.totalorder %s21, 1
    %p44 = por %p42, %p43
    %p46 = scmp.ne.s32.totalorder %s29, %s45
    %p47 = scmp.eq.s32.totalorder %s21, 0
    %p48 = por %p46, %p47
    %s49 = ssub.s32 %s15, %s22
    %p50 = scmp.eq.s32.totalorder %s49, 0
    %s52 = sadd.s32 %s51, 1
    %s53 = scalar_select %p50, %s51, %s52
    %p56 = pneg %p50
    %p57 = scmp.eq.s32.totalorder %s15, 1
    %p58 = por %p56, %p57
    %p59 = scmp.ne.s32.totalorder %s51, %s54
    %p60 = scmp.eq.s32.totalorder %s15, 0
    %p61 = por %p59, %p60
    %p62 = scmp.ne.s32.totalorder %s51, %s54
    %p63 = scmp.eq.s32.totalorder %s20, 1
    %p64 = por %p62, %p63
    %p65 = scmp.ne.s32.totalorder %s54, %s55
    %p66 = scmp.eq.s32.totalorder %s20, 0
    %p67 = por %p65, %p66
    %p68 = scmp.ne.s32.totalorder %s54, %s55
    %p69 = scmp.eq.s32.totalorder %s21, 1
    %p70 = por %p68, %p69
    %p72 = scmp.ne.s32.totalorder %s55, %s71
    %p73 = scmp.eq.s32.totalorder %s21, 0
    %p74 = por %p72, %p73
    %s76 = sadd.s32 %s75, 1
    %p79 = scmp.eq.s32.totalorder %s15, 1
    %p80 = scmp.ne.s32.totalorder %s75, %s77
    %p81 = scmp.eq.s32.totalorder %s15, 0
    %p82 = por %p80, %p81
    %p83 = scmp.ne.s32.totalorder %s75, %s77
    %p84 = scmp.eq.s32.totalorder %s20, 1
    %p85 = por %p83, %p84
    %p86 = scmp.ne.s32.totalorder %s77, %s78
    %p87 = scmp.eq.s32.totalorder %s20, 0
    %p88 = por %p86, %p87
    %p89 = scmp.ne.s32.totalorder %s77, %s78
    %p90 = scmp.eq.s32.totalorder %s21, 1
    %p91 = por %p89, %p90
    %p93 = scmp.ne.s32.totalorder %s78, %s92
    %p94 = scmp.eq.s32.totalorder %s21, 0
    %p95 = por %p93, %p94
    %s97 = sadd.s32 %s96, 1
    %p100 = scmp.eq.s32.totalorder %s15, 1
    %p101 = scmp.ne.s32.totalorder %s96, %s98
    %p102 = scmp.eq.s32.totalorder %s15, 0
    %p103 = por %p101, %p102
    %p104 = scmp.ne.s32.totalorder %s96, %s98
    %p105 = scmp.eq.s32.totalorder %s20, 1
    %p106 = por %p104, %p105
    %p107 = scmp.ne.s32.totalorder %s98, %s99
    %p108 = scmp.eq.s32.totalorder %s20, 0
    %p109 = por %p107, %p108
    %p110 = scmp.ne.s32.totalorder %s98, %s99
    %p111 = scmp.eq.s32.totalorder %s21, 1
    %p112 = por %p110, %p111
    %p114 = scmp.ne.s32.totalorder %s99, %s113
    %p115 = scmp.eq.s32.totalorder %s21, 0
    %p116 = por %p114, %p115
    %s118 = sadd.s32 %s117, 1
    %p121 = scmp.eq.s32.totalorder %s15, 1
    %p122 = scmp.ne.s32.totalorder %s117, %s119
    %p123 = scmp.eq.s32.totalorder %s15, 0
    %p124 = por %p122, %p123
    %p125 = scmp.ne.s32.totalorder %s117, %s119
    %p126 = scmp.eq.s32.totalorder %s20, 1
    %p127 = por %p125, %p126
    %p128 = scmp.ne.s32.totalorder %s119, %s120
    %p129 = scmp.eq.s32.totalorder %s20, 0
    %p130 = por %p128, %p129
    %p131 = scmp.ne.s32.totalorder %s119, %s120
    %p132 = scmp.eq.s32.totalorder %s21, 1
    %p133 = por %p131, %p132
    %p135 = scmp.ne.s32.totalorder %s120, %s134
    %p136 = scmp.eq.s32.totalorder %s21, 0
    %p137 = por %p135, %p136
    %s139 = sadd.s32 %s138, 1
    %p142 = scmp.eq.s32.totalorder %s15, 1
    %p143 = scmp.ne.s32.totalorder %s138, %s140
    %p144 = scmp.eq.s32.totalorder %s15, 0
    %p145 = por %p143, %p144
    %p146 = scmp.ne.s32.totalorder %s138, %s140
    %p147 = scmp.eq.s32.totalorder %s20, 1
    %p148 = por %p146, %p147
    %p149 = scmp.ne.s32.totalorder %s140, %s141
    %p150 = scmp.eq.s32.totalorder %s20, 0
    %p151 = por %p149, %p150
    %p152 = scmp.ne.s32.totalorder %s140, %s141
    %p153 = scmp.eq.s32.totalorder %s21, 1
    %p154 = por %p152, %p153
    %p156 = scmp.ne.s32.totalorder %s141, %s155
    %p157 = scmp.eq.s32.totalorder %s21, 0
    %p158 = por %p156, %p157
    %s160 = sadd.s32 %s159, 1
    %p163 = scmp.eq.s32.totalorder %s15, 1
    %p164 = scmp.ne.s32.totalorder %s159, %s161
    %p165 = scmp.eq.s32.totalorder %s15, 0
    %p166 = por %p164, %p165
    %p167 = scmp.ne.s32.totalorder %s159, %s161
    %p168 = scmp.eq.s32.totalorder %s20, 1
    %p169 = por %p167, %p168
    %p170 = scmp.ne.s32.totalorder %s161, %s162
    %p171 = scmp.eq.s32.totalorder %s20, 0
    %p172 = por %p170, %p171
    %p173 = scmp.ne.s32.totalorder %s161, %s162
    %p174 = scmp.eq.s32.totalorder %s21, 1
    %p175 = por %p173, %p174
    %p177 = scmp.ne.s32.totalorder %s162, %s176
    %p178 = scmp.eq.s32.totalorder %s21, 0
    %p179 = por %p177, %p178
    %s181 = sadd.s32 %s180, 1
    %p184 = scmp.eq.s32.totalorder %s15, 1
    %p185 = scmp.ne.s32.totalorder %s180, %s182
    %p186 = scmp.eq.s32.totalorder %s15, 0
    %p187 = por %p185, %p186
    %p188 = scmp.ne.s32.totalorder %s180, %s182
    %p189 = scmp.eq.s32.totalorder %s20, 1
    %p190 = por %p188, %p189
    %p191 = scmp.ne.s32.totalorder %s182, %s183
    %p192 = scmp.eq.s32.totalorder %s20, 0
    %p193 = por %p191, %p192
    %p194 = scmp.ne.s32.totalorder %s182, %s183
    %p195 = scmp.eq.s32.totalorder %s21, 1
    %p196 = por %p194, %p195
    %p198 = scmp.ne.s32.totalorder %s183, %s197
    %p199 = scmp.eq.s32.totalorder %s21, 0
    %p200 = por %p198, %p199
    %s202 = sadd.s32 %s201, 1
    %p205 = scmp.eq.s32.totalorder %s15, 1
    %p206 = scmp.ne.s32.totalorder %s201, %s203
    %p207 = scmp.eq.s32.totalorder %s15, 0
    %p208 = por %p206, %p207
    %p209 = scmp.ne.s32.totalorder %s201, %s203
    %p210 = scmp.eq.s32.totalorder %s20, 1
    %p211 = por %p209, %p210
    %p212 = scmp.ne.s32.totalorder %s203, %s204
    %p213 = scmp.eq.s32.totalorder %s20, 0
    %p214 = por %p212, %p213
    %p215 = scmp.ne.s32.totalorder %s203, %s204
    %p216 = scmp.eq.s32.totalorder %s21, 1
    %p217 = por %p215, %p216
    %p219 = scmp.ne.s32.totalorder %s204, %s218
    %p220 = scmp.eq.s32.totalorder %s21, 0
    %p221 = por %p219, %p220
    %s222 = ssub.s32 %s15, %s22
    %p223 = scmp.eq.s32.totalorder %s222, 0
    %s225 = sadd.s32 %s224, 1
    %s226 = scalar_select %p223, %s224, %s225
    %p229 = pneg %p223
    %p230 = scmp.eq.s32.totalorder %s15, 1
    %p231 = por %p229, %p230
    %p232 = scmp.ne.s32.totalorder %s224, %s227
    %p233 = scmp.eq.s32.totalorder %s15, 0
    %p234 = por %p232, %p233
    %p235 = scmp.ne.s32.totalorder %s224, %s227
    %p236 = scmp.eq.s32.totalorder %s20, 1
    %p237 = por %p235, %p236
    %p238 = scmp.ne.s32.totalorder %s227, %s228
    %p239 = scmp.eq.s32.totalorder %s20, 0
    %p240 = por %p238, %p239
    %p241 = scmp.ne.s32.totalorder %s227, %s228
    %p242 = scmp.eq.s32.totalorder %s21, 1
    %p243 = por %p241, %p242
    %p245 = scmp.ne.s32.totalorder %s228, %s244
    %p246 = scmp.eq.s32.totalorder %s21, 0
    %p247 = por %p245, %p246
    %p248 = scmp.le.s32.totalorder 1, %s15
    %p249 = scmp.lt.s32.totalorder %s15, 3
    %p250 = pnand %p248, %p249
    %p251 = pneg %p250
    // Predicated region
    $region9: #{tpu_custom_call.1} parent=5 // pred_check
      _
    $region10: #{tpu_custom_call.1} parent=5 // pred_check_branch
      %253 = sbr.rel (%p250) target = $region12
    $region11: #{tpu_custom_call.1} parent=5 // pred_region
      %s254 = ssub.s32 %s15, 1
      // Predicated region
      $region13: #{tpu_custom_call.1} parent=11 // pred_check
        %p255 = pneg %p88
      $region14: #{tpu_custom_call.1} parent=11 // pred_check_branch
        %257 = sbr.rel (%p255) target = $region16
      $region15: #{tpu_custom_call.1} parent=11 // pred_region
        _
      $region16: #{tpu_custom_call.1} parent=11 // pred_fallthru
        _
      // Predicated region
      $region17: #{tpu_custom_call.1} parent=11 // pred_check
        %p258 = pneg %p109
      $region18: #{tpu_custom_call.1} parent=11 // pred_check_branch
        %260 = sbr.rel (%p258) target = $region20
      $region19: #{tpu_custom_call.1} parent=11 // pred_region
        _
      $region20: #{tpu_custom_call.1} parent=11 // pred_fallthru
        _
      // Predicated region
      $region21: #{tpu_custom_call.1} parent=11 // pred_check
        %p261 = pneg %p130
      $region22: #{tpu_custom_call.1} parent=11 // pred_check_branch
        %263 = sbr.rel (%p261) target = $region24
      $region23: #{tpu_custom_call.1} parent=11 // pred_region
        _
      $region24: #{tpu_custom_call.1} parent=11 // pred_fallthru
        _
      // Predicated region
      $region25: #{tpu_custom_call.1} parent=11 // pred_check
        %p264 = pneg %p151
      $region26: #{tpu_custom_call.1} parent=11 // pred_check_branch
        %266 = sbr.rel (%p264) target = $region28
      $region27: #{tpu_custom_call.1} parent=11 // pred_region
        _
      $region28: #{tpu_custom_call.1} parent=11 // pred_fallthru
        _
      // Predicated region
      $region29: #{tpu_custom_call.1} parent=11 // pred_check
        %p267 = pneg %p172
      $region30: #{tpu_custom_call.1} parent=11 // pred_check_branch
        %269 = sbr.rel (%p267) target = $region32
      $region31: #{tpu_custom_call.1} parent=11 // pred_region
        _
      $region32: #{tpu_custom_call.1} parent=11 // pred_fallthru
        _
      // Predicated region
      $region33: #{tpu_custom_call.1} parent=11 // pred_check
        %p270 = pneg %p193
      $region34: #{tpu_custom_call.1} parent=11 // pred_check_branch
        %272 = sbr.rel (%p270) target = $region36
      $region35: #{tpu_custom_call.1} parent=11 // pred_region
        _
      $region36: #{tpu_custom_call.1} parent=11 // pred_fallthru
        _
      // Predicated region
      $region37: #{tpu_custom_call.1} parent=11 // pred_check
        %p273 = pneg %p214
      $region38: #{tpu_custom_call.1} parent=11 // pred_check_branch
        %275 = sbr.rel (%p273) target = $region40
      $region39: #{tpu_custom_call.1} parent=11 // pred_region
        _
      $region40: #{tpu_custom_call.1} parent=11 // pred_fallthru
        _
    $region12: #{tpu_custom_call.1} parent=5 // pred_fallthru
      _
    %p276 = scmp.lt.s32.totalorder %s15, 2
    // Predicated region
    $region41: #{tpu_custom_call.1} parent=5 // pred_check
      %p277 = pneg %p276
    $region42: #{tpu_custom_call.1} parent=5 // pred_check_branch
      %279 = sbr.rel (%p277) target = $region44
    $region43: #{tpu_custom_call.1} parent=5 // pred_region
      // Predicated region
      $region45: #{tpu_custom_call.1} parent=43 // pred_check
        %p280 = pneg %p35
      $region46: #{tpu_custom_call.1} parent=43 // pred_check_branch
        %282 = sbr.rel (%p280) target = $region48
      $region47: #{tpu_custom_call.1} parent=43 // pred_region
        %p283 = scmp.lt.s32.totalorder %s15, 1
        %s284 = scalar_select %p283, %s15, 1
        %s285 = smul.addr %s284, 32
        %s286 = smul.addr %s285, 8
        %s287 = scalar_lea.vmem %s0, %s286
      $region48: #{tpu_custom_call.1} parent=43 // pred_fallthru
        _
      // Predicated region
      $region49: #{tpu_custom_call.1} parent=43 // pred_check
        %p288 = pneg %p61
      $region50: #{tpu_custom_call.1} parent=43 // pred_check_branch
        %290 = sbr.rel (%p288) target = $region52
      $region51: #{tpu_custom_call.1} parent=43 // pred_region
        %p291 = scmp.lt.s32.totalorder %s15, 1
        %s292 = scalar_select %p291, %s15, 1
        %s293 = smul.addr %s292, 32
        %s294 = smul.addr %s293, 8
        %s295 = scalar_lea.vmem %s1, %s294
      $region52: #{tpu_custom_call.1} parent=43 // pred_fallthru
        _
    $region44: #{tpu_custom_call.1} parent=5 // pred_fallthru
      _
    %p296 = scmp.le.s32.totalorder 1, %s15
    %p297 = scmp.lt.s32.totalorder %s15, 3
    %p298 = pnand %p296, %p297
    %p299 = pneg %p298
    // Predicated region
    $region53: #{tpu_custom_call.1} parent=5 // pred_check
      _
    $region54: #{tpu_custom_call.1} parent=5 // pred_check_branch
      %301 = sbr.rel (%p298) target = $region56
    $region55: #{tpu_custom_call.1} parent=5 // pred_region
      %s302 = ssub.s32 %s15, 1
      %p303 = scmp.lt.s32.totalorder %s20, 1
      %s304 = scalar_select %p303, %s20, 1
      %s305 = smul.addr %s304, 32
      %s306 = smul.addr %s305, 8
      %s307 = scalar_lea.vmem %s0, %s306
      %p308 = pneg %p41
      %p309 = pneg %p38
      %p310 = scmp.lt.s32.totalorder %s20, 1
      %s311 = scalar_select %p310, %s20, 1
      %s312 = smul.addr %s311, 32
      %s313 = smul.addr %s312, 8
      %s314 = scalar_lea.vmem %s1, %s313
      %p315 = pneg %p67
      %p316 = pneg %p64
      %p317 = pneg %p88
      %p318 = pneg %p85
      %p319 = pneg %p109
      %p320 = pneg %p106
      %p321 = pneg %p130
      %p322 = pneg %p127
      %p323 = pneg %p151
      %p324 = pneg %p148
      %p325 = pneg %p172
      %p326 = pneg %p169
      %p327 = pneg %p193
      %p328 = pneg %p190
      %p329 = pneg %p214
      %p330 = pneg %p211
      %p331 = pneg %p240
      %p332 = pneg %p237
      %p333 = scmp.lt.s32.totalorder %s20, 1
      %s334 = scalar_select %p333, %s20, 1
      %s335 = smul.addr %s334, 32
      %s336 = smul.addr %s335, 8
      %s337 = scalar_lea.vmem %s9, %s336
      %p338 = scmp.lt.s32.totalorder %s20, 1
      %s339 = scalar_select %p338, %s20, 1
      %s340 = smul.addr %s339, 32
      %s341 = smul.addr %s340, 8
      %s342 = scalar_lea.vmem %s0, %s341
      %p343 = scmp.lt.s32.totalorder %s20, 1
      %s344 = scalar_select %p343, %s20, 1
      %s345 = smul.addr %s344, 32
      %s346 = smul.addr %s345, 8
      %s347 = scalar_lea.vmem %s1, %s346
      %p348 = scmp.lt.s32.totalorder %s20, 1
      %s349 = scalar_select %p348, %s20, 1
      %s350 = smul.addr %s349, 32
      %s351 = smul.addr %s350, 8
      %s352 = scalar_lea.vmem %s9, %s351
      %v353 = vld [vmem:[%s342] sm:$0xff]
      %v354 = vld [vmem:[%s342 + $0x8] sm:$0xff]
      %v355 = vld [vmem:[%s342 + $0x10] sm:$0xff]
      %v356 = vld [vmem:[%s342 + $0x18] sm:$0xff]
      %v357 = vld [vmem:[%s342 + $0x20] sm:$0xff]
      %v358 = vld [vmem:[%s342 + $0x28] sm:$0xff]
      %v359 = vld [vmem:[%s342 + $0x30] sm:$0xff]
      %v360 = vld [vmem:[%s342 + $0x38] sm:$0xff]
      %v361 = vld [vmem:[%s342 + $0x40] sm:$0xff]
      %v362 = vld [vmem:[%s342 + $0x48] sm:$0xff]
      %v363 = vld [vmem:[%s342 + $0x50] sm:$0xff]
      %v364 = vld [vmem:[%s342 + $0x58] sm:$0xff]
      %v365 = vld [vmem:[%s342 + $0x60] sm:$0xff]
      %v366 = vld [vmem:[%s342 + $0x68] sm:$0xff]
      %v367 = vld [vmem:[%s342 + $0x70] sm:$0xff]
      %v368 = vld [vmem:[%s342 + $0x78] sm:$0xff]
      %v369 = vld [vmem:[%s342 + $0x80] sm:$0xff]
      %v370 = vld [vmem:[%s342 + $0x88] sm:$0xff]
      %v371 = vld [vmem:[%s342 + $0x90] sm:$0xff]
      %v372 = vld [vmem:[%s342 + $0x98] sm:$0xff]
      %v373 = vld [vmem:[%s342 + $0xa0] sm:$0xff]
      %v374 = vld [vmem:[%s342 + $0xa8] sm:$0xff]
      %v375 = vld [vmem:[%s342 + $0xb0] sm:$0xff]
      %v376 = vld [vmem:[%s342 + $0xb8] sm:$0xff]
      %v377 = vld [vmem:[%s342 + $0xc0] sm:$0xff]
      %v378 = vld [vmem:[%s342 + $0xc8] sm:$0xff]
      %v379 = vld [vmem:[%s342 + $0xd0] sm:$0xff]
      %v380 = vld [vmem:[%s342 + $0xd8] sm:$0xff]
      %v381 = vld [vmem:[%s342 + $0xe0] sm:$0xff]
      %v382 = vld [vmem:[%s342 + $0xe8] sm:$0xff]
      %v383 = vld [vmem:[%s342 + $0xf0] sm:$0xff]
      %v384 = vld [vmem:[%s342 + $0xf8] sm:$0xff]
      %v385 = vld [vmem:[%s2] sm:$0xf]
      %v386 = vld [vmem:[%s347] sm:$0xff]
      %v387 = vld [vmem:[%s347 + $0x8] sm:$0xff]
      %v388 = vld [vmem:[%s347 + $0x10] sm:$0xff]
      %v389 = vld [vmem:[%s347 + $0x18] sm:$0xff]
      %v390 = vld [vmem:[%s347 + $0x20] sm:$0xff]
      %v391 = vld [vmem:[%s347 + $0x28] sm:$0xff]
      %v392 = vld [vmem:[%s347 + $0x30] sm:$0xff]
      %v393 = vld [vmem:[%s347 + $0x38] sm:$0xff]
      %v394 = vld [vmem:[%s347 + $0x40] sm:$0xff]
      %v395 = vld [vmem:[%s347 + $0x48] sm:$0xff]
      %v396 = vld [vmem:[%s347 + $0x50] sm:$0xff]
      %v397 = vld [vmem:[%s347 + $0x58] sm:$0xff]
      %v398 = vld [vmem:[%s347 + $0x60] sm:$0xff]
      %v399 = vld [vmem:[%s347 + $0x68] sm:$0xff]
      %v400 = vld [vmem:[%s347 + $0x70] sm:$0xff]
      %v401 = vld [vmem:[%s347 + $0x78] sm:$0xff]
      %v402 = vld [vmem:[%s347 + $0x80] sm:$0xff]
      %v403 = vld [vmem:[%s347 + $0x88] sm:$0xff]
      %v404 = vld [vmem:[%s347 + $0x90] sm:$0xff]
      %v405 = vld [vmem:[%s347 + $0x98] sm:$0xff]
      %v406 = vld [vmem:[%s347 + $0xa0] sm:$0xff]
      %v407 = vld [vmem:[%s347 + $0xa8] sm:$0xff]
      %v408 = vld [vmem:[%s347 + $0xb0] sm:$0xff]
      %v409 = vld [vmem:[%s347 + $0xb8] sm:$0xff]
      %v410 = vld [vmem:[%s347 + $0xc0] sm:$0xff]
      %v411 = vld [vmem:[%s347 + $0xc8] sm:$0xff]
      %v412 = vld [vmem:[%s347 + $0xd0] sm:$0xff]
      %v413 = vld [vmem:[%s347 + $0xd8] sm:$0xff]
      %v414 = vld [vmem:[%s347 + $0xe0] sm:$0xff]
      %v415 = vld [vmem:[%s347 + $0xe8] sm:$0xff]
      %v416 = vld [vmem:[%s347 + $0xf0] sm:$0xff]
      %v417 = vld [vmem:[%s347 + $0xf8] sm:$0xff]
      %v418 = vld [vmem:[%s3] sm:$0xf]
      %vm419 = vcmask 31744
      %v421 = vsel %vm419, %v386, 0
      %v424 = vsel %vm419, %v387, 0
      %v427 = vsel %vm419, %v388, 0
      %v430 = vsel %vm419, %v389, 0
      %v433 = vsel %vm419, %v390, 0
      %v436 = vsel %vm419, %v391, 0
      %v439 = vsel %vm419, %v392, 0
      %v442 = vsel %vm419, %v393, 0
      %v445 = vsel %vm419, %v394, 0
      %v448 = vsel %vm419, %v395, 0
      %v451 = vsel %vm419, %v396, 0
      %v454 = vsel %vm419, %v397, 0
      %v457 = vsel %vm419, %v398, 0
      %v460 = vsel %vm419, %v399, 0
      %v463 = vsel %vm419, %v400, 0
      %v466 = vsel %vm419, %v401, 0
      %v469 = vsel %vm419, %v402, 0
      %v472 = vsel %vm419, %v403, 0
      %v475 = vsel %vm419, %v404, 0
      %v478 = vsel %vm419, %v405, 0
      %v481 = vsel %vm419, %v406, 0
      %v484 = vsel %vm419, %v407, 0
      %v487 = vsel %vm419, %v408, 0
      %v490 = vsel %vm419, %v409, 0
      %v493 = vsel %vm419, %v410, 0
      %v496 = vsel %vm419, %v411, 0
      %v499 = vsel %vm419, %v412, 0
      %v502 = vsel %vm419, %v413, 0
      %v505 = vsel %vm419, %v414, 0
      %v508 = vsel %vm419, %v415, 0
      %v511 = vsel %vm419, %v416, 0
      %v514 = vsel %vm419, %v417, 0
      %vm516 = vcmask 1043456
      %v518 = vsel %vm516, %v418, 0
      %520 = vmatprep.subr.mxu0 0.0
      %521 = vmatpush1.msra.mxu0 %v518
      %522 = vmatprep.subr.mxu0 0.0
      %523 = vmatpush1.msra.mxu0 0.0
      %524 = vmatprep.subr.mxu0 0.0
      %525 = vmatpush1.msra.mxu0 0.0
      %526 = vmatprep.subr.mxu0 0.0
      %527 = vmatpush1.msra.mxu0 0.0
      %528 = vmatprep.subr.mxu0 0.0
      %529 = vmatpush1.msra.mxu0 0.0
      %530 = vmatprep.subr.mxu0 0.0
      %531 = vmatpush1.msra.mxu0 0.0
      %532 = vmatprep.subr.mxu0 0.0
      %533 = vmatpush1.msra.mxu0 0.0
      %534 = vmatprep.subr.mxu0 0.0
      %535 = vmatpush1.msra.mxu0 0.0
      %536 = vmatprep.subr.mxu0 0.0
      %537 = vmatpush1.msra.mxu0 0.0
      %538 = vmatprep.subr.mxu0 0.0
      %539 = vmatpush1.msra.mxu0 0.0
      %540 = vmatprep.subr.mxu0 0.0
      %541 = vmatpush1.msra.mxu0 0.0
      %542 = vmatprep.subr.mxu0 0.0
      %543 = vmatpush1.msra.mxu0 0.0
      %544 = vmatprep.subr.mxu0 0.0
      %545 = vmatpush1.msra.mxu0 0.0
      %546 = vmatprep.subr.mxu0 0.0
      %547 = vmatpush1.msra.mxu0 0.0
      %548 = vmatprep.subr.mxu0 0.0
      %549 = vmatpush1.msra.mxu0 0.0
      %550 = vmatprep.subr.mxu0 0.0
      %551 = vmatpush1.msra.mxu0 0.0
      %552 = vmatprep.subr.mxu0 0.0
      %553 = vmatpush1.msra.mxu0 0.0
      %554 = vmatprep.subr.mxu0 0.0
      %555 = vmatpush1.msra.mxu0 0.0
      %556 = vmatprep.subr.mxu0 0.0
      %557 = vmatpush1.msra.mxu0 0.0
      %558 = vmatprep.subr.mxu0 0.0
      %559 = vmatpush1.msra.mxu0 0.0
      %560 = vmatprep.subr.mxu0 0.0
      %561 = vmatpush1.msra.mxu0 0.0
      %562 = vmatprep.subr.mxu0 0.0
      %563 = vmatpush1.msra.mxu0 0.0
      %564 = vmatprep.subr.mxu0 0.0
      %565 = vmatpush1.msra.mxu0 0.0
      %566 = vmatprep.subr.mxu0 0.0
      %567 = vmatpush1.msra.mxu0 0.0
      %568 = vmatprep.subr.mxu0 0.0
      %569 = vmatpush1.msra.mxu0 0.0
      %570 = vmatprep.subr.mxu0 0.0
      %571 = vmatpush1.msra.mxu0 0.0
      %572 = vmatprep.subr.mxu0 0.0
      %573 = vmatpush1.msra.mxu0 0.0
      %574 = vmatprep.subr.mxu0 0.0
      %575 = vmatpush1.msra.mxu0 0.0
      %576 = vmatprep.subr.mxu0 0.0
      %577 = vmatpush1.msra.mxu0 0.0
      %578 = vmatprep.subr.mxu0 0.0
      %579 = vmatpush1.msra.mxu0 0.0
      %580 = vmatprep.subr.mxu0 0.0
      %581 = vmatpush1.msra.mxu0 0.0
      %582 = vmatprep.subr.mxu0 0.0
      %583 = vmatpush1.msra.mxu0 0.0
      %584 = vmatprep.mubr.f32.mxu0 0.0
      %585 = vmatmul.mubr.f32.gmra.mrb[0].mxu0 %v421
      %v586 = vpop.f32.mrb[0].mxu0
      %v587 = vadd.f32 0.0, %v586
      %v588 = vpop.f32.mrb[0].mxu0
      %589 = vmatprep.mubr.f32.mxu0 0.0
      %590 = vmatmul.mubr.f32.gmra.mrb[0].mxu0 %v424
      %v591 = vpop.f32.mrb[0].mxu0
      %v592 = vadd.f32 0.0, %v591
      %v593 = vpop.f32.mrb[0].mxu0
      %594 = vmatprep.mubr.f32.mxu0 0.0
      %595 = vmatmul.mubr.f32.gmra.mrb[0].mxu0 %v427
      %v596 = vpop.f32.mrb[0].mxu0
      %v597 = vadd.f32 0.0, %v596
      %v598 = vpop.f32.mrb[0].mxu0
      %599 = vmatprep.mubr.f32.mxu0 0.0
      %600 = vmatmul.mubr.f32.gmra.mrb[0].mxu0 %v430
      %v601 = vpop.f32.mrb[0].mxu0
      %v602 = vadd.f32 0.0, %v601
      %v603 = vpop.f32.mrb[0].mxu0
      %604 = vmatprep.mubr.f32.mxu0 0.0
      %605 = vmatmul.mubr.f32.gmra.mrb[0].mxu0 %v433
      %v606 = vpop.f32.mrb[0].mxu0
      %v607 = vadd.f32 0.0, %v606
      %v608 = vpop.f32.mrb[0].mxu0
      %609 = vmatprep.mubr.f32.mxu0 0.0
      %610 = vmatmul.mubr.f32.gmra.mrb[0].mxu0 %v436
      %v611 = vpop.f32.mrb[0].mxu0
      %v612 = vadd.f32 0.0, %v611
      %v613 = vpop.f32.mrb[0].mxu0
      %614 = vmatprep.mubr.f32.mxu0 0.0
      %615 = vmatmul.mubr.f32.gmra.mrb[0].mxu0 %v439
      %v616 = vpop.f32.mrb[0].mxu0
      %v617 = vadd.f32 0.0, %v616
      %v618 = vpop.f32.mrb[0].mxu0
      %619 = vmatprep.mubr.f32.mxu0 0.0
      %620 = vmatmul.mubr.f32.gmra.mrb[0].mxu0 %v442
      %v621 = vpop.f32.mrb[0].mxu0
      %v622 = vadd.f32 0.0, %v621
      %v623 = vpop.f32.mrb[0].mxu0
      %624 = vmatprep.mubr.f32.mxu0 0.0
      %625 = vmatmul.mubr.f32.gmra.mrb[0].mxu0 %v445
      %v626 = vpop.f32.mrb[0].mxu0
      %v627 = vadd.f32 0.0, %v626
      %v628 = vpop.f32.mrb[0].mxu0
      %629 = vmatprep.mubr.f32.mxu0 0.0
      %630 = vmatmul.mubr.f32.gmra.mrb[0].mxu0 %v448
      %v631 = vpop.f32.mrb[0].mxu0
      %v632 = vadd.f32 0.0, %v631
      %v633 = vpop.f32.mrb[0].mxu0
      %634 = vmatprep.mubr.f32.mxu0 0.0
      %635 = vmatmul.mubr.f32.gmra.mrb[0].mxu0 %v451
      %v636 = vpop.f32.mrb[0].mxu0
      %v637 = vadd.f32 0.0, %v636
      %v638 = vpop.f32.mrb[0].mxu0
      %639 = vmatprep.mubr.f32.mxu0 0.0
      %640 = vmatmul.mubr.f32.gmra.mrb[0].mxu0 %v454
      %v641 = vpop.f32.mrb[0].mxu0
      %v642 = vadd.f32 0.0, %v641
      %v643 = vpop.f32.mrb[0].mxu0
      %644 = vmatprep.mubr.f32.mxu0 0.0
      %645 = vmatmul.mubr.f32.gmra.mrb[0].mxu0 %v457
      %v646 = vpop.f32.mrb[0].mxu0
      %v647 = vadd.f32 0.0, %v646
      %v648 = vpop.f32.mrb[0].mxu0
      %649 = vmatprep.mubr.f32.mxu0 0.0
      %650 = vmatmul.mubr.f32.gmra.mrb[0].mxu0 %v460
      %v651 = vpop.f32.mrb[0].mxu0
      %v652 = vadd.f32 0.0, %v651
      %v653 = vpop.f32.mrb[0].mxu0
      %654 = vmatprep.mubr.f32.mxu0 0.0
      %655 = vmatmul.mubr.f32.gmra.mrb[0].mxu0 %v463
      %v656 = vpop.f32.mrb[0].mxu0
      %v657 = vadd.f32 0.0, %v656
      %v658 = vpop.f32.mrb[0].mxu0
      %659 = vmatprep.mubr.f32.mxu0 0.0
      %660 = vmatmul.mubr.f32.gmra.mrb[0].mxu0 %v466
      %v661 = vpop.f32.mrb[0].mxu0
      %v662 = vadd.f32 0.0, %v661
      %v663 = vpop.f32.mrb[0].mxu0
      %664 = vmatprep.mubr.f32.mxu0 0.0
      %665 = vmatmul.mubr.f32.gmra.mrb[0].mxu0 %v469
      %v666 = vpop.f32.mrb[0].mxu0
      %v667 = vadd.f32 0.0, %v666
      %v668 = vpop.f32.mrb[0].mxu0
      %669 = vmatprep.mubr.f32.mxu0 0.0
      %670 = vmatmul.mubr.f32.gmra.mrb[0].mxu0 %v472
      %v671 = vpop.f32.mrb[0].mxu0
      %v672 = vadd.f32 0.0, %v671
      %v673 = vpop.f32.mrb[0].mxu0
      %674 = vmatprep.mubr.f32.mxu0 0.0
      %675 = vmatmul.mubr.f32.gmra.mrb[0].mxu0 %v475
      %v676 = vpop.f32.mrb[0].mxu0
      %v677 = vadd.f32 0.0, %v676
      %v678 = vpop.f32.mrb[0].mxu0
      %679 = vmatprep.mubr.f32.mxu0 0.0
      %680 = vmatmul.mubr.f32.gmra.mrb[0].mxu0 %v478
      %v681 = vpop.f32.mrb[0].mxu0
      %v682 = vadd.f32 0.0, %v681
      %v683 = vpop.f32.mrb[0].mxu0
      %684 = vmatprep.mubr.f32.mxu0 0.0
      %685 = vmatmul.mubr.f32.gmra.mrb[0].mxu0 %v481
      %v686 = vpop.f32.mrb[0].mxu0
      %v687 = vadd.f32 0.0, %v686
      %v688 = vpop.f32.mrb[0].mxu0
      %689 = vmatprep.mubr.f32.mxu0 0.0
      %690 = vmatmul.mubr.f32.gmra.mrb[0].mxu0 %v484
      %v691 = vpop.f32.mrb[0].mxu0
      %v692 = vadd.f32 0.0, %v691
      %v693 = vpop.f32.mrb[0].mxu0
      %694 = vmatprep.mubr.f32.mxu0 0.0
      %695 = vmatmul.mubr.f32.gmra.mrb[0].mxu0 %v487
      %v696 = vpop.f32.mrb[0].mxu0
      %v697 = vadd.f32 0.0, %v696
      %v698 = vpop.f32.mrb[0].mxu0
      %699 = vmatprep.mubr.f32.mxu0 0.0
      %700 = vmatmul.mubr.f32.gmra.mrb[0].mxu0 %v490
      %v701 = vpop.f32.mrb[0].mxu0
      %v702 = vadd.f32 0.0, %v701
      %v703 = vpop.f32.mrb[0].mxu0
      %704 = vmatprep.mubr.f32.mxu0 0.0
      %705 = vmatmul.mubr.f32.gmra.mrb[0].mxu0 %v493
      %v706 = vpop.f32.mrb[0].mxu0
      %v707 = vadd.f32 0.0, %v706
      %v708 = vpop.f32.mrb[0].mxu0
      %709 = vmatprep.mubr.f32.mxu0 0.0
      %710 = vmatmul.mubr.f32.gmra.mrb[0].mxu0 %v496
      %v711 = vpop.f32.mrb[0].mxu0
      %v712 = vadd.f32 0.0, %v711
      %v713 = vpop.f32.mrb[0].mxu0
      %714 = vmatprep.mubr.f32.mxu0 0.0
      %715 = vmatmul.mubr.f32.gmra.mrb[0].mxu0 %v499
      %v716 = vpop.f32.mrb[0].mxu0
      %v717 = vadd.f32 0.0, %v716
      %v718 = vpop.f32.mrb[0].mxu0
      %719 = vmatprep.mubr.f32.mxu0 0.0
      %720 = vmatmul.mubr.f32.gmra.mrb[0].mxu0 %v502
      %v721 = vpop.f32.mrb[0].mxu0
      %v722 = vadd.f32 0.0, %v721
      %v723 = vpop.f32.mrb[0].mxu0
      %724 = vmatprep.mubr.f32.mxu0 0.0
      %725 = vmatmul.mubr.f32.gmra.mrb[0].mxu0 %v505
      %v726 = vpop.f32.mrb[0].mxu0
      %v727 = vadd.f32 0.0, %v726
      %v728 = vpop.f32.mrb[0].mxu0
      %729 = vmatprep.mubr.f32.mxu0 0.0
      %730 = vmatmul.mubr.f32.gmra.mrb[0].mxu0 %v508
      %v731 = vpop.f32.mrb[0].mxu0
      %v732 = vadd.f32 0.0, %v731
      %v733 = vpop.f32.mrb[0].mxu0
      %734 = vmatprep.mubr.f32.mxu0 0.0
      %735 = vmatmul.mubr.f32.gmra.mrb[0].mxu0 %v511
      %v736 = vpop.f32.mrb[0].mxu0
      %v737 = vadd.f32 0.0, %v736
      %v738 = vpop.f32.mrb[0].mxu0
      %739 = vmatprep.mubr.f32.mxu0 0.0
      %740 = vmatmul.mubr.f32.gmra.mrb[0].mxu0 %v514
      %v741 = vpop.f32.mrb[0].mxu0
      %v742 = vadd.f32 0.0, %v741
      %v743 = vpop.f32.mrb[0].mxu0
      %744 = vdwg.mxu0
      %v746 = vsel %vm419, %v353, 0
      %v749 = vsel %vm419, %v354, 0
      %v752 = vsel %vm419, %v355, 0
      %v755 = vsel %vm419, %v356, 0
      %v758 = vsel %vm419, %v357, 0
      %v761 = vsel %vm419, %v358, 0
      %v764 = vsel %vm419, %v359, 0
      %v767 = vsel %vm419, %v360, 0
      %v770 = vsel %vm419, %v361, 0
      %v773 = vsel %vm419, %v362, 0
      %v776 = vsel %vm419, %v363, 0
      %v779 = vsel %vm419, %v364, 0
      %v782 = vsel %vm419, %v365, 0
      %v785 = vsel %vm419, %v366, 0
      %v788 = vsel %vm419, %v367, 0
      %v791 = vsel %vm419, %v368, 0
      %v794 = vsel %vm419, %v369, 0
      %v797 = vsel %vm419, %v370, 0
      %v800 = vsel %vm419, %v371, 0
      %v803 = vsel %vm419, %v372, 0
      %v806 = vsel %vm419, %v373, 0
      %v809 = vsel %vm419, %v374, 0
      %v812 = vsel %vm419, %v375, 0
      %v815 = vsel %vm419, %v376, 0
      %v818 = vsel %vm419, %v377, 0
      %v821 = vsel %vm419, %v378, 0
      %v824 = vsel %vm419, %v379, 0
      %v827 = vsel %vm419, %v380, 0
      %v830 = vsel %vm419, %v381, 0
      %v833 = vsel %vm419, %v382, 0
      %v836 = vsel %vm419, %v383, 0
      %v839 = vsel %vm419, %v384, 0
      %v842 = vsel %vm516, %v385, 0
      %844 = vmatprep.subr.mxu0 0.0
      %845 = vmatpush1.msra.mxu0 %v842
      %846 = vmatprep.subr.mxu0 0.0
      %847 = vmatpush1.msra.mxu0 0.0
      %848 = vmatprep.subr.mxu0 0.0
      %849 = vmatpush1.msra.mxu0 0.0
      %850 = vmatprep.subr.mxu0 0.0
      %851 = vmatpush1.msra.mxu0 0.0
      %852 = vmatprep.subr.mxu0 0.0
      %853 = vmatpush1.msra.mxu0 0.0
      %854 = vmatprep.subr.mxu0 0.0
      %855 = vmatpush1.msra.mxu0 0.0
      %856 = vmatprep.subr.mxu0 0.0
      %857 = vmatpush1.msra.mxu0 0.0
      %858 = vmatprep.subr.mxu0 0.0
      %859 = vmatpush1.msra.mxu0 0.0
      %860 = vmatprep.subr.mxu0 0.0
      %861 = vmatpush1.msra.mxu0 0.0
      %862 = vmatprep.subr.mxu0 0.0
      %863 = vmatpush1.msra.mxu0 0.0
      %864 = vmatprep.subr.mxu0 0.0
      %865 = vmatpush1.msra.mxu0 0.0
      %866 = vmatprep.subr.mxu0 0.0
      %867 = vmatpush1.msra.mxu0 0.0
      %868 = vmatprep.subr.mxu0 0.0
      %869 = vmatpush1.msra.mxu0 0.0
      %870 = vmatprep.subr.mxu0 0.0
      %871 = vmatpush1.msra.mxu0 0.0
      %872 = vmatprep.subr.mxu0 0.0
      %873 = vmatpush1.msra.mxu0 0.0
      %874 = vmatprep.subr.mxu0 0.0
      %875 = vmatpush1.msra.mxu0 0.0
      %876 = vmatprep.subr.mxu0 0.0
      %877 = vmatpush1.msra.mxu0 0.0
      %878 = vmatprep.subr.mxu0 0.0
      %879 = vmatpush1.msra.mxu0 0.0
      %880 = vmatprep.subr.mxu0 0.0
      %881 = vmatpush1.msra.mxu0 0.0
      %882 = vmatprep.subr.mxu0 0.0
      %883 = vmatpush1.msra.mxu0 0.0
      %884 = vmatprep.subr.mxu0 0.0
      %885 = vmatpush1.msra.mxu0 0.0
      %886 = vmatprep.subr.mxu0 0.0
      %887 = vmatpush1.msra.mxu0 0.0
      %888 = vmatprep.subr.mxu0 0.0
      %889 = vmatpush1.msra.mxu0 0.0
      %890 = vmatprep.subr.mxu0 0.0
      %891 = vmatpush1.msra.mxu0 0.0
      %892 = vmatprep.subr.mxu0 0.0
      %893 = vmatpush1.msra.mxu0 0.0
      %894 = vmatprep.subr.mxu0 0.0
      %895 = vmatpush1.msra.mxu0 0.0
      %896 = vmatprep.subr.mxu0 0.0
      %897 = vmatpush1.msra.mxu0 0.0
      %898 = vmatprep.subr.mxu0 0.0
      %899 = vmatpush1.msra.mxu0 0.0
      %900 = vmatprep.subr.mxu0 0.0
      %901 = vmatpush1.msra.mxu0 0.0
      %902 = vmatprep.subr.mxu0 0.0
      %903 = vmatpush1.msra.mxu0 0.0
      %904 = vmatprep.subr.mxu0 0.0
      %905 = vmatpush1.msra.mxu0 0.0
      %906 = vmatprep.subr.mxu0 0.0
      %907 = vmatpush1.msra.mxu0 0.0
      %908 = vmatprep.mubr.f32.mxu0 0.0
      %909 = vmatmul.mubr.f32.gmra.mrb[0].mxu0 %v746
      %v910 = vpop.f32.mrb[0].mxu0
      %v911 = vadd.f32 %v587, %v910
      %v912 = vpop.f32.mrb[0].mxu0
      %913 = vmatprep.mubr.f32.mxu0 0.0
      %914 = vmatmul.mubr.f32.gmra.mrb[0].mxu0 %v749
      %v915 = vpop.f32.mrb[0].mxu0
      %v916 = vadd.f32 %v592, %v915
      %v917 = vpop.f32.mrb[0].mxu0
      %918 = vmatprep.mubr.f32.mxu0 0.0
      %919 = vmatmul.mubr.f32.gmra.mrb[0].mxu0 %v752
      %v920 = vpop.f32.mrb[0].mxu0
      %v921 = vadd.f32 %v597, %v920
      %v922 = vpop.f32.mrb[0].mxu0
      %923 = vmatprep.mubr.f32.mxu0 0.0
      %924 = vmatmul.mubr.f32.gmra.mrb[0].mxu0 %v755
      %v925 = vpop.f32.mrb[0].mxu0
      %v926 = vadd.f32 %v602, %v925
      %v927 = vpop.f32.mrb[0].mxu0
      %928 = vmatprep.mubr.f32.mxu0 0.0
      %929 = vmatmul.mubr.f32.gmra.mrb[0].mxu0 %v758
      %v930 = vpop.f32.mrb[0].mxu0
      %v931 = vadd.f32 %v607, %v930
      %v932 = vpop.f32.mrb[0].mxu0
      %933 = vmatprep.mubr.f32.mxu0 0.0
      %934 = vmatmul.mubr.f32.gmra.mrb[0].mxu0 %v761
      %v935 = vpop.f32.mrb[0].mxu0
      %v936 = vadd.f32 %v612, %v935
      %v937 = vpop.f32.mrb[0].mxu0
      %938 = vmatprep.mubr.f32.mxu0 0.0
      %939 = vmatmul.mubr.f32.gmra.mrb[0].mxu0 %v764
      %v940 = vpop.f32.mrb[0].mxu0
      %v941 = vadd.f32 %v617, %v940
      %v942 = vpop.f32.mrb[0].mxu0
      %943 = vmatprep.mubr.f32.mxu0 0.0
      %944 = vmatmul.mubr.f32.gmra.mrb[0].mxu0 %v767
      %v945 = vpop.f32.mrb[0].mxu0
      %v946 = vadd.f32 %v622, %v945
      %v947 = vpop.f32.mrb[0].mxu0
      %948 = vmatprep.mubr.f32.mxu0 0.0
      %949 = vmatmul.mubr.f32.gmra.mrb[0].mxu0 %v770
      %v950 = vpop.f32.mrb[0].mxu0
      %v951 = vadd.f32 %v627, %v950
      %v952 = vpop.f32.mrb[0].mxu0
      %953 = vmatprep.mubr.f32.mxu0 0.0
      %954 = vmatmul.mubr.f32.gmra.mrb[0].mxu0 %v773
      %v955 = vpop.f32.mrb[0].mxu0
      %v956 = vadd.f32 %v632, %v955
      %v957 = vpop.f32.mrb[0].mxu0
      %958 = vmatprep.mubr.f32.mxu0 0.0
      %959 = vmatmul.mubr.f32.gmra.mrb[0].mxu0 %v776
      %v960 = vpop.f32.mrb[0].mxu0
      %v961 = vadd.f32 %v637, %v960
      %v962 = vpop.f32.mrb[0].mxu0
      %963 = vmatprep.mubr.f32.mxu0 0.0
      %964 = vmatmul.mubr.f32.gmra.mrb[0].mxu0 %v779
      %v965 = vpop.f32.mrb[0].mxu0
      %v966 = vadd.f32 %v642, %v965
      %v967 = vpop.f32.mrb[0].mxu0
      %968 = vmatprep.mubr.f32.mxu0 0.0
      %969 = vmatmul.mubr.f32.gmra.mrb[0].mxu0 %v782
      %v970 = vpop.f32.mrb[0].mxu0
      %v971 = vadd.f32 %v647, %v970
      %v972 = vpop.f32.mrb[0].mxu0
      %973 = vmatprep.mubr.f32.mxu0 0.0
      %974 = vmatmul.mubr.f32.gmra.mrb[0].mxu0 %v785
      %v975 = vpop.f32.mrb[0].mxu0
      %v976 = vadd.f32 %v652, %v975
      %v977 = vpop.f32.mrb[0].mxu0
      %978 = vmatprep.mubr.f32.mxu0 0.0
      %979 = vmatmul.mubr.f32.gmra.mrb[0].mxu0 %v788
      %v980 = vpop.f32.mrb[0].mxu0
      %v981 = vadd.f32 %v657, %v980
      %v982 = vpop.f32.mrb[0].mxu0
      %983 = vmatprep.mubr.f32.mxu0 0.0
      %984 = vmatmul.mubr.f32.gmra.mrb[0].mxu0 %v791
      %v985 = vpop.f32.mrb[0].mxu0
      %v986 = vadd.f32 %v662, %v985
      %v987 = vpop.f32.mrb[0].mxu0
      %988 = vmatprep.mubr.f32.mxu0 0.0
      %989 = vmatmul.mubr.f32.gmra.mrb[0].mxu0 %v794
      %v990 = vpop.f32.mrb[0].mxu0
      %v991 = vadd.f32 %v667, %v990
      %v992 = vpop.f32.mrb[0].mxu0
      %993 = vmatprep.mubr.f32.mxu0 0.0
      %994 = vmatmul.mubr.f32.gmra.mrb[0].mxu0 %v797
      %v995 = vpop.f32.mrb[0].mxu0
      %v996 = vadd.f32 %v672, %v995
      %v997 = vpop.f32.mrb[0].mxu0
      %998 = vmatprep.mubr.f32.mxu0 0.0
      %999 = vmatmul.mubr.f32.gmra.mrb[0].mxu0 %v800
      %v1000 = vpop.f32.mrb[0].mxu0
      %v1001 = vadd.f32 %v677, %v1000
      %v1002 = vpop.f32.mrb[0].mxu0
      %1003 = vmatprep.mubr.f32.mxu0 0.0
      %1004 = vmatmul.mubr.f32.gmra.mrb[0].mxu0 %v803
      %v1005 = vpop.f32.mrb[0].mxu0
      %v1006 = vadd.f32 %v682, %v1005
      %v1007 = vpop.f32.mrb[0].mxu0
      %1008 = vmatprep.mubr.f32.mxu0 0.0
      %1009 = vmatmul.mubr.f32.gmra.mrb[0].mxu0 %v806
      %v1010 = vpop.f32.mrb[0].mxu0
      %v1011 = vadd.f32 %v687, %v1010
      %v1012 = vpop.f32.mrb[0].mxu0
      %1013 = vmatprep.mubr.f32.mxu0 0.0
      %1014 = vmatmul.mubr.f32.gmra.mrb[0].mxu0 %v809
      %v1015 = vpop.f32.mrb[0].mxu0
      %v1016 = vadd.f32 %v692, %v1015
      %v1017 = vpop.f32.mrb[0].mxu0
      %1018 = vmatprep.mubr.f32.mxu0 0.0
      %1019 = vmatmul.mubr.f32.gmra.mrb[0].mxu0 %v812
      %v1020 = vpop.f32.mrb[0].mxu0
      %v1021 = vadd.f32 %v697, %v1020
      %v1022 = vpop.f32.mrb[0].mxu0
      %1023 = vmatprep.mubr.f32.mxu0 0.0
      %1024 = vmatmul.mubr.f32.gmra.mrb[0].mxu0 %v815
      %v1025 = vpop.f32.mrb[0].mxu0
      %v1026 = vadd.f32 %v702, %v1025
      %v1027 = vpop.f32.mrb[0].mxu0
      %1028 = vmatprep.mubr.f32.mxu0 0.0
      %1029 = vmatmul.mubr.f32.gmra.mrb[0].mxu0 %v818
      %v1030 = vpop.f32.mrb[0].mxu0
      %v1031 = vadd.f32 %v707, %v1030
      %v1032 = vpop.f32.mrb[0].mxu0
      %1033 = vmatprep.mubr.f32.mxu0 0.0
      %1034 = vmatmul.mubr.f32.gmra.mrb[0].mxu0 %v821
      %v1035 = vpop.f32.mrb[0].mxu0
      %v1036 = vadd.f32 %v712, %v1035
      %v1037 = vpop.f32.mrb[0].mxu0
      %1038 = vmatprep.mubr.f32.mxu0 0.0
      %1039 = vmatmul.mubr.f32.gmra.mrb[0].mxu0 %v824
      %v1040 = vpop.f32.mrb[0].mxu0
      %v1041 = vadd.f32 %v717, %v1040
      %v1042 = vpop.f32.mrb[0].mxu0
      %1043 = vmatprep.mubr.f32.mxu0 0.0
      %1044 = vmatmul.mubr.f32.gmra.mrb[0].mxu0 %v827
      %v1045 = vpop.f32.mrb[0].mxu0
      %v1046 = vadd.f32 %v722, %v1045
      %v1047 = vpop.f32.mrb[0].mxu0
      %1048 = vmatprep.mubr.f32.mxu0 0.0
      %1049 = vmatmul.mubr.f32.gmra.mrb[0].mxu0 %v830
      %v1050 = vpop.f32.mrb[0].mxu0
      %v1051 = vadd.f32 %v727, %v1050
      %v1052 = vpop.f32.mrb[0].mxu0
      %1053 = vmatprep.mubr.f32.mxu0 0.0
      %1054 = vmatmul.mubr.f32.gmra.mrb[0].mxu0 %v833
      %v1055 = vpop.f32.mrb[0].mxu0
      %v1056 = vadd.f32 %v732, %v1055
      %v1057 = vpop.f32.mrb[0].mxu0
      %1058 = vmatprep.mubr.f32.mxu0 0.0
      %1059 = vmatmul.mubr.f32.gmra.mrb[0].mxu0 %v836
      %v1060 = vpop.f32.mrb[0].mxu0
      %v1061 = vadd.f32 %v737, %v1060
      %v1062 = vpop.f32.mrb[0].mxu0
      %1063 = vmatprep.mubr.f32.mxu0 0.0
      %1064 = vmatmul.mubr.f32.gmra.mrb[0].mxu0 %v839
      %v1065 = vpop.f32.mrb[0].mxu0
      %v1066 = vadd.f32 %v742, %v1065
      %v1067 = vpop.f32.mrb[0].mxu0
      %1068 = vdwg.mxu0
      %v1069 = vld [vmem:[%s4] sm:$0x1]
      %v1071 = vlaneseq
      %v1072 = vshrl.u32 %v1071, 7
      %v1073 = vsub.s32 0, %v1072
      %v1074 = vrot.slane %v1069, %v1073
      %v1076 = vmul.f32 %v911, %v1074
      %v1077 = vmul.f32 %v916, %v1074
      %v1078 = vmul.f32 %v921, %v1074
      %v1079 = vmul.f32 %v926, %v1074
      %v1080 = vmul.f32 %v931, %v1074
      %v1081 = vmul.f32 %v936, %v1074
      %v1082 = vmul.f32 %v941, %v1074
      %v1083 = vmul.f32 %v946, %v1074
      %v1084 = vmul.f32 %v951, %v1074
      %v1085 = vmul.f32 %v956, %v1074
      %v1086 = vmul.f32 %v961, %v1074
      %v1087 = vmul.f32 %v966, %v1074
      %v1088 = vmul.f32 %v971, %v1074
      %v1089 = vmul.f32 %v976, %v1074
      %v1090 = vmul.f32 %v981, %v1074
      %v1091 = vmul.f32 %v986, %v1074
      %v1092 = vmul.f32 %v991, %v1074
      %v1093 = vmul.f32 %v996, %v1074
      %v1094 = vmul.f32 %v1001, %v1074
      %v1095 = vmul.f32 %v1006, %v1074
      %v1096 = vmul.f32 %v1011, %v1074
      %v1097 = vmul.f32 %v1016, %v1074
      %v1098 = vmul.f32 %v1021, %v1074
      %v1099 = vmul.f32 %v1026, %v1074
      %v1100 = vmul.f32 %v1031, %v1074
      %v1101 = vmul.f32 %v1036, %v1074
      %v1102 = vmul.f32 %v1041, %v1074
      %v1103 = vmul.f32 %v1046, %v1074
      %v1104 = vmul.f32 %v1051, %v1074
      %v1105 = vmul.f32 %v1056, %v1074
      %v1106 = vmul.f32 %v1061, %v1074
      %v1107 = vmul.f32 %v1066, %v1074
      %v1108 = vld [vmem:[%s5] sm:$0x1]
      %v1110 = vlaneseq
      %v1111 = vshrl.u32 %v1110, 7
      %v1112 = vsub.s32 0, %v1111
      %v1113 = vrot.slane %v1108, %v1112
      %v1115 = vadd.f32 %v1076, %v1113
      %v1116 = vadd.f32 %v1077, %v1113
      %v1117 = vadd.f32 %v1078, %v1113
      %v1118 = vadd.f32 %v1079, %v1113
      %v1119 = vadd.f32 %v1080, %v1113
      %v1120 = vadd.f32 %v1081, %v1113
      %v1121 = vadd.f32 %v1082, %v1113
      %v1122 = vadd.f32 %v1083, %v1113
      %v1123 = vadd.f32 %v1084, %v1113
      %v1124 = vadd.f32 %v1085, %v1113
      %v1125 = vadd.f32 %v1086, %v1113
      %v1126 = vadd.f32 %v1087, %v1113
      %v1127 = vadd.f32 %v1088, %v1113
      %v1128 = vadd.f32 %v1089, %v1113
      %v1129 = vadd.f32 %v1090, %v1113
      %v1130 = vadd.f32 %v1091, %v1113
      %v1131 = vadd.f32 %v1092, %v1113
      %v1132 = vadd.f32 %v1093, %v1113
      %v1133 = vadd.f32 %v1094, %v1113
      %v1134 = vadd.f32 %v1095, %v1113
      %v1135 = vadd.f32 %v1096, %v1113
      %v1136 = vadd.f32 %v1097, %v1113
      %v1137 = vadd.f32 %v1098, %v1113
      %v1138 = vadd.f32 %v1099, %v1113
      %v1139 = vadd.f32 %v1100, %v1113
      %v1140 = vadd.f32 %v1101, %v1113
      %v1141 = vadd.f32 %v1102, %v1113
      %v1142 = vadd.f32 %v1103, %v1113
      %v1143 = vadd.f32 %v1104, %v1113
      %v1144 = vadd.f32 %v1105, %v1113
      %v1145 = vadd.f32 %v1106, %v1113
      %v1146 = vadd.f32 %v1107, %v1113
      %v1147 = vsub.f32 0.0, %v1115
      %v1148 = vsub.f32 0.0, %v1116
      %v1149 = vsub.f32 0.0, %v1117
      %v1150 = vsub.f32 0.0, %v1118
      %v1151 = vsub.f32 0.0, %v1119
      %v1152 = vsub.f32 0.0, %v1120
      %v1153 = vsub.f32 0.0, %v1121
      %v1154 = vsub.f32 0.0, %v1122
      %v1155 = vsub.f32 0.0, %v1123
      %v1156 = vsub.f32 0.0, %v1124
      %v1157 = vsub.f32 0.0, %v1125
      %v1158 = vsub.f32 0.0, %v1126
      %v1159 = vsub.f32 0.0, %v1127
      %v1160 = vsub.f32 0.0, %v1128
      %v1161 = vsub.f32 0.0, %v1129
      %v1162 = vsub.f32 0.0, %v1130
      %v1163 = vsub.f32 0.0, %v1131
      %v1164 = vsub.f32 0.0, %v1132
      %v1165 = vsub.f32 0.0, %v1133
      %v1166 = vsub.f32 0.0, %v1134
      %v1167 = vsub.f32 0.0, %v1135
      %v1168 = vsub.f32 0.0, %v1136
      %v1169 = vsub.f32 0.0, %v1137
      %v1170 = vsub.f32 0.0, %v1138
      %v1171 = vsub.f32 0.0, %v1139
      %v1172 = vsub.f32 0.0, %v1140
      %v1173 = vsub.f32 0.0, %v1141
      %v1174 = vsub.f32 0.0, %v1142
      %v1175 = vsub.f32 0.0, %v1143
      %v1176 = vsub.f32 0.0, %v1144
      %v1177 = vsub.f32 0.0, %v1145
      %v1178 = vsub.f32 0.0, %v1146
      %v1179 = vmul.f32 %v1147, 1.442695
      %v1180 = vpow.pop %v1179
      %v1181 = vmul.f32 %v1148, 1.442695
      %v1182 = vpow.pop %v1181
      %v1183 = vmul.f32 %v1149, 1.442695
      %v1184 = vpow.pop %v1183
      %v1185 = vmul.f32 %v1150, 1.442695
      %v1186 = vpow.pop %v1185
      %v1187 = vmul.f32 %v1151, 1.442695
      %v1188 = vpow.pop %v1187
      %v1189 = vmul.f32 %v1152, 1.442695
      %v1190 = vpow.pop %v1189
      %v1191 = vmul.f32 %v1153, 1.442695
      %v1192 = vpow.pop %v1191
      %v1193 = vmul.f32 %v1154, 1.442695
      %v1194 = vpow.pop %v1193
      %v1195 = vmul.f32 %v1155, 1.442695
      %v1196 = vpow.pop %v1195
      %v1197 = vmul.f32 %v1156, 1.442695
      %v1198 = vpow.pop %v1197
      %v1199 = vmul.f32 %v1157, 1.442695
      %v1200 = vpow.pop %v1199
      %v1201 = vmul.f32 %v1158, 1.442695
      %v1202 = vpow.pop %v1201
      %v1203 = vmul.f32 %v1159, 1.442695
      %v1204 = vpow.pop %v1203
      %v1205 = vmul.f32 %v1160, 1.442695
      %v1206 = vpow.pop %v1205
      %v1207 = vmul.f32 %v1161, 1.442695
      %v1208 = vpow.pop %v1207
      %v1209 = vmul.f32 %v1162, 1.442695
      %v1210 = vpow.pop %v1209
      %v1211 = vmul.f32 %v1163, 1.442695
      %v1212 = vpow.pop %v1211
      %v1213 = vmul.f32 %v1164, 1.442695
      %v1214 = vpow.pop %v1213
      %v1215 = vmul.f32 %v1165, 1.442695
      %v1216 = vpow.pop %v1215
      %v1217 = vmul.f32 %v1166, 1.442695
      %v1218 = vpow.pop %v1217
      %v1219 = vmul.f32 %v1167, 1.442695
      %v1220 = vpow.pop %v1219
      %v1221 = vmul.f32 %v1168, 1.442695
      %v1222 = vpow.pop %v1221
      %v1223 = vmul.f32 %v1169, 1.442695
      %v1224 = vpow.pop %v1223
      %v1225 = vmul.f32 %v1170, 1.442695
      %v1226 = vpow.pop %v1225
      %v1227 = vmul.f32 %v1171, 1.442695
      %v1228 = vpow.pop %v1227
      %v1229 = vmul.f32 %v1172, 1.442695
      %v1230 = vpow.pop %v1229
      %v1231 = vmul.f32 %v1173, 1.442695
      %v1232 = vpow.pop %v1231
      %v1233 = vmul.f32 %v1174, 1.442695
      %v1234 = vpow.pop %v1233
      %v1235 = vmul.f32 %v1175, 1.442695
      %v1236 = vpow.pop %v1235
      %v1237 = vmul.f32 %v1176, 1.442695
      %v1238 = vpow.pop %v1237
      %v1239 = vmul.f32 %v1177, 1.442695
      %v1240 = vpow.pop %v1239
      %v1241 = vmul.f32 %v1178, 1.442695
      %v1242 = vpow.pop %v1241
      %v1243 = vadd.f32 %v1180, 1.0
      %v1244 = vadd.f32 %v1182, 1.0
      %v1245 = vadd.f32 %v1184, 1.0
      %v1246 = vadd.f32 %v1186, 1.0
      %v1247 = vadd.f32 %v1188, 1.0
      %v1248 = vadd.f32 %v1190, 1.0
      %v1249 = vadd.f32 %v1192, 1.0
      %v1250 = vadd.f32 %v1194, 1.0
      %v1251 = vadd.f32 %v1196, 1.0
      %v1252 = vadd.f32 %v1198, 1.0
      %v1253 = vadd.f32 %v1200, 1.0
      %v1254 = vadd.f32 %v1202, 1.0
      %v1255 = vadd.f32 %v1204, 1.0
      %v1256 = vadd.f32 %v1206, 1.0
      %v1257 = vadd.f32 %v1208, 1.0
      %v1258 = vadd.f32 %v1210, 1.0
      %v1259 = vadd.f32 %v1212, 1.0
      %v1260 = vadd.f32 %v1214, 1.0
      %v1261 = vadd.f32 %v1216, 1.0
      %v1262 = vadd.f32 %v1218, 1.0
      %v1263 = vadd.f32 %v1220, 1.0
      %v1264 = vadd.f32 %v1222, 1.0
      %v1265 = vadd.f32 %v1224, 1.0
      %v1266 = vadd.f32 %v1226, 1.0
      %v1267 = vadd.f32 %v1228, 1.0
      %v1268 = vadd.f32 %v1230, 1.0
      %v1269 = vadd.f32 %v1232, 1.0
      %v1270 = vadd.f32 %v1234, 1.0
      %v1271 = vadd.f32 %v1236, 1.0
      %v1272 = vadd.f32 %v1238, 1.0
      %v1273 = vadd.f32 %v1240, 1.0
      %v1274 = vadd.f32 %v1242, 1.0
      %v1275 = vrcp.pop %v1243
      %v1276 = vrcp.pop %v1244
      %v1277 = vrcp.pop %v1245
      %v1278 = vrcp.pop %v1246
      %v1279 = vrcp.pop %v1247
      %v1280 = vrcp.pop %v1248
      %v1281 = vrcp.pop %v1249
      %v1282 = vrcp.pop %v1250
      %v1283 = vrcp.pop %v1251
      %v1284 = vrcp.pop %v1252
      %v1285 = vrcp.pop %v1253
      %v1286 = vrcp.pop %v1254
      %v1287 = vrcp.pop %v1255
      %v1288 = vrcp.pop %v1256
      %v1289 = vrcp.pop %v1257
      %v1290 = vrcp.pop %v1258
      %v1291 = vrcp.pop %v1259
      %v1292 = vrcp.pop %v1260
      %v1293 = vrcp.pop %v1261
      %v1294 = vrcp.pop %v1262
      %v1295 = vrcp.pop %v1263
      %v1296 = vrcp.pop %v1264
      %v1297 = vrcp.pop %v1265
      %v1298 = vrcp.pop %v1266
      %v1299 = vrcp.pop %v1267
      %v1300 = vrcp.pop %v1268
      %v1301 = vrcp.pop %v1269
      %v1302 = vrcp.pop %v1270
      %v1303 = vrcp.pop %v1271
      %v1304 = vrcp.pop %v1272
      %v1305 = vrcp.pop %v1273
      %v1306 = vrcp.pop %v1274
      %v1307 = vmul.f32 %v1115, %v1275
      %v1308 = vmul.f32 %v1116, %v1276
      %v1309 = vmul.f32 %v1117, %v1277
      %v1310 = vmul.f32 %v1118, %v1278
      %v1311 = vmul.f32 %v1119, %v1279
      %v1312 = vmul.f32 %v1120, %v1280
      %v1313 = vmul.f32 %v1121, %v1281
      %v1314 = vmul.f32 %v1122, %v1282
      %v1315 = vmul.f32 %v1123, %v1283
      %v1316 = vmul.f32 %v1124, %v1284
      %v1317 = vmul.f32 %v1125, %v1285
      %v1318 = vmul.f32 %v1126, %v1286
      %v1319 = vmul.f32 %v1127, %v1287
      %v1320 = vmul.f32 %v1128, %v1288
      %v1321 = vmul.f32 %v1129, %v1289
      %v1322 = vmul.f32 %v1130, %v1290
      %v1323 = vmul.f32 %v1131, %v1291
      %v1324 = vmul.f32 %v1132, %v1292
      %v1325 = vmul.f32 %v1133, %v1293
      %v1326 = vmul.f32 %v1134, %v1294
      %v1327 = vmul.f32 %v1135, %v1295
      %v1328 = vmul.f32 %v1136, %v1296
      %v1329 = vmul.f32 %v1137, %v1297
      %v1330 = vmul.f32 %v1138, %v1298
      %v1331 = vmul.f32 %v1139, %v1299
      %v1332 = vmul.f32 %v1140, %v1300
      %v1333 = vmul.f32 %v1141, %v1301
      %v1334 = vmul.f32 %v1142, %v1302
      %v1335 = vmul.f32 %v1143, %v1303
      %v1336 = vmul.f32 %v1144, %v1304
      %v1337 = vmul.f32 %v1145, %v1305
      %v1338 = vmul.f32 %v1146, %v1306
      %v1339 = vld [vmem:[%s6] sm:$0xff]
      %vm1340 = vcmask 64512
      %v1342 = vsel %vm1340, %v1307, 0
      %v1345 = vsel %vm1340, %v1308, 0
      %v1348 = vsel %vm1340, %v1309, 0
      %v1351 = vsel %vm1340, %v1310, 0
      %v1354 = vsel %vm1340, %v1311, 0
      %v1357 = vsel %vm1340, %v1312, 0
      %v1360 = vsel %vm1340, %v1313, 0
      %v1363 = vsel %vm1340, %v1314, 0
      %v1366 = vsel %vm1340, %v1315, 0
      %v1369 = vsel %vm1340, %v1316, 0
      %v1372 = vsel %vm1340, %v1317, 0
      %v1375 = vsel %vm1340, %v1318, 0
      %v1378 = vsel %vm1340, %v1319, 0
      %v1381 = vsel %vm1340, %v1320, 0
      %v1384 = vsel %vm1340, %v1321, 0
      %v1387 = vsel %vm1340, %v1322, 0
      %v1390 = vsel %vm1340, %v1323, 0
      %v1393 = vsel %vm1340, %v1324, 0
      %v1396 = vsel %vm1340, %v1325, 0
      %v1399 = vsel %vm1340, %v1326, 0
      %v1402 = vsel %vm1340, %v1327, 0
      %v1405 = vsel %vm1340, %v1328, 0
      %v1408 = vsel %vm1340, %v1329, 0
      %v1411 = vsel %vm1340, %v1330, 0
      %v1414 = vsel %vm1340, %v1331, 0
      %v1417 = vsel %vm1340, %v1332, 0
      %v1420 = vsel %vm1340, %v1333, 0
      %v1423 = vsel %vm1340, %v1334, 0
      %v1426 = vsel %vm1340, %v1335, 0
      %v1429 = vsel %vm1340, %v1336, 0
      %v1432 = vsel %vm1340, %v1337, 0
      %v1435 = vsel %vm1340, %v1338, 0
      %1437 = vmatprep.subr.mxu0 0.0
      %1438 = vmatpush1.msra.mxu0 %v1339
      %1439 = vmatprep.subr.mxu0 0.0
      %1440 = vmatpush1.msra.mxu0 0.0
      %1441 = vmatprep.subr.mxu0 0.0
      %1442 = vmatpush1.msra.mxu0 0.0
      %1443 = vmatprep.subr.mxu0 0.0
      %1444 = vmatpush1.msra.mxu0 0.0
      %1445 = vmatprep.subr.mxu0 0.0
      %1446 = vmatpush1.msra.mxu0 0.0
      %1447 = vmatprep.subr.mxu0 0.0
      %1448 = vmatpush1.msra.mxu0 0.0
      %1449 = vmatprep.subr.mxu0 0.0
      %1450 = vmatpush1.msra.mxu0 0.0
      %1451 = vmatprep.subr.mxu0 0.0
      %1452 = vmatpush1.msra.mxu0 0.0
      %1453 = vmatprep.subr.mxu0 0.0
      %1454 = vmatpush1.msra.mxu0 0.0
      %1455 = vmatprep.subr.mxu0 0.0
      %1456 = vmatpush1.msra.mxu0 0.0
      %1457 = vmatprep.subr.mxu0 0.0
      %1458 = vmatpush1.msra.mxu0 0.0
      %1459 = vmatprep.subr.mxu0 0.0
      %1460 = vmatpush1.msra.mxu0 0.0
      %1461 = vmatprep.subr.mxu0 0.0
      %1462 = vmatpush1.msra.mxu0 0.0
      %1463 = vmatprep.subr.mxu0 0.0
      %1464 = vmatpush1.msra.mxu0 0.0
      %1465 = vmatprep.subr.mxu0 0.0
      %1466 = vmatpush1.msra.mxu0 0.0
      %1467 = vmatprep.subr.mxu0 0.0
      %1468 = vmatpush1.msra.mxu0 0.0
      %1469 = vmatprep.subr.mxu0 0.0
      %1470 = vmatpush1.msra.mxu0 0.0
      %1471 = vmatprep.subr.mxu0 0.0
      %1472 = vmatpush1.msra.mxu0 0.0
      %1473 = vmatprep.subr.mxu0 0.0
      %1474 = vmatpush1.msra.mxu0 0.0
      %1475 = vmatprep.subr.mxu0 0.0
      %1476 = vmatpush1.msra.mxu0 0.0
      %1477 = vmatprep.subr.mxu0 0.0
      %1478 = vmatpush1.msra.mxu0 0.0
      %1479 = vmatprep.subr.mxu0 0.0
      %1480 = vmatpush1.msra.mxu0 0.0
      %1481 = vmatprep.subr.mxu0 0.0
      %1482 = vmatpush1.msra.mxu0 0.0
      %1483 = vmatprep.subr.mxu0 0.0
      %1484 = vmatpush1.msra.mxu0 0.0
      %1485 = vmatprep.subr.mxu0 0.0
      %1486 = vmatpush1.msra.mxu0 0.0
      %1487 = vmatprep.subr.mxu0 0.0
      %1488 = vmatpush1.msra.mxu0 0.0
      %1489 = vmatprep.subr.mxu0 0.0
      %1490 = vmatpush1.msra.mxu0 0.0
      %1491 = vmatprep.subr.mxu0 0.0
      %1492 = vmatpush1.msra.mxu0 0.0
      %1493 = vmatprep.subr.mxu0 0.0
      %1494 = vmatpush1.msra.mxu0 0.0
      %1495 = vmatprep.subr.mxu0 0.0
      %1496 = vmatpush1.msra.mxu0 0.0
      %1497 = vmatprep.subr.mxu0 0.0
      %1498 = vmatpush1.msra.mxu0 0.0
      %1499 = vmatprep.subr.mxu0 0.0
      %1500 = vmatpush1.msra.mxu0 0.0
      %1501 = vmatprep.mubr.f32.mxu0 0.0
      %1502 = vmatmul.mubr.f32.gmra.mrb[0].mxu0 %v1342
      %v1503 = vpop.f32.mrb[0].mxu0
      %v1504 = vadd.f32 0.0, %v1503
      %v1505 = vpop.f32.mrb[0].mxu0
      %1506 = vmatprep.mubr.f32.mxu0 0.0
      %1507 = vmatmul.mubr.f32.gmra.mrb[0].mxu0 %v1345
      %v1508 = vpop.f32.mrb[0].mxu0
      %v1509 = vadd.f32 0.0, %v1508
      %v1510 = vpop.f32.mrb[0].mxu0
      %1511 = vmatprep.mubr.f32.mxu0 0.0
      %1512 = vmatmul.mubr.f32.gmra.mrb[0].mxu0 %v1348
      %v1513 = vpop.f32.mrb[0].mxu0
      %v1514 = vadd.f32 0.0, %v1513
      %v1515 = vpop.f32.mrb[0].mxu0
      %1516 = vmatprep.mubr.f32.mxu0 0.0
      %1517 = vmatmul.mubr.f32.gmra.mrb[0].mxu0 %v1351
      %v1518 = vpop.f32.mrb[0].mxu0
      %v1519 = vadd.f32 0.0, %v1518
      %v1520 = vpop.f32.mrb[0].mxu0
      %1521 = vmatprep.mubr.f32.mxu0 0.0
      %1522 = vmatmul.mubr.f32.gmra.mrb[0].mxu0 %v1354
      %v1523 = vpop.f32.mrb[0].mxu0
      %v1524 = vadd.f32 0.0, %v1523
      %v1525 = vpop.f32.mrb[0].mxu0
      %1526 = vmatprep.mubr.f32.mxu0 0.0
      %1527 = vmatmul.mubr.f32.gmra.mrb[0].mxu0 %v1357
      %v1528 = vpop.f32.mrb[0].mxu0
      %v1529 = vadd.f32 0.0, %v1528
      %v1530 = vpop.f32.mrb[0].mxu0
      %1531 = vmatprep.mubr.f32.mxu0 0.0
      %1532 = vmatmul.mubr.f32.gmra.mrb[0].mxu0 %v1360
      %v1533 = vpop.f32.mrb[0].mxu0
      %v1534 = vadd.f32 0.0, %v1533
      %v1535 = vpop.f32.mrb[0].mxu0
      %1536 = vmatprep.mubr.f32.mxu0 0.0
      %1537 = vmatmul.mubr.f32.gmra.mrb[0].mxu0 %v1363
      %v1538 = vpop.f32.mrb[0].mxu0
      %v1539 = vadd.f32 0.0, %v1538
      %v1540 = vpop.f32.mrb[0].mxu0
      %1541 = vmatprep.mubr.f32.mxu0 0.0
      %1542 = vmatmul.mubr.f32.gmra.mrb[0].mxu0 %v1366
      %v1543 = vpop.f32.mrb[0].mxu0
      %v1544 = vadd.f32 0.0, %v1543
      %v1545 = vpop.f32.mrb[0].mxu0
      %1546 = vmatprep.mubr.f32.mxu0 0.0
      %1547 = vmatmul.mubr.f32.gmra.mrb[0].mxu0 %v1369
      %v1548 = vpop.f32.mrb[0].mxu0
      %v1549 = vadd.f32 0.0, %v1548
      %v1550 = vpop.f32.mrb[0].mxu0
      %1551 = vmatprep.mubr.f32.mxu0 0.0
      %1552 = vmatmul.mubr.f32.gmra.mrb[0].mxu0 %v1372
      %v1553 = vpop.f32.mrb[0].mxu0
      %v1554 = vadd.f32 0.0, %v1553
      %v1555 = vpop.f32.mrb[0].mxu0
      %1556 = vmatprep.mubr.f32.mxu0 0.0
      %1557 = vmatmul.mubr.f32.gmra.mrb[0].mxu0 %v1375
      %v1558 = vpop.f32.mrb[0].mxu0
      %v1559 = vadd.f32 0.0, %v1558
      %v1560 = vpop.f32.mrb[0].mxu0
      %1561 = vmatprep.mubr.f32.mxu0 0.0
      %1562 = vmatmul.mubr.f32.gmra.mrb[0].mxu0 %v1378
      %v1563 = vpop.f32.mrb[0].mxu0
      %v1564 = vadd.f32 0.0, %v1563
      %v1565 = vpop.f32.mrb[0].mxu0
      %1566 = vmatprep.mubr.f32.mxu0 0.0
      %1567 = vmatmul.mubr.f32.gmra.mrb[0].mxu0 %v1381
      %v1568 = vpop.f32.mrb[0].mxu0
      %v1569 = vadd.f32 0.0, %v1568
      %v1570 = vpop.f32.mrb[0].mxu0
      %1571 = vmatprep.mubr.f32.mxu0 0.0
      %1572 = vmatmul.mubr.f32.gmra.mrb[0].mxu0 %v1384
      %v1573 = vpop.f32.mrb[0].mxu0
      %v1574 = vadd.f32 0.0, %v1573
      %v1575 = vpop.f32.mrb[0].mxu0
      %1576 = vmatprep.mubr.f32.mxu0 0.0
      %1577 = vmatmul.mubr.f32.gmra.mrb[0].mxu0 %v1387
      %v1578 = vpop.f32.mrb[0].mxu0
      %v1579 = vadd.f32 0.0, %v1578
      %v1580 = vpop.f32.mrb[0].mxu0
      %1581 = vmatprep.mubr.f32.mxu0 0.0
      %1582 = vmatmul.mubr.f32.gmra.mrb[0].mxu0 %v1390
      %v1583 = vpop.f32.mrb[0].mxu0
      %v1584 = vadd.f32 0.0, %v1583
      %v1585 = vpop.f32.mrb[0].mxu0
      %1586 = vmatprep.mubr.f32.mxu0 0.0
      %1587 = vmatmul.mubr.f32.gmra.mrb[0].mxu0 %v1393
      %v1588 = vpop.f32.mrb[0].mxu0
      %v1589 = vadd.f32 0.0, %v1588
      %v1590 = vpop.f32.mrb[0].mxu0
      %1591 = vmatprep.mubr.f32.mxu0 0.0
      %1592 = vmatmul.mubr.f32.gmra.mrb[0].mxu0 %v1396
      %v1593 = vpop.f32.mrb[0].mxu0
      %v1594 = vadd.f32 0.0, %v1593
      %v1595 = vpop.f32.mrb[0].mxu0
      %1596 = vmatprep.mubr.f32.mxu0 0.0
      %1597 = vmatmul.mubr.f32.gmra.mrb[0].mxu0 %v1399
      %v1598 = vpop.f32.mrb[0].mxu0
      %v1599 = vadd.f32 0.0, %v1598
      %v1600 = vpop.f32.mrb[0].mxu0
      %1601 = vmatprep.mubr.f32.mxu0 0.0
      %1602 = vmatmul.mubr.f32.gmra.mrb[0].mxu0 %v1402
      %v1603 = vpop.f32.mrb[0].mxu0
      %v1604 = vadd.f32 0.0, %v1603
      %v1605 = vpop.f32.mrb[0].mxu0
      %1606 = vmatprep.mubr.f32.mxu0 0.0
      %1607 = vmatmul.mubr.f32.gmra.mrb[0].mxu0 %v1405
      %v1608 = vpop.f32.mrb[0].mxu0
      %v1609 = vadd.f32 0.0, %v1608
      %v1610 = vpop.f32.mrb[0].mxu0
      %1611 = vmatprep.mubr.f32.mxu0 0.0
      %1612 = vmatmul.mubr.f32.gmra.mrb[0].mxu0 %v1408
      %v1613 = vpop.f32.mrb[0].mxu0
      %v1614 = vadd.f32 0.0, %v1613
      %v1615 = vpop.f32.mrb[0].mxu0
      %1616 = vmatprep.mubr.f32.mxu0 0.0
      %1617 = vmatmul.mubr.f32.gmra.mrb[0].mxu0 %v1411
      %v1618 = vpop.f32.mrb[0].mxu0
      %v1619 = vadd.f32 0.0, %v1618
      %v1620 = vpop.f32.mrb[0].mxu0
      %1621 = vmatprep.mubr.f32.mxu0 0.0
      %1622 = vmatmul.mubr.f32.gmra.mrb[0].mxu0 %v1414
      %v1623 = vpop.f32.mrb[0].mxu0
      %v1624 = vadd.f32 0.0, %v1623
      %v1625 = vpop.f32.mrb[0].mxu0
      %1626 = vmatprep.mubr.f32.mxu0 0.0
      %1627 = vmatmul.mubr.f32.gmra.mrb[0].mxu0 %v1417
      %v1628 = vpop.f32.mrb[0].mxu0
      %v1629 = vadd.f32 0.0, %v1628
      %v1630 = vpop.f32.mrb[0].mxu0
      %1631 = vmatprep.mubr.f32.mxu0 0.0
      %1632 = vmatmul.mubr.f32.gmra.mrb[0].mxu0 %v1420
      %v1633 = vpop.f32.mrb[0].mxu0
      %v1634 = vadd.f32 0.0, %v1633
      %v1635 = vpop.f32.mrb[0].mxu0
      %1636 = vmatprep.mubr.f32.mxu0 0.0
      %1637 = vmatmul.mubr.f32.gmra.mrb[0].mxu0 %v1423
      %v1638 = vpop.f32.mrb[0].mxu0
      %v1639 = vadd.f32 0.0, %v1638
      %v1640 = vpop.f32.mrb[0].mxu0
      %1641 = vmatprep.mubr.f32.mxu0 0.0
      %1642 = vmatmul.mubr.f32.gmra.mrb[0].mxu0 %v1426
      %v1643 = vpop.f32.mrb[0].mxu0
      %v1644 = vadd.f32 0.0, %v1643
      %v1645 = vpop.f32.mrb[0].mxu0
      %1646 = vmatprep.mubr.f32.mxu0 0.0
      %1647 = vmatmul.mubr.f32.gmra.mrb[0].mxu0 %v1429
      %v1648 = vpop.f32.mrb[0].mxu0
      %v1649 = vadd.f32 0.0, %v1648
      %v1650 = vpop.f32.mrb[0].mxu0
      %1651 = vmatprep.mubr.f32.mxu0 0.0
      %1652 = vmatmul.mubr.f32.gmra.mrb[0].mxu0 %v1432
      %v1653 = vpop.f32.mrb[0].mxu0
      %v1654 = vadd.f32 0.0, %v1653
      %v1655 = vpop.f32.mrb[0].mxu0
      %1656 = vmatprep.mubr.f32.mxu0 0.0
      %1657 = vmatmul.mubr.f32.gmra.mrb[0].mxu0 %v1435
      %v1658 = vpop.f32.mrb[0].mxu0
      %v1659 = vadd.f32 0.0, %v1658
      %v1660 = vpop.f32.mrb[0].mxu0
      %1661 = vdwg.mxu0
      %v1662 = vlaneseq
      %v1663 = vshrl.u32 %v1662, 7
      %v1664 = vadd.s32 %v1663, 8
      %v1665 = vadd.s32 %v1663, 16
      %v1666 = vadd.s32 %v1663, 24
      %v1667 = vadd.s32 %v1663, 32
      %v1668 = vadd.s32 %v1663, 40
      %v1669 = vadd.s32 %v1663, 48
      %v1670 = vadd.s32 %v1663, 56
      %v1671 = vadd.s32 %v1663, 64
      %v1672 = vadd.s32 %v1663, 72
      %v1673 = vadd.s32 %v1663, 80
      %v1674 = vadd.s32 %v1663, 88
      %v1675 = vadd.s32 %v1663, 96
      %v1676 = vadd.s32 %v1663, 104
      %v1677 = vadd.s32 %v1663, 112
      %v1678 = vadd.s32 %v1663, 120
      %v1679 = vadd.s32 %v1663, 128
      %v1680 = vadd.s32 %v1663, 136
      %v1681 = vadd.s32 %v1663, 144
      %v1682 = vadd.s32 %v1663, 152
      %v1683 = vadd.s32 %v1663, 160
      %v1684 = vadd.s32 %v1663, 168
      %v1685 = vadd.s32 %v1663, 176
      %v1686 = vadd.s32 %v1663, 184
      %v1687 = vadd.s32 %v1663, 192
      %v1688 = vadd.s32 %v1663, 200
      %v1689 = vadd.s32 %v1663, 208
      %v1690 = vadd.s32 %v1663, 216
      %v1691 = vadd.s32 %v1663, 224
      %v1692 = vadd.s32 %v1663, 232
      %v1693 = vadd.s32 %v1663, 240
      %v1694 = vadd.s32 %v1663, 248
      %vm1695 = vcmp.lt.s32.totalorder %v1663, 0
      %v1696 = vsub.s32 0, %v1663
      %v1697 = vsel %vm1695, %v1696, %v1663
      %v1698 = vshrl.u32 %v1697, 4
      %v1699 = vand.u32 %v1697, 15
      %v1700 = vsub.s32 0, %v1699
      %v1701 = vsel %vm1695, %v1700, %v1699
      %vm1702 = vcmp.lt.s32.totalorder %v1664, 0
      %v1703 = vsub.s32 0, %v1664
      %v1704 = vsel %vm1702, %v1703, %v1664
      %v1705 = vshrl.u32 %v1704, 4
      %v1706 = vand.u32 %v1704, 15
      %v1707 = vsub.s32 0, %v1706
      %v1708 = vsel %vm1702, %v1707, %v1706
      %vm1709 = vcmp.lt.s32.totalorder %v1665, 0
      %v1710 = vsub.s32 0, %v1665
      %v1711 = vsel %vm1709, %v1710, %v1665
      %v1712 = vshrl.u32 %v1711, 4
      %v1713 = vand.u32 %v1711, 15
      %v1714 = vsub.s32 0, %v1713
      %v1715 = vsel %vm1709, %v1714, %v1713
      %vm1716 = vcmp.lt.s32.totalorder %v1666, 0
      %v1717 = vsub.s32 0, %v1666
      %v1718 = vsel %vm1716, %v1717, %v1666
      %v1719 = vshrl.u32 %v1718, 4
      %v1720 = vand.u32 %v1718, 15
      %v1721 = vsub.s32 0, %v1720
      %v1722 = vsel %vm1716, %v1721, %v1720
      %vm1723 = vcmp.lt.s32.totalorder %v1667, 0
      %v1724 = vsub.s32 0, %v1667
      %v1725 = vsel %vm1723, %v1724, %v1667
      %v1726 = vshrl.u32 %v1725, 4
      %v1727 = vand.u32 %v1725, 15
      %v1728 = vsub.s32 0, %v1727
      %v1729 = vsel %vm1723, %v1728, %v1727
      %vm1730 = vcmp.lt.s32.totalorder %v1668, 0
      %v1731 = vsub.s32 0, %v1668
      %v1732 = vsel %vm1730, %v1731, %v1668
      %v1733 = vshrl.u32 %v1732, 4
      %v1734 = vand.u32 %v1732, 15
      %v1735 = vsub.s32 0, %v1734
      %v1736 = vsel %vm1730, %v1735, %v1734
      %vm1737 = vcmp.lt.s32.totalorder %v1669, 0
      %v1738 = vsub.s32 0, %v1669
      %v1739 = vsel %vm1737, %v1738, %v1669
      %v1740 = vshrl.u32 %v1739, 4
      %v1741 = vand.u32 %v1739, 15
      %v1742 = vsub.s32 0, %v1741
      %v1743 = vsel %vm1737, %v1742, %v1741
      %vm1744 = vcmp.lt.s32.totalorder %v1670, 0
      %v1745 = vsub.s32 0, %v1670
      %v1746 = vsel %vm1744, %v1745, %v1670
      %v1747 = vshrl.u32 %v1746, 4
      %v1748 = vand.u32 %v1746, 15
      %v1749 = vsub.s32 0, %v1748
      %v1750 = vsel %vm1744, %v1749, %v1748
      %vm1751 = vcmp.lt.s32.totalorder %v1671, 0
      %v1752 = vsub.s32 0, %v1671
      %v1753 = vsel %vm1751, %v1752, %v1671
      %v1754 = vshrl.u32 %v1753, 4
      %v1755 = vand.u32 %v1753, 15
      %v1756 = vsub.s32 0, %v1755
      %v1757 = vsel %vm1751, %v1756, %v1755
      %vm1758 = vcmp.lt.s32.totalorder %v1672, 0
      %v1759 = vsub.s32 0, %v1672
      %v1760 = vsel %vm1758, %v1759, %v1672
      %v1761 = vshrl.u32 %v1760, 4
      %v1762 = vand.u32 %v1760, 15
      %v1763 = vsub.s32 0, %v1762
      %v1764 = vsel %vm1758, %v1763, %v1762
      %vm1765 = vcmp.lt.s32.totalorder %v1673, 0
      %v1766 = vsub.s32 0, %v1673
      %v1767 = vsel %vm1765, %v1766, %v1673
      %v1768 = vshrl.u32 %v1767, 4
      %v1769 = vand.u32 %v1767, 15
      %v1770 = vsub.s32 0, %v1769
      %v1771 = vsel %vm1765, %v1770, %v1769
      %vm1772 = vcmp.lt.s32.totalorder %v1674, 0
      %v1773 = vsub.s32 0, %v1674
      %v1774 = vsel %vm1772, %v1773, %v1674
      %v1775 = vshrl.u32 %v1774, 4
      %v1776 = vand.u32 %v1774, 15
      %v1777 = vsub.s32 0, %v1776
      %v1778 = vsel %vm1772, %v1777, %v1776
      %vm1779 = vcmp.lt.s32.totalorder %v1675, 0
      %v1780 = vsub.s32 0, %v1675
      %v1781 = vsel %vm1779, %v1780, %v1675
      %v1782 = vshrl.u32 %v1781, 4
      %v1783 = vand.u32 %v1781, 15
      %v1784 = vsub.s32 0, %v1783
      %v1785 = vsel %vm1779, %v1784, %v1783
      %vm1786 = vcmp.lt.s32.totalorder %v1676, 0
      %v1787 = vsub.s32 0, %v1676
      %v1788 = vsel %vm1786, %v1787, %v1676
      %v1789 = vshrl.u32 %v1788, 4
      %v1790 = vand.u32 %v1788, 15
      %v1791 = vsub.s32 0, %v1790
      %v1792 = vsel %vm1786, %v1791, %v1790
      %vm1793 = vcmp.lt.s32.totalorder %v1677, 0
      %v1794 = vsub.s32 0, %v1677
      %v1795 = vsel %vm1793, %v1794, %v1677
      %v1796 = vshrl.u32 %v1795, 4
      %v1797 = vand.u32 %v1795, 15
      %v1798 = vsub.s32 0, %v1797
      %v1799 = vsel %vm1793, %v1798, %v1797
      %vm1800 = vcmp.lt.s32.totalorder %v1678, 0
      %v1801 = vsub.s32 0, %v1678
      %v1802 = vsel %vm1800, %v1801, %v1678
      %v1803 = vshrl.u32 %v1802, 4
      %v1804 = vand.u32 %v1802, 15
      %v1805 = vsub.s32 0, %v1804
      %v1806 = vsel %vm1800, %v1805, %v1804
      %vm1807 = vcmp.lt.s32.totalorder %v1679, 0
      %v1808 = vsub.s32 0, %v1679
      %v1809 = vsel %vm1807, %v1808, %v1679
      %v1810 = vshrl.u32 %v1809, 4
      %v1811 = vand.u32 %v1809, 15
      %v1812 = vsub.s32 0, %v1811
      %v1813 = vsel %vm1807, %v1812, %v1811
      %vm1814 = vcmp.lt.s32.totalorder %v1680, 0
      %v1815 = vsub.s32 0, %v1680
      %v1816 = vsel %vm1814, %v1815, %v1680
      %v1817 = vshrl.u32 %v1816, 4
      %v1818 = vand.u32 %v1816, 15
      %v1819 = vsub.s32 0, %v1818
      %v1820 = vsel %vm1814, %v1819, %v1818
      %vm1821 = vcmp.lt.s32.totalorder %v1681, 0
      %v1822 = vsub.s32 0, %v1681
      %v1823 = vsel %vm1821, %v1822, %v1681
      %v1824 = vshrl.u32 %v1823, 4
      %v1825 = vand.u32 %v1823, 15
      %v1826 = vsub.s32 0, %v1825
      %v1827 = vsel %vm1821, %v1826, %v1825
      %vm1828 = vcmp.lt.s32.totalorder %v1682, 0
      %v1829 = vsub.s32 0, %v1682
      %v1830 = vsel %vm1828, %v1829, %v1682
      %v1831 = vshrl.u32 %v1830, 4
      %v1832 = vand.u32 %v1830, 15
      %v1833 = vsub.s32 0, %v1832
      %v1834 = vsel %vm1828, %v1833, %v1832
      %vm1835 = vcmp.lt.s32.totalorder %v1683, 0
      %v1836 = vsub.s32 0, %v1683
      %v1837 = vsel %vm1835, %v1836, %v1683
      %v1838 = vshrl.u32 %v1837, 4
      %v1839 = vand.u32 %v1837, 15
      %v1840 = vsub.s32 0, %v1839
      %v1841 = vsel %vm1835, %v1840, %v1839
      %vm1842 = vcmp.lt.s32.totalorder %v1684, 0
      %v1843 = vsub.s32 0, %v1684
      %v1844 = vsel %vm1842, %v1843, %v1684
      %v1845 = vshrl.u32 %v1844, 4
      %v1846 = vand.u32 %v1844, 15
      %v1847 = vsub.s32 0, %v1846
      %v1848 = vsel %vm1842, %v1847, %v1846
      %vm1849 = vcmp.lt.s32.totalorder %v1685, 0
      %v1850 = vsub.s32 0, %v1685
      %v1851 = vsel %vm1849, %v1850, %v1685
      %v1852 = vshrl.u32 %v1851, 4
      %v1853 = vand.u32 %v1851, 15
      %v1854 = vsub.s32 0, %v1853
      %v1855 = vsel %vm1849, %v1854, %v1853
      %vm1856 = vcmp.lt.s32.totalorder %v1686, 0
      %v1857 = vsub.s32 0, %v1686
      %v1858 = vsel %vm1856, %v1857, %v1686
      %v1859 = vshrl.u32 %v1858, 4
      %v1860 = vand.u32 %v1858, 15
      %v1861 = vsub.s32 0, %v1860
      %v1862 = vsel %vm1856, %v1861, %v1860
      %vm1863 = vcmp.lt.s32.totalorder %v1687, 0
      %v1864 = vsub.s32 0, %v1687
      %v1865 = vsel %vm1863, %v1864, %v1687
      %v1866 = vshrl.u32 %v1865, 4
      %v1867 = vand.u32 %v1865, 15
      %v1868 = vsub.s32 0, %v1867
      %v1869 = vsel %vm1863, %v1868, %v1867
      %vm1870 = vcmp.lt.s32.totalorder %v1688, 0
      %v1871 = vsub.s32 0, %v1688
      %v1872 = vsel %vm1870, %v1871, %v1688
      %v1873 = vshrl.u32 %v1872, 4
      %v1874 = vand.u32 %v1872, 15
      %v1875 = vsub.s32 0, %v1874
      %v1876 = vsel %vm1870, %v1875, %v1874
      %vm1877 = vcmp.lt.s32.totalorder %v1689, 0
      %v1878 = vsub.s32 0, %v1689
      %v1879 = vsel %vm1877, %v1878, %v1689
      %v1880 = vshrl.u32 %v1879, 4
      %v1881 = vand.u32 %v1879, 15
      %v1882 = vsub.s32 0, %v1881
      %v1883 = vsel %vm1877, %v1882, %v1881
      %vm1884 = vcmp.lt.s32.totalorder %v1690, 0
      %v1885 = vsub.s32 0, %v1690
      %v1886 = vsel %vm1884, %v1885, %v1690
      %v1887 = vshrl.u32 %v1886, 4
      %v1888 = vand.u32 %v1886, 15
      %v1889 = vsub.s32 0, %v1888
      %v1890 = vsel %vm1884, %v1889, %v1888
      %vm1891 = vcmp.lt.s32.totalorder %v1691, 0
      %v1892 = vsub.s32 0, %v1691
      %v1893 = vsel %vm1891, %v1892, %v1691
      %v1894 = vshrl.u32 %v1893, 4
      %v1895 = vand.u32 %v1893, 15
      %v1896 = vsub.s32 0, %v1895
      %v1897 = vsel %vm1891, %v1896, %v1895
      %vm1898 = vcmp.lt.s32.totalorder %v1692, 0
      %v1899 = vsub.s32 0, %v1692
      %v1900 = vsel %vm1898, %v1899, %v1692
      %v1901 = vshrl.u32 %v1900, 4
      %v1902 = vand.u32 %v1900, 15
      %v1903 = vsub.s32 0, %v1902
      %v1904 = vsel %vm1898, %v1903, %v1902
      %vm1905 = vcmp.lt.s32.totalorder %v1693, 0
      %v1906 = vsub.s32 0, %v1693
      %v1907 = vsel %vm1905, %v1906, %v1693
      %v1908 = vshrl.u32 %v1907, 4
      %v1909 = vand.u32 %v1907, 15
      %v1910 = vsub.s32 0, %v1909
      %v1911 = vsel %vm1905, %v1910, %v1909
      %vm1912 = vcmp.lt.s32.totalorder %v1694, 0
      %v1913 = vsub.s32 0, %v1694
      %v1914 = vsel %vm1912, %v1913, %v1694
      %v1915 = vshrl.u32 %v1914, 4
      %v1916 = vand.u32 %v1914, 15
      %v1917 = vsub.s32 0, %v1916
      %v1918 = vsel %vm1912, %v1917, %v1916
      %vm1919 = vcmp.ne.s32.totalorder %v1701, 0
      %vm1920 = vcmp.ne.s32.totalorder %v1708, 0
      %vm1921 = vcmp.ne.s32.totalorder %v1715, 0
      %vm1922 = vcmp.ne.s32.totalorder %v1722, 0
      %vm1923 = vcmp.ne.s32.totalorder %v1729, 0
      %vm1924 = vcmp.ne.s32.totalorder %v1736, 0
      %vm1925 = vcmp.ne.s32.totalorder %v1743, 0
      %vm1926 = vcmp.ne.s32.totalorder %v1750, 0
      %vm1927 = vcmp.ne.s32.totalorder %v1757, 0
      %vm1928 = vcmp.ne.s32.totalorder %v1764, 0
      %vm1929 = vcmp.ne.s32.totalorder %v1771, 0
      %vm1930 = vcmp.ne.s32.totalorder %v1778, 0
      %vm1931 = vcmp.ne.s32.totalorder %v1785, 0
      %vm1932 = vcmp.ne.s32.totalorder %v1792, 0
      %vm1933 = vcmp.ne.s32.totalorder %v1799, 0
      %vm1934 = vcmp.ne.s32.totalorder %v1806, 0
      %vm1935 = vcmp.ne.s32.totalorder %v1813, 0
      %vm1936 = vcmp.ne.s32.totalorder %v1820, 0
      %vm1937 = vcmp.ne.s32.totalorder %v1827, 0
      %vm1938 = vcmp.ne.s32.totalorder %v1834, 0
      %vm1939 = vcmp.ne.s32.totalorder %v1841, 0
      %vm1940 = vcmp.ne.s32.totalorder %v1848, 0
      %vm1941 = vcmp.ne.s32.totalorder %v1855, 0
      %vm1942 = vcmp.ne.s32.totalorder %v1862, 0
      %vm1943 = vcmp.ne.s32.totalorder %v1869, 0
      %vm1944 = vcmp.ne.s32.totalorder %v1876, 0
      %vm1945 = vcmp.ne.s32.totalorder %v1883, 0
      %vm1946 = vcmp.ne.s32.totalorder %v1890, 0
      %vm1947 = vcmp.ne.s32.totalorder %v1897, 0
      %vm1948 = vcmp.ne.s32.totalorder %v1904, 0
      %vm1949 = vcmp.ne.s32.totalorder %v1911, 0
      %vm1950 = vcmp.ne.s32.totalorder %v1918, 0
      %vm1951 = vcmp.lt.s32.totalorder %v1701, 0
      %vm1952 = vcmp.lt.s32.totalorder %v1708, 0
      %vm1953 = vcmp.lt.s32.totalorder %v1715, 0
      %vm1954 = vcmp.lt.s32.totalorder %v1722, 0
      %vm1955 = vcmp.lt.s32.totalorder %v1729, 0
      %vm1956 = vcmp.lt.s32.totalorder %v1736, 0
      %vm1957 = vcmp.lt.s32.totalorder %v1743, 0
      %vm1958 = vcmp.lt.s32.totalorder %v1750, 0
      %vm1959 = vcmp.lt.s32.totalorder %v1757, 0
      %vm1960 = vcmp.lt.s32.totalorder %v1764, 0
      %vm1961 = vcmp.lt.s32.totalorder %v1771, 0
      %vm1962 = vcmp.lt.s32.totalorder %v1778, 0
      %vm1963 = vcmp.lt.s32.totalorder %v1785, 0
      %vm1964 = vcmp.lt.s32.totalorder %v1792, 0
      %vm1965 = vcmp.lt.s32.totalorder %v1799, 0
      %vm1966 = vcmp.lt.s32.totalorder %v1806, 0
      %vm1967 = vcmp.lt.s32.totalorder %v1813, 0
      %vm1968 = vcmp.lt.s32.totalorder %v1820, 0
      %vm1969 = vcmp.lt.s32.totalorder %v1827, 0
      %vm1970 = vcmp.lt.s32.totalorder %v1834, 0
      %vm1971 = vcmp.lt.s32.totalorder %v1841, 0
      %vm1972 = vcmp.lt.s32.totalorder %v1848, 0
      %vm1973 = vcmp.lt.s32.totalorder %v1855, 0
      %vm1974 = vcmp.lt.s32.totalorder %v1862, 0
      %vm1975 = vcmp.lt.s32.totalorder %v1869, 0
      %vm1976 = vcmp.lt.s32.totalorder %v1876, 0
      %vm1977 = vcmp.lt.s32.totalorder %v1883, 0
      %vm1978 = vcmp.lt.s32.totalorder %v1890, 0
      %vm1979 = vcmp.lt.s32.totalorder %v1897, 0
      %vm1980 = vcmp.lt.s32.totalorder %v1904, 0
      %vm1981 = vcmp.lt.s32.totalorder %v1911, 0
      %vm1982 = vcmp.lt.s32.totalorder %v1918, 0
      %vm1983 = vmand %vm1951, %vm1919
      %vm1984 = vmand %vm1952, %vm1920
      %vm1985 = vmand %vm1953, %vm1921
      %vm1986 = vmand %vm1954, %vm1922
      %vm1987 = vmand %vm1955, %vm1923
      %vm1988 = vmand %vm1956, %vm1924
      %vm1989 = vmand %vm1957, %vm1925
      %vm1990 = vmand %vm1958, %vm1926
      %vm1991 = vmand %vm1959, %vm1927
      %vm1992 = vmand %vm1960, %vm1928
      %vm1993 = vmand %vm1961, %vm1929
      %vm1994 = vmand %vm1962, %vm1930
      %vm1995 = vmand %vm1963, %vm1931
      %vm1996 = vmand %vm1964, %vm1932
      %vm1997 = vmand %vm1965, %vm1933
      %vm1998 = vmand %vm1966, %vm1934
      %vm1999 = vmand %vm1967, %vm1935
      %vm2000 = vmand %vm1968, %vm1936
      %vm2001 = vmand %vm1969, %vm1937
      %vm2002 = vmand %vm1970, %vm1938
      %vm2003 = vmand %vm1971, %vm1939
      %vm2004 = vmand %vm1972, %vm1940
      %vm2005 = vmand %vm1973, %vm1941
      %vm2006 = vmand %vm1974, %vm1942
      %vm2007 = vmand %vm1975, %vm1943
      %vm2008 = vmand %vm1976, %vm1944
      %vm2009 = vmand %vm1977, %vm1945
      %vm2010 = vmand %vm1978, %vm1946
      %vm2011 = vmand %vm1979, %vm1947
      %vm2012 = vmand %vm1980, %vm1948
      %vm2013 = vmand %vm1981, %vm1949
      %vm2014 = vmand %vm1982, %vm1950
      %v2015 = vadd.s32 %v1701, 16
      %v2016 = vadd.s32 %v1708, 16
      %v2017 = vadd.s32 %v1715, 16
      %v2018 = vadd.s32 %v1722, 16
      %v2019 = vadd.s32 %v1729, 16
      %v2020 = vadd.s32 %v1736, 16
      %v2021 = vadd.s32 %v1743, 16
      %v2022 = vadd.s32 %v1750, 16
      %v2023 = vadd.s32 %v1757, 16
      %v2024 = vadd.s32 %v1764, 16
      %v2025 = vadd.s32 %v1771, 16
      %v2026 = vadd.s32 %v1778, 16
      %v2027 = vadd.s32 %v1785, 16
      %v2028 = vadd.s32 %v1792, 16
      %v2029 = vadd.s32 %v1799, 16
      %v2030 = vadd.s32 %v1806, 16
      %v2031 = vadd.s32 %v1813, 16
      %v2032 = vadd.s32 %v1820, 16
      %v2033 = vadd.s32 %v1827, 16
      %v2034 = vadd.s32 %v1834, 16
      %v2035 = vadd.s32 %v1841, 16
      %v2036 = vadd.s32 %v1848, 16
      %v2037 = vadd.s32 %v1855, 16
      %v2038 = vadd.s32 %v1862, 16
      %v2039 = vadd.s32 %v1869, 16
      %v2040 = vadd.s32 %v1876, 16
      %v2041 = vadd.s32 %v1883, 16
      %v2042 = vadd.s32 %v1890, 16
      %v2043 = vadd.s32 %v1897, 16
      %v2044 = vadd.s32 %v1904, 16
      %v2045 = vadd.s32 %v1911, 16
      %v2046 = vadd.s32 %v1918, 16
      %v2047 = vsel %vm1983, %v2015, %v1701
      %v2048 = vsel %vm1984, %v2016, %v1708
      %v2049 = vsel %vm1985, %v2017, %v1715
      %v2050 = vsel %vm1986, %v2018, %v1722
      %v2051 = vsel %vm1987, %v2019, %v1729
      %v2052 = vsel %vm1988, %v2020, %v1736
      %v2053 = vsel %vm1989, %v2021, %v1743
      %v2054 = vsel %vm1990, %v2022, %v1750
      %v2055 = vsel %vm1991, %v2023, %v1757
      %v2056 = vsel %vm1992, %v2024, %v1764
      %v2057 = vsel %vm1993, %v2025, %v1771
      %v2058 = vsel %vm1994, %v2026, %v1778
      %v2059 = vsel %vm1995, %v2027, %v1785
      %v2060 = vsel %vm1996, %v2028, %v1792
      %v2061 = vsel %vm1997, %v2029, %v1799
      %v2062 = vsel %vm1998, %v2030, %v1806
      %v2063 = vsel %vm1999, %v2031, %v1813
      %v2064 = vsel %vm2000, %v2032, %v1820
      %v2065 = vsel %vm2001, %v2033, %v1827
      %v2066 = vsel %vm2002, %v2034, %v1834
      %v2067 = vsel %vm2003, %v2035, %v1841
      %v2068 = vsel %vm2004, %v2036, %v1848
      %v2069 = vsel %vm2005, %v2037, %v1855
      %v2070 = vsel %vm2006, %v2038, %v1862
      %v2071 = vsel %vm2007, %v2039, %v1869
      %v2072 = vsel %vm2008, %v2040, %v1876
      %v2073 = vsel %vm2009, %v2041, %v1883
      %v2074 = vsel %vm2010, %v2042, %v1890
      %v2075 = vsel %vm2011, %v2043, %v1897
      %v2076 = vsel %vm2012, %v2044, %v1904
      %v2077 = vsel %vm2013, %v2045, %v1911
      %v2078 = vsel %vm2014, %v2046, %v1918
      %v2079 = vrot.slane %v1504, 7
      %v2080 = vrot.slane %v1509, 7
      %v2081 = vrot.slane %v1514, 7
      %v2082 = vrot.slane %v1519, 7
      %v2083 = vrot.slane %v1524, 7
      %v2084 = vrot.slane %v1529, 7
      %v2085 = vrot.slane %v1534, 7
      %v2086 = vrot.slane %v1539, 7
      %v2087 = vrot.slane %v1544, 7
      %v2088 = vrot.slane %v1549, 7
      %v2089 = vrot.slane %v1554, 7
      %v2090 = vrot.slane %v1559, 7
      %v2091 = vrot.slane %v1564, 7
      %v2092 = vrot.slane %v1569, 7
      %v2093 = vrot.slane %v1574, 7
      %v2094 = vrot.slane %v1579, 7
      %v2095 = vrot.slane %v1584, 7
      %v2096 = vrot.slane %v1589, 7
      %v2097 = vrot.slane %v1594, 7
      %v2098 = vrot.slane %v1599, 7
      %v2099 = vrot.slane %v1604, 7
      %v2100 = vrot.slane %v1609, 7
      %v2101 = vrot.slane %v1614, 7
      %v2102 = vrot.slane %v1619, 7
      %v2103 = vrot.slane %v1624, 7
      %v2104 = vrot.slane %v1629, 7
      %v2105 = vrot.slane %v1634, 7
      %v2106 = vrot.slane %v1639, 7
      %v2107 = vrot.slane %v1644, 7
      %v2108 = vrot.slane %v1649, 7
      %v2109 = vrot.slane %v1654, 7
      %v2110 = vrot.slane %v1659, 7
      %vm2111 = vcmp.lt.s32.totalorder %v1663, 1
      %v2112 = vsel %vm2111, %v2109, %v2110
      %v2113 = vsel %vm2111, %v2108, %v2109
      %v2114 = vsel %vm2111, %v2107, %v2108
      %v2115 = vsel %vm2111, %v2106, %v2107
      %v2116 = vsel %vm2111, %v2105, %v2106
      %v2117 = vsel %vm2111, %v2104, %v2105
      %v2118 = vsel %vm2111, %v2103, %v2104
      %v2119 = vsel %vm2111, %v2102, %v2103
      %v2120 = vsel %vm2111, %v2101, %v2102
      %v2121 = vsel %vm2111, %v2100, %v2101
      %v2122 = vsel %vm2111, %v2099, %v2100
      %v2123 = vsel %vm2111, %v2098, %v2099
      %v2124 = vsel %vm2111, %v2097, %v2098
      %v2125 = vsel %vm2111, %v2096, %v2097
      %v2126 = vsel %vm2111, %v2095, %v2096
      %v2127 = vsel %vm2111, %v2094, %v2095
      %v2128 = vsel %vm2111, %v2093, %v2094
      %v2129 = vsel %vm2111, %v2092, %v2093
      %v2130 = vsel %vm2111, %v2091, %v2092
      %v2131 = vsel %vm2111, %v2090, %v2091
      %v2132 = vsel %vm2111, %v2089, %v2090
      %v2133 = vsel %vm2111, %v2088, %v2089
      %v2134 = vsel %vm2111, %v2087, %v2088
      %v2135 = vsel %vm2111, %v2086, %v2087
      %v2136 = vsel %vm2111, %v2085, %v2086
      %v2137 = vsel %vm2111, %v2084, %v2085
      %v2138 = vsel %vm2111, %v2083, %v2084
      %v2139 = vsel %vm2111, %v2082, %v2083
      %v2140 = vsel %vm2111, %v2081, %v2082
      %v2141 = vsel %vm2111, %v2080, %v2081
      %v2142 = vsel %vm2111, %v2079, %v2080
      %v2143 = vsel %vm2111, %v2110, %v2079
      %vm2144 = vcmp.ge.s32.totalorder %v1663, 16
      %vm2145 = vcmp.ge.s32.totalorder %v1664, 16
      %vm2146 = vcmp.ge.s32.totalorder %v1665, 16
      %vm2147 = vcmp.ge.s32.totalorder %v1666, 16
      %vm2148 = vcmp.ge.s32.totalorder %v1667, 16
      %vm2149 = vcmp.ge.s32.totalorder %v1668, 16
      %vm2150 = vcmp.ge.s32.totalorder %v1669, 16
      %vm2151 = vcmp.ge.s32.totalorder %v1670, 16
      %vm2152 = vcmp.ge.s32.totalorder %v1671, 16
      %vm2153 = vcmp.ge.s32.totalorder %v1672, 16
      %vm2154 = vcmp.ge.s32.totalorder %v1673, 16
      %vm2155 = vcmp.ge.s32.totalorder %v1674, 16
      %vm2156 = vcmp.ge.s32.totalorder %v1675, 16
      %vm2157 = vcmp.ge.s32.totalorder %v1676, 16
      %vm2158 = vcmp.ge.s32.totalorder %v1677, 16
      %vm2159 = vcmp.ge.s32.totalorder %v1678, 16
      %vm2160 = vcmp.ge.s32.totalorder %v1679, 16
      %vm2161 = vcmp.ge.s32.totalorder %v1680, 16
      %vm2162 = vcmp.ge.s32.totalorder %v1681, 16
      %vm2163 = vcmp.ge.s32.totalorder %v1682, 16
      %vm2164 = vcmp.ge.s32.totalorder %v1683, 16
      %vm2165 = vcmp.ge.s32.totalorder %v1684, 16
      %vm2166 = vcmp.ge.s32.totalorder %v1685, 16
      %vm2167 = vcmp.ge.s32.totalorder %v1686, 16
      %vm2168 = vcmp.ge.s32.totalorder %v1687, 16
      %vm2169 = vcmp.ge.s32.totalorder %v1688, 16
      %vm2170 = vcmp.ge.s32.totalorder %v1689, 16
      %vm2171 = vcmp.ge.s32.totalorder %v1690, 16
      %vm2172 = vcmp.ge.s32.totalorder %v1691, 16
      %vm2173 = vcmp.ge.s32.totalorder %v1692, 16
      %vm2174 = vcmp.ge.s32.totalorder %v1693, 16
      %vm2175 = vcmp.ge.s32.totalorder %v1694, 16
      %vm2176 = vcmp.ge.s32.totalorder %v2047, 1
      %vm2177 = vcmp.ge.s32.totalorder %v2048, 1
      %vm2178 = vcmp.ge.s32.totalorder %v2049, 1
      %vm2179 = vcmp.ge.s32.totalorder %v2050, 1
      %vm2180 = vcmp.ge.s32.totalorder %v2051, 1
      %vm2181 = vcmp.ge.s32.totalorder %v2052, 1
      %vm2182 = vcmp.ge.s32.totalorder %v2053, 1
      %vm2183 = vcmp.ge.s32.totalorder %v2054, 1
      %vm2184 = vcmp.ge.s32.totalorder %v2055, 1
      %vm2185 = vcmp.ge.s32.totalorder %v2056, 1
      %vm2186 = vcmp.ge.s32.totalorder %v2057, 1
      %vm2187 = vcmp.ge.s32.totalorder %v2058, 1
      %vm2188 = vcmp.ge.s32.totalorder %v2059, 1
      %vm2189 = vcmp.ge.s32.totalorder %v2060, 1
      %vm2190 = vcmp.ge.s32.totalorder %v2061, 1
      %vm2191 = vcmp.ge.s32.totalorder %v2062, 1
      %vm2192 = vcmp.ge.s32.totalorder %v2063, 1
      %vm2193 = vcmp.ge.s32.totalorder %v2064, 1
      %vm2194 = vcmp.ge.s32.totalorder %v2065, 1
      %vm2195 = vcmp.ge.s32.totalorder %v2066, 1
      %vm2196 = vcmp.ge.s32.totalorder %v2067, 1
      %vm2197 = vcmp.ge.s32.totalorder %v2068, 1
      %vm2198 = vcmp.ge.s32.totalorder %v2069, 1
      %vm2199 = vcmp.ge.s32.totalorder %v2070, 1
      %vm2200 = vcmp.ge.s32.totalorder %v2071, 1
      %vm2201 = vcmp.ge.s32.totalorder %v2072, 1
      %vm2202 = vcmp.ge.s32.totalorder %v2073, 1
      %vm2203 = vcmp.ge.s32.totalorder %v2074, 1
      %vm2204 = vcmp.ge.s32.totalorder %v2075, 1
      %vm2205 = vcmp.ge.s32.totalorder %v2076, 1
      %vm2206 = vcmp.ge.s32.totalorder %v2077, 1
      %vm2207 = vcmp.ge.s32.totalorder %v2078, 1
      %vm2208 = vmand %vm2144, %vm2176
      %vm2209 = vmand %vm2145, %vm2177
      %vm2210 = vmand %vm2146, %vm2178
      %vm2211 = vmand %vm2147, %vm2179
      %vm2212 = vmand %vm2148, %vm2180
      %vm2213 = vmand %vm2149, %vm2181
      %vm2214 = vmand %vm2150, %vm2182
      %vm2215 = vmand %vm2151, %vm2183
      %vm2216 = vmand %vm2152, %vm2184
      %vm2217 = vmand %vm2153, %vm2185
      %vm2218 = vmand %vm2154, %vm2186
      %vm2219 = vmand %vm2155, %vm2187
      %vm2220 = vmand %vm2156, %vm2188
      %vm2221 = vmand %vm2157, %vm2189
      %vm2222 = vmand %vm2158, %vm2190
      %vm2223 = vmand %vm2159, %vm2191
      %vm2224 = vmand %vm2160, %vm2192
      %vm2225 = vmand %vm2161, %vm2193
      %vm2226 = vmand %vm2162, %vm2194
      %vm2227 = vmand %vm2163, %vm2195
      %vm2228 = vmand %vm2164, %vm2196
      %vm2229 = vmand %vm2165, %vm2197
      %vm2230 = vmand %vm2166, %vm2198
      %vm2231 = vmand %vm2167, %vm2199
      %vm2232 = vmand %vm2168, %vm2200
      %vm2233 = vmand %vm2169, %vm2201
      %vm2234 = vmand %vm2170, %vm2202
      %vm2235 = vmand %vm2171, %vm2203
      %vm2236 = vmand %vm2172, %vm2204
      %vm2237 = vmand %vm2173, %vm2205
      %vm2238 = vmand %vm2174, %vm2206
      %vm2239 = vmand %vm2175, %vm2207
      %v2240 = vsel %vm2208, 1, 0
      %v2241 = vsel %vm2209, 1, 0
      %v2242 = vsel %vm2210, 1, 0
      %v2243 = vsel %vm2211, 1, 0
      %v2244 = vsel %vm2212, 1, 0
      %v2245 = vsel %vm2213, 1, 0
      %v2246 = vsel %vm2214, 1, 0
      %v2247 = vsel %vm2215, 1, 0
      %v2248 = vsel %vm2216, 1, 0
      %v2249 = vsel %vm2217, 1, 0
      %v2250 = vsel %vm2218, 1, 0
      %v2251 = vsel %vm2219, 1, 0
      %v2252 = vsel %vm2220, 1, 0
      %v2253 = vsel %vm2221, 1, 0
      %v2254 = vsel %vm2222, 1, 0
      %v2255 = vsel %vm2223, 1, 0
      %v2256 = vsel %vm2224, 1, 0
      %v2257 = vsel %vm2225, 1, 0
      %v2258 = vsel %vm2226, 1, 0
      %v2259 = vsel %vm2227, 1, 0
      %v2260 = vsel %vm2228, 1, 0
      %v2261 = vsel %vm2229, 1, 0
      %v2262 = vsel %vm2230, 1, 0
      %v2263 = vsel %vm2231, 1, 0
      %v2264 = vsel %vm2232, 1, 0
      %v2265 = vsel %vm2233, 1, 0
      %v2266 = vsel %vm2234, 1, 0
      %v2267 = vsel %vm2235, 1, 0
      %v2268 = vsel %vm2236, 1, 0
      %v2269 = vsel %vm2237, 1, 0
      %v2270 = vsel %vm2238, 1, 0
      %v2271 = vsel %vm2239, 1, 0
      %vm2272 = vcmp.eq.s32.totalorder %v2240, 1
      %vm2273 = vcmp.eq.s32.totalorder %v2241, 1
      %vm2274 = vcmp.eq.s32.totalorder %v2242, 1
      %vm2275 = vcmp.eq.s32.totalorder %v2243, 1
      %vm2276 = vcmp.eq.s32.totalorder %v2244, 1
      %vm2277 = vcmp.eq.s32.totalorder %v2245, 1
      %vm2278 = vcmp.eq.s32.totalorder %v2246, 1
      %vm2279 = vcmp.eq.s32.totalorder %v2247, 1
      %vm2280 = vcmp.eq.s32.totalorder %v2248, 1
      %vm2281 = vcmp.eq.s32.totalorder %v2249, 1
      %vm2282 = vcmp.eq.s32.totalorder %v2250, 1
      %vm2283 = vcmp.eq.s32.totalorder %v2251, 1
      %vm2284 = vcmp.eq.s32.totalorder %v2252, 1
      %vm2285 = vcmp.eq.s32.totalorder %v2253, 1
      %vm2286 = vcmp.eq.s32.totalorder %v2254, 1
      %vm2287 = vcmp.eq.s32.totalorder %v2255, 1
      %vm2288 = vcmp.eq.s32.totalorder %v2256, 1
      %vm2289 = vcmp.eq.s32.totalorder %v2257, 1
      %vm2290 = vcmp.eq.s32.totalorder %v2258, 1
      %vm2291 = vcmp.eq.s32.totalorder %v2259, 1
      %vm2292 = vcmp.eq.s32.totalorder %v2260, 1
      %vm2293 = vcmp.eq.s32.totalorder %v2261, 1
      %vm2294 = vcmp.eq.s32.totalorder %v2262, 1
      %vm2295 = vcmp.eq.s32.totalorder %v2263, 1
      %vm2296 = vcmp.eq.s32.totalorder %v2264, 1
      %vm2297 = vcmp.eq.s32.totalorder %v2265, 1
      %vm2298 = vcmp.eq.s32.totalorder %v2266, 1
      %vm2299 = vcmp.eq.s32.totalorder %v2267, 1
      %vm2300 = vcmp.eq.s32.totalorder %v2268, 1
      %vm2301 = vcmp.eq.s32.totalorder %v2269, 1
      %vm2302 = vcmp.eq.s32.totalorder %v2270, 1
      %vm2303 = vcmp.eq.s32.totalorder %v2271, 1
      %v2304 = vsel %vm2272, %v2113, 0.0
      %v2305 = vsel %vm2273, %v2112, 0.0
      %v2306 = vsel %vm2274, %v2143, 0.0
      %v2307 = vsel %vm2275, %v2142, 0.0
      %v2308 = vsel %vm2276, %v2141, 0.0
      %v2309 = vsel %vm2277, %v2140, 0.0
      %v2310 = vsel %vm2278, %v2139, 0.0
      %v2311 = vsel %vm2279, %v2138, 0.0
      %v2312 = vsel %vm2280, %v2137, 0.0
      %v2313 = vsel %vm2281, %v2136, 0.0
      %v2314 = vsel %vm2282, %v2135, 0.0
      %v2315 = vsel %vm2283, %v2134, 0.0
      %v2316 = vsel %vm2284, %v2133, 0.0
      %v2317 = vsel %vm2285, %v2132, 0.0
      %v2318 = vsel %vm2286, %v2131, 0.0
      %v2319 = vsel %vm2287, %v2130, 0.0
      %v2320 = vsel %vm2288, %v2129, 0.0
      %v2321 = vsel %vm2289, %v2128, 0.0
      %v2322 = vsel %vm2290, %v2127, 0.0
      %v2323 = vsel %vm2291, %v2126, 0.0
      %v2324 = vsel %vm2292, %v2125, 0.0
      %v2325 = vsel %vm2293, %v2124, 0.0
      %v2326 = vsel %vm2294, %v2123, 0.0
      %v2327 = vsel %vm2295, %v2122, 0.0
      %v2328 = vsel %vm2296, %v2121, 0.0
      %v2329 = vsel %vm2297, %v2120, 0.0
      %v2330 = vsel %vm2298, %v2119, 0.0
      %v2331 = vsel %vm2299, %v2118, 0.0
      %v2332 = vsel %vm2300, %v2117, 0.0
      %v2333 = vsel %vm2301, %v2116, 0.0
      %v2334 = vsel %vm2302, %v2115, 0.0
      %v2335 = vsel %vm2303, %v2114, 0.0
      %v2336 = vadd.f32 %v2304, 0.0
      %v2337 = vadd.f32 %v2305, 0.0
      %v2338 = vadd.f32 %v2306, 0.0
      %v2339 = vadd.f32 %v2307, 0.0
      %v2340 = vadd.f32 %v2308, 0.0
      %v2341 = vadd.f32 %v2309, 0.0
      %v2342 = vadd.f32 %v2310, 0.0
      %v2343 = vadd.f32 %v2311, 0.0
      %v2344 = vadd.f32 %v2312, 0.0
      %v2345 = vadd.f32 %v2313, 0.0
      %v2346 = vadd.f32 %v2314, 0.0
      %v2347 = vadd.f32 %v2315, 0.0
      %v2348 = vadd.f32 %v2316, 0.0
      %v2349 = vadd.f32 %v2317, 0.0
      %v2350 = vadd.f32 %v2318, 0.0
      %v2351 = vadd.f32 %v2319, 0.0
      %v2352 = vadd.f32 %v2320, 0.0
      %v2353 = vadd.f32 %v2321, 0.0
      %v2354 = vadd.f32 %v2322, 0.0
      %v2355 = vadd.f32 %v2323, 0.0
      %v2356 = vadd.f32 %v2324, 0.0
      %v2357 = vadd.f32 %v2325, 0.0
      %v2358 = vadd.f32 %v2326, 0.0
      %v2359 = vadd.f32 %v2327, 0.0
      %v2360 = vadd.f32 %v2328, 0.0
      %v2361 = vadd.f32 %v2329, 0.0
      %v2362 = vadd.f32 %v2330, 0.0
      %v2363 = vadd.f32 %v2331, 0.0
      %v2364 = vadd.f32 %v2332, 0.0
      %v2365 = vadd.f32 %v2333, 0.0
      %v2366 = vadd.f32 %v2334, 0.0
      %v2367 = vadd.f32 %v2335, 0.0
      %2400 = vrot.lane.b32.xlu0 %v1504, 120
      %v2401 = vpop.permute.xlu0 %2400
      %2402 = vrot.lane.b32.xlu0 %v1509, 120
      %v2403 = vpop.permute.xlu0 %2402
      %2404 = vrot.lane.b32.xlu0 %v1514, 120
      %v2405 = vpop.permute.xlu0 %2404
      %2406 = vrot.lane.b32.xlu0 %v1519, 120
      %v2407 = vpop.permute.xlu0 %2406
      %2408 = vrot.lane.b32.xlu0 %v1524, 120
      %v2409 = vpop.permute.xlu0 %2408
      %2410 = vrot.lane.b32.xlu0 %v1529, 120
      %v2411 = vpop.permute.xlu0 %2410
      %2412 = vrot.lane.b32.xlu0 %v1534, 120
      %v2413 = vpop.permute.xlu0 %2412
      %2414 = vrot.lane.b32.xlu0 %v1539, 120
      %v2415 = vpop.permute.xlu0 %2414
      %2416 = vrot.lane.b32.xlu0 %v1544, 120
      %v2417 = vpop.permute.xlu0 %2416
      %2418 = vrot.lane.b32.xlu0 %v1549, 120
      %v2419 = vpop.permute.xlu0 %2418
      %2420 = vrot.lane.b32.xlu0 %v1554, 120
      %v2421 = vpop.permute.xlu0 %2420
      %2422 = vrot.lane.b32.xlu0 %v1559, 120
      %v2423 = vpop.permute.xlu0 %2422
      %2424 = vrot.lane.b32.xlu0 %v1564, 120
      %v2425 = vpop.permute.xlu0 %2424
      %2426 = vrot.lane.b32.xlu0 %v1569, 120
      %v2427 = vpop.permute.xlu0 %2426
      %2428 = vrot.lane.b32.xlu0 %v1574, 120
      %v2429 = vpop.permute.xlu0 %2428
      %2430 = vrot.lane.b32.xlu0 %v1579, 120
      %v2431 = vpop.permute.xlu0 %2430
      %2432 = vrot.lane.b32.xlu0 %v1584, 120
      %v2433 = vpop.permute.xlu0 %2432
      %2434 = vrot.lane.b32.xlu0 %v1589, 120
      %v2435 = vpop.permute.xlu0 %2434
      %2436 = vrot.lane.b32.xlu0 %v1594, 120
      %v2437 = vpop.permute.xlu0 %2436
      %2438 = vrot.lane.b32.xlu0 %v1599, 120
      %v2439 = vpop.permute.xlu0 %2438
      %2440 = vrot.lane.b32.xlu0 %v1604, 120
      %v2441 = vpop.permute.xlu0 %2440
      %2442 = vrot.lane.b32.xlu0 %v1609, 120
      %v2443 = vpop.permute.xlu0 %2442
      %2444 = vrot.lane.b32.xlu0 %v1614, 120
      %v2445 = vpop.permute.xlu0 %2444
      %2446 = vrot.lane.b32.xlu0 %v1619, 120
      %v2447 = vpop.permute.xlu0 %2446
      %2448 = vrot.lane.b32.xlu0 %v1624, 120
      %v2449 = vpop.permute.xlu0 %2448
      %2450 = vrot.lane.b32.xlu0 %v1629, 120
      %v2451 = vpop.permute.xlu0 %2450
      %2452 = vrot.lane.b32.xlu0 %v1634, 120
      %v2453 = vpop.permute.xlu0 %2452
      %2454 = vrot.lane.b32.xlu0 %v1639, 120
      %v2455 = vpop.permute.xlu0 %2454
      %2456 = vrot.lane.b32.xlu0 %v1644, 120
      %v2457 = vpop.permute.xlu0 %2456
      %2458 = vrot.lane.b32.xlu0 %v1649, 120
      %v2459 = vpop.permute.xlu0 %2458
      %2460 = vrot.lane.b32.xlu0 %v1654, 120
      %v2461 = vpop.permute.xlu0 %2460
      %2462 = vrot.lane.b32.xlu0 %v1659, 120
      %v2463 = vpop.permute.xlu0 %2462
      %v2496 = vsel %vm2144, 1, 0
      %v2497 = vsel %vm2145, 1, 0
      %v2498 = vsel %vm2146, 1, 0
      %v2499 = vsel %vm2147, 1, 0
      %v2500 = vsel %vm2148, 1, 0
      %v2501 = vsel %vm2149, 1, 0
      %v2502 = vsel %vm2150, 1, 0
      %v2503 = vsel %vm2151, 1, 0
      %v2504 = vsel %vm2152, 1, 0
      %v2505 = vsel %vm2153, 1, 0
      %v2506 = vsel %vm2154, 1, 0
      %v2507 = vsel %vm2155, 1, 0
      %v2508 = vsel %vm2156, 1, 0
      %v2509 = vsel %vm2157, 1, 0
      %v2510 = vsel %vm2158, 1, 0
      %v2511 = vsel %vm2159, 1, 0
      %v2512 = vsel %vm2160, 1, 0
      %v2513 = vsel %vm2161, 1, 0
      %v2514 = vsel %vm2162, 1, 0
      %v2515 = vsel %vm2163, 1, 0
      %v2516 = vsel %vm2164, 1, 0
      %v2517 = vsel %vm2165, 1, 0
      %v2518 = vsel %vm2166, 1, 0
      %v2519 = vsel %vm2167, 1, 0
      %v2520 = vsel %vm2168, 1, 0
      %v2521 = vsel %vm2169, 1, 0
      %v2522 = vsel %vm2170, 1, 0
      %v2523 = vsel %vm2171, 1, 0
      %v2524 = vsel %vm2172, 1, 0
      %v2525 = vsel %vm2173, 1, 0
      %v2526 = vsel %vm2174, 1, 0
      %v2527 = vsel %vm2175, 1, 0
      %vm2528 = vcmp.eq.s32.totalorder %v2496, 1
      %vm2529 = vcmp.eq.s32.totalorder %v2497, 1
      %vm2530 = vcmp.eq.s32.totalorder %v2498, 1
      %vm2531 = vcmp.eq.s32.totalorder %v2499, 1
      %vm2532 = vcmp.eq.s32.totalorder %v2500, 1
      %vm2533 = vcmp.eq.s32.totalorder %v2501, 1
      %vm2534 = vcmp.eq.s32.totalorder %v2502, 1
      %vm2535 = vcmp.eq.s32.totalorder %v2503, 1
      %vm2536 = vcmp.eq.s32.totalorder %v2504, 1
      %vm2537 = vcmp.eq.s32.totalorder %v2505, 1
      %vm2538 = vcmp.eq.s32.totalorder %v2506, 1
      %vm2539 = vcmp.eq.s32.totalorder %v2507, 1
      %vm2540 = vcmp.eq.s32.totalorder %v2508, 1
      %vm2541 = vcmp.eq.s32.totalorder %v2509, 1
      %vm2542 = vcmp.eq.s32.totalorder %v2510, 1
      %vm2543 = vcmp.eq.s32.totalorder %v2511, 1
      %vm2544 = vcmp.eq.s32.totalorder %v2512, 1
      %vm2545 = vcmp.eq.s32.totalorder %v2513, 1
      %vm2546 = vcmp.eq.s32.totalorder %v2514, 1
      %vm2547 = vcmp.eq.s32.totalorder %v2515, 1
      %vm2548 = vcmp.eq.s32.totalorder %v2516, 1
      %vm2549 = vcmp.eq.s32.totalorder %v2517, 1
      %vm2550 = vcmp.eq.s32.totalorder %v2518, 1
      %vm2551 = vcmp.eq.s32.totalorder %v2519, 1
      %vm2552 = vcmp.eq.s32.totalorder %v2520, 1
      %vm2553 = vcmp.eq.s32.totalorder %v2521, 1
      %vm2554 = vcmp.eq.s32.totalorder %v2522, 1
      %vm2555 = vcmp.eq.s32.totalorder %v2523, 1
      %vm2556 = vcmp.eq.s32.totalorder %v2524, 1
      %vm2557 = vcmp.eq.s32.totalorder %v2525, 1
      %vm2558 = vcmp.eq.s32.totalorder %v2526, 1
      %vm2559 = vcmp.eq.s32.totalorder %v2527, 1
      %v2560 = vsel %vm2528, %v2461, 0.0
      %v2561 = vsel %vm2529, %v2463, 0.0
      %v2562 = vsel %vm2530, %v2401, 0.0
      %v2563 = vsel %vm2531, %v2403, 0.0
      %v2564 = vsel %vm2532, %v2405, 0.0
      %v2565 = vsel %vm2533, %v2407, 0.0
      %v2566 = vsel %vm2534, %v2409, 0.0
      %v2567 = vsel %vm2535, %v2411, 0.0
      %v2568 = vsel %vm2536, %v2413, 0.0
      %v2569 = vsel %vm2537, %v2415, 0.0
      %v2570 = vsel %vm2538, %v2417, 0.0
      %v2571 = vsel %vm2539, %v2419, 0.0
      %v2572 = vsel %vm2540, %v2421, 0.0
      %v2573 = vsel %vm2541, %v2423, 0.0
      %v2574 = vsel %vm2542, %v2425, 0.0
      %v2575 = vsel %vm2543, %v2427, 0.0
      %v2576 = vsel %vm2544, %v2429, 0.0
      %v2577 = vsel %vm2545, %v2431, 0.0
      %v2578 = vsel %vm2546, %v2433, 0.0
      %v2579 = vsel %vm2547, %v2435, 0.0
      %v2580 = vsel %vm2548, %v2437, 0.0
      %v2581 = vsel %vm2549, %v2439, 0.0
      %v2582 = vsel %vm2550, %v2441, 0.0
      %v2583 = vsel %vm2551, %v2443, 0.0
      %v2584 = vsel %vm2552, %v2445, 0.0
      %v2585 = vsel %vm2553, %v2447, 0.0
      %v2586 = vsel %vm2554, %v2449, 0.0
      %v2587 = vsel %vm2555, %v2451, 0.0
      %v2588 = vsel %vm2556, %v2453, 0.0
      %v2589 = vsel %vm2557, %v2455, 0.0
      %v2590 = vsel %vm2558, %v2457, 0.0
      %v2591 = vsel %vm2559, %v2459, 0.0
      %v2592 = vadd.f32 %v2336, %v2560
      %v2593 = vadd.f32 %v2337, %v2561
      %v2594 = vadd.f32 %v2338, %v2562
      %v2595 = vadd.f32 %v2339, %v2563
      %v2596 = vadd.f32 %v2340, %v2564
      %v2597 = vadd.f32 %v2341, %v2565
      %v2598 = vadd.f32 %v2342, %v2566
      %v2599 = vadd.f32 %v2343, %v2567
      %v2600 = vadd.f32 %v2344, %v2568
      %v2601 = vadd.f32 %v2345, %v2569
      %v2602 = vadd.f32 %v2346, %v2570
      %v2603 = vadd.f32 %v2347, %v2571
      %v2604 = vadd.f32 %v2348, %v2572
      %v2605 = vadd.f32 %v2349, %v2573
      %v2606 = vadd.f32 %v2350, %v2574
      %v2607 = vadd.f32 %v2351, %v2575
      %v2608 = vadd.f32 %v2352, %v2576
      %v2609 = vadd.f32 %v2353, %v2577
      %v2610 = vadd.f32 %v2354, %v2578
      %v2611 = vadd.f32 %v2355, %v2579
      %v2612 = vadd.f32 %v2356, %v2580
      %v2613 = vadd.f32 %v2357, %v2581
      %v2614 = vadd.f32 %v2358, %v2582
      %v2615 = vadd.f32 %v2359, %v2583
      %v2616 = vadd.f32 %v2360, %v2584
      %v2617 = vadd.f32 %v2361, %v2585
      %v2618 = vadd.f32 %v2362, %v2586
      %v2619 = vadd.f32 %v2363, %v2587
      %v2620 = vadd.f32 %v2364, %v2588
      %v2621 = vadd.f32 %v2365, %v2589
      %v2622 = vadd.f32 %v2366, %v2590
      %v2623 = vadd.f32 %v2367, %v2591
      %2624 = vrot.lane.b32.xlu0 %v1504, 112
      %v2625 = vpop.permute.xlu0 %2624
      %2626 = vrot.lane.b32.xlu0 %v1509, 112
      %v2627 = vpop.permute.xlu0 %2626
      %2628 = vrot.lane.b32.xlu0 %v1514, 112
      %v2629 = vpop.permute.xlu0 %2628
      %2630 = vrot.lane.b32.xlu0 %v1519, 112
      %v2631 = vpop.permute.xlu0 %2630
      %2632 = vrot.lane.b32.xlu0 %v1524, 112
      %v2633 = vpop.permute.xlu0 %2632
      %2634 = vrot.lane.b32.xlu0 %v1529, 112
      %v2635 = vpop.permute.xlu0 %2634
      %2636 = vrot.lane.b32.xlu0 %v1534, 112
      %v2637 = vpop.permute.xlu0 %2636
      %2638 = vrot.lane.b32.xlu0 %v1539, 112
      %v2639 = vpop.permute.xlu0 %2638
      %2640 = vrot.lane.b32.xlu0 %v1544, 112
      %v2641 = vpop.permute.xlu0 %2640
      %2642 = vrot.lane.b32.xlu0 %v1549, 112
      %v2643 = vpop.permute.xlu0 %2642
      %2644 = vrot.lane.b32.xlu0 %v1554, 112
      %v2645 = vpop.permute.xlu0 %2644
      %2646 = vrot.lane.b32.xlu0 %v1559, 112
      %v2647 = vpop.permute.xlu0 %2646
      %2648 = vrot.lane.b32.xlu0 %v1564, 112
      %v2649 = vpop.permute.xlu0 %2648
      %2650 = vrot.lane.b32.xlu0 %v1569, 112
      %v2651 = vpop.permute.xlu0 %2650
      %2652 = vrot.lane.b32.xlu0 %v1574, 112
      %v2653 = vpop.permute.xlu0 %2652
      %2654 = vrot.lane.b32.xlu0 %v1579, 112
      %v2655 = vpop.permute.xlu0 %2654
      %2656 = vrot.lane.b32.xlu0 %v1584, 112
      %v2657 = vpop.permute.xlu0 %2656
      %2658 = vrot.lane.b32.xlu0 %v1589, 112
      %v2659 = vpop.permute.xlu0 %2658
      %2660 = vrot.lane.b32.xlu0 %v1594, 112
      %v2661 = vpop.permute.xlu0 %2660
      %2662 = vrot.lane.b32.xlu0 %v1599, 112
      %v2663 = vpop.permute.xlu0 %2662
      %2664 = vrot.lane.b32.xlu0 %v1604, 112
      %v2665 = vpop.permute.xlu0 %2664
      %2666 = vrot.lane.b32.xlu0 %v1609, 112
      %v2667 = vpop.permute.xlu0 %2666
      %2668 = vrot.lane.b32.xlu0 %v1614, 112
      %v2669 = vpop.permute.xlu0 %2668
      %2670 = vrot.lane.b32.xlu0 %v1619, 112
      %v2671 = vpop.permute.xlu0 %2670
      %2672 = vrot.lane.b32.xlu0 %v1624, 112
      %v2673 = vpop.permute.xlu0 %2672
      %2674 = vrot.lane.b32.xlu0 %v1629, 112
      %v2675 = vpop.permute.xlu0 %2674
      %2676 = vrot.lane.b32.xlu0 %v1634, 112
      %v2677 = vpop.permute.xlu0 %2676
      %2678 = vrot.lane.b32.xlu0 %v1639, 112
      %v2679 = vpop.permute.xlu0 %2678
      %2680 = vrot.lane.b32.xlu0 %v1644, 112
      %v2681 = vpop.permute.xlu0 %2680
      %2682 = vrot.lane.b32.xlu0 %v1649, 112
      %v2683 = vpop.permute.xlu0 %2682
      %2684 = vrot.lane.b32.xlu0 %v1654, 112
      %v2685 = vpop.permute.xlu0 %2684
      %2686 = vrot.lane.b32.xlu0 %v1659, 112
      %v2687 = vpop.permute.xlu0 %2686
      %v2720 = vrot.slane %v2625, 1
      %v2721 = vrot.slane %v2627, 1
      %v2722 = vrot.slane %v2629, 1
      %v2723 = vrot.slane %v2631, 1
      %v2724 = vrot.slane %v2633, 1
      %v2725 = vrot.slane %v2635, 1
      %v2726 = vrot.slane %v2637, 1
      %v2727 = vrot.slane %v2639, 1
      %v2728 = vrot.slane %v2641, 1
      %v2729 = vrot.slane %v2643, 1
      %v2730 = vrot.slane %v2645, 1
      %v2731 = vrot.slane %v2647, 1
      %v2732 = vrot.slane %v2649, 1
      %v2733 = vrot.slane %v2651, 1
      %v2734 = vrot.slane %v2653, 1
      %v2735 = vrot.slane %v2655, 1
      %v2736 = vrot.slane %v2657, 1
      %v2737 = vrot.slane %v2659, 1
      %v2738 = vrot.slane %v2661, 1
      %v2739 = vrot.slane %v2663, 1
      %v2740 = vrot.slane %v2665, 1
      %v2741 = vrot.slane %v2667, 1
      %v2742 = vrot.slane %v2669, 1
      %v2743 = vrot.slane %v2671, 1
      %v2744 = vrot.slane %v2673, 1
      %v2745 = vrot.slane %v2675, 1
      %v2746 = vrot.slane %v2677, 1
      %v2747 = vrot.slane %v2679, 1
      %v2748 = vrot.slane %v2681, 1
      %v2749 = vrot.slane %v2683, 1
      %v2750 = vrot.slane %v2685, 1
      %v2751 = vrot.slane %v2687, 1
      %vm2752 = vcmp.lt.s32.totalorder %v1663, 7
      %v2753 = vsel %vm2752, %v2750, %v2751
      %v2754 = vsel %vm2752, %v2749, %v2750
      %v2755 = vsel %vm2752, %v2748, %v2749
      %v2756 = vsel %vm2752, %v2747, %v2748
      %v2757 = vsel %vm2752, %v2746, %v2747
      %v2758 = vsel %vm2752, %v2745, %v2746
      %v2759 = vsel %vm2752, %v2744, %v2745
      %v2760 = vsel %vm2752, %v2743, %v2744
      %v2761 = vsel %vm2752, %v2742, %v2743
      %v2762 = vsel %vm2752, %v2741, %v2742
      %v2763 = vsel %vm2752, %v2740, %v2741
      %v2764 = vsel %vm2752, %v2739, %v2740
      %v2765 = vsel %vm2752, %v2738, %v2739
      %v2766 = vsel %vm2752, %v2737, %v2738
      %v2767 = vsel %vm2752, %v2736, %v2737
      %v2768 = vsel %vm2752, %v2735, %v2736
      %v2769 = vsel %vm2752, %v2734, %v2735
      %v2770 = vsel %vm2752, %v2733, %v2734
      %v2771 = vsel %vm2752, %v2732, %v2733
      %v2772 = vsel %vm2752, %v2731, %v2732
      %v2773 = vsel %vm2752, %v2730, %v2731
      %v2774 = vsel %vm2752, %v2729, %v2730
      %v2775 = vsel %vm2752, %v2728, %v2729
      %v2776 = vsel %vm2752, %v2727, %v2728
      %v2777 = vsel %vm2752, %v2726, %v2727
      %v2778 = vsel %vm2752, %v2725, %v2726
      %v2779 = vsel %vm2752, %v2724, %v2725
      %v2780 = vsel %vm2752, %v2723, %v2724
      %v2781 = vsel %vm2752, %v2722, %v2723
      %v2782 = vsel %vm2752, %v2721, %v2722
      %v2783 = vsel %vm2752, %v2720, %v2721
      %v2784 = vsel %vm2752, %v2751, %v2720
      %vm2785 = vcmp.le.s32.totalorder %v2047, 14
      %vm2786 = vcmp.le.s32.totalorder %v2048, 14
      %vm2787 = vcmp.le.s32.totalorder %v2049, 14
      %vm2788 = vcmp.le.s32.totalorder %v2050, 14
      %vm2789 = vcmp.le.s32.totalorder %v2051, 14
      %vm2790 = vcmp.le.s32.totalorder %v2052, 14
      %vm2791 = vcmp.le.s32.totalorder %v2053, 14
      %vm2792 = vcmp.le.s32.totalorder %v2054, 14
      %vm2793 = vcmp.le.s32.totalorder %v2055, 14
      %vm2794 = vcmp.le.s32.totalorder %v2056, 14
      %vm2795 = vcmp.le.s32.totalorder %v2057, 14
      %vm2796 = vcmp.le.s32.totalorder %v2058, 14
      %vm2797 = vcmp.le.s32.totalorder %v2059, 14
      %vm2798 = vcmp.le.s32.totalorder %v2060, 14
      %vm2799 = vcmp.le.s32.totalorder %v2061, 14
      %vm2800 = vcmp.le.s32.totalorder %v2062, 14
      %vm2801 = vcmp.le.s32.totalorder %v2063, 14
      %vm2802 = vcmp.le.s32.totalorder %v2064, 14
      %vm2803 = vcmp.le.s32.totalorder %v2065, 14
      %vm2804 = vcmp.le.s32.totalorder %v2066, 14
      %vm2805 = vcmp.le.s32.totalorder %v2067, 14
      %vm2806 = vcmp.le.s32.totalorder %v2068, 14
      %vm2807 = vcmp.le.s32.totalorder %v2069, 14
      %vm2808 = vcmp.le.s32.totalorder %v2070, 14
      %vm2809 = vcmp.le.s32.totalorder %v2071, 14
      %vm2810 = vcmp.le.s32.totalorder %v2072, 14
      %vm2811 = vcmp.le.s32.totalorder %v2073, 14
      %vm2812 = vcmp.le.s32.totalorder %v2074, 14
      %vm2813 = vcmp.le.s32.totalorder %v2075, 14
      %vm2814 = vcmp.le.s32.totalorder %v2076, 14
      %vm2815 = vcmp.le.s32.totalorder %v2077, 14
      %vm2816 = vcmp.le.s32.totalorder %v2078, 14
      %vm2817 = vmand %vm2144, %vm2785
      %vm2818 = vmand %vm2145, %vm2786
      %vm2819 = vmand %vm2146, %vm2787
      %vm2820 = vmand %vm2147, %vm2788
      %vm2821 = vmand %vm2148, %vm2789
      %vm2822 = vmand %vm2149, %vm2790
      %vm2823 = vmand %vm2150, %vm2791
      %vm2824 = vmand %vm2151, %vm2792
      %vm2825 = vmand %vm2152, %vm2793
      %vm2826 = vmand %vm2153, %vm2794
      %vm2827 = vmand %vm2154, %vm2795
      %vm2828 = vmand %vm2155, %vm2796
      %vm2829 = vmand %vm2156, %vm2797
      %vm2830 = vmand %vm2157, %vm2798
      %vm2831 = vmand %vm2158, %vm2799
      %vm2832 = vmand %vm2159, %vm2800
      %vm2833 = vmand %vm2160, %vm2801
      %vm2834 = vmand %vm2161, %vm2802
      %vm2835 = vmand %vm2162, %vm2803
      %vm2836 = vmand %vm2163, %vm2804
      %vm2837 = vmand %vm2164, %vm2805
      %vm2838 = vmand %vm2165, %vm2806
      %vm2839 = vmand %vm2166, %vm2807
      %vm2840 = vmand %vm2167, %vm2808
      %vm2841 = vmand %vm2168, %vm2809
      %vm2842 = vmand %vm2169, %vm2810
      %vm2843 = vmand %vm2170, %vm2811
      %vm2844 = vmand %vm2171, %vm2812
      %vm2845 = vmand %vm2172, %vm2813
      %vm2846 = vmand %vm2173, %vm2814
      %vm2847 = vmand %vm2174, %vm2815
      %vm2848 = vmand %vm2175, %vm2816
      %v2849 = vsel %vm2817, 1, 0
      %v2850 = vsel %vm2818, 1, 0
      %v2851 = vsel %vm2819, 1, 0
      %v2852 = vsel %vm2820, 1, 0
      %v2853 = vsel %vm2821, 1, 0
      %v2854 = vsel %vm2822, 1, 0
      %v2855 = vsel %vm2823, 1, 0
      %v2856 = vsel %vm2824, 1, 0
      %v2857 = vsel %vm2825, 1, 0
      %v2858 = vsel %vm2826, 1, 0
      %v2859 = vsel %vm2827, 1, 0
      %v2860 = vsel %vm2828, 1, 0
      %v2861 = vsel %vm2829, 1, 0
      %v2862 = vsel %vm2830, 1, 0
      %v2863 = vsel %vm2831, 1, 0
      %v2864 = vsel %vm2832, 1, 0
      %v2865 = vsel %vm2833, 1, 0
      %v2866 = vsel %vm2834, 1, 0
      %v2867 = vsel %vm2835, 1, 0
      %v2868 = vsel %vm2836, 1, 0
      %v2869 = vsel %vm2837, 1, 0
      %v2870 = vsel %vm2838, 1, 0
      %v2871 = vsel %vm2839, 1, 0
      %v2872 = vsel %vm2840, 1, 0
      %v2873 = vsel %vm2841, 1, 0
      %v2874 = vsel %vm2842, 1, 0
      %v2875 = vsel %vm2843, 1, 0
      %v2876 = vsel %vm2844, 1, 0
      %v2877 = vsel %vm2845, 1, 0
      %v2878 = vsel %vm2846, 1, 0
      %v2879 = vsel %vm2847, 1, 0
      %v2880 = vsel %vm2848, 1, 0
      %vm2881 = vcmp.eq.s32.totalorder %v2849, 1
      %vm2882 = vcmp.eq.s32.totalorder %v2850, 1
      %vm2883 = vcmp.eq.s32.totalorder %v2851, 1
      %vm2884 = vcmp.eq.s32.totalorder %v2852, 1
      %vm2885 = vcmp.eq.s32.totalorder %v2853, 1
      %vm2886 = vcmp.eq.s32.totalorder %v2854, 1
      %vm2887 = vcmp.eq.s32.totalorder %v2855, 1
      %vm2888 = vcmp.eq.s32.totalorder %v2856, 1
      %vm2889 = vcmp.eq.s32.totalorder %v2857, 1
      %vm2890 = vcmp.eq.s32.totalorder %v2858, 1
      %vm2891 = vcmp.eq.s32.totalorder %v2859, 1
      %vm2892 = vcmp.eq.s32.totalorder %v2860, 1
      %vm2893 = vcmp.eq.s32.totalorder %v2861, 1
      %vm2894 = vcmp.eq.s32.totalorder %v2862, 1
      %vm2895 = vcmp.eq.s32.totalorder %v2863, 1
      %vm2896 = vcmp.eq.s32.totalorder %v2864, 1
      %vm2897 = vcmp.eq.s32.totalorder %v2865, 1
      %vm2898 = vcmp.eq.s32.totalorder %v2866, 1
      %vm2899 = vcmp.eq.s32.totalorder %v2867, 1
      %vm2900 = vcmp.eq.s32.totalorder %v2868, 1
      %vm2901 = vcmp.eq.s32.totalorder %v2869, 1
      %vm2902 = vcmp.eq.s32.totalorder %v2870, 1
      %vm2903 = vcmp.eq.s32.totalorder %v2871, 1
      %vm2904 = vcmp.eq.s32.totalorder %v2872, 1
      %vm2905 = vcmp.eq.s32.totalorder %v2873, 1
      %vm2906 = vcmp.eq.s32.totalorder %v2874, 1
      %vm2907 = vcmp.eq.s32.totalorder %v2875, 1
      %vm2908 = vcmp.eq.s32.totalorder %v2876, 1
      %vm2909 = vcmp.eq.s32.totalorder %v2877, 1
      %vm2910 = vcmp.eq.s32.totalorder %v2878, 1
      %vm2911 = vcmp.eq.s32.totalorder %v2879, 1
      %vm2912 = vcmp.eq.s32.totalorder %v2880, 1
      %v2913 = vsel %vm2881, %v2753, 0.0
      %v2914 = vsel %vm2882, %v2784, 0.0
      %v2915 = vsel %vm2883, %v2783, 0.0
      %v2916 = vsel %vm2884, %v2782, 0.0
      %v2917 = vsel %vm2885, %v2781, 0.0
      %v2918 = vsel %vm2886, %v2780, 0.0
      %v2919 = vsel %vm2887, %v2779, 0.0
      %v2920 = vsel %vm2888, %v2778, 0.0
      %v2921 = vsel %vm2889, %v2777, 0.0
      %v2922 = vsel %vm2890, %v2776, 0.0
      %v2923 = vsel %vm2891, %v2775, 0.0
      %v2924 = vsel %vm2892, %v2774, 0.0
      %v2925 = vsel %vm2893, %v2773, 0.0
      %v2926 = vsel %vm2894, %v2772, 0.0
      %v2927 = vsel %vm2895, %v2771, 0.0
      %v2928 = vsel %vm2896, %v2770, 0.0
      %v2929 = vsel %vm2897, %v2769, 0.0
      %v2930 = vsel %vm2898, %v2768, 0.0
      %v2931 = vsel %vm2899, %v2767, 0.0
      %v2932 = vsel %vm2900, %v2766, 0.0
      %v2933 = vsel %vm2901, %v2765, 0.0
      %v2934 = vsel %vm2902, %v2764, 0.0
      %v2935 = vsel %vm2903, %v2763, 0.0
      %v2936 = vsel %vm2904, %v2762, 0.0
      %v2937 = vsel %vm2905, %v2761, 0.0
      %v2938 = vsel %vm2906, %v2760, 0.0
      %v2939 = vsel %vm2907, %v2759, 0.0
      %v2940 = vsel %vm2908, %v2758, 0.0
      %v2941 = vsel %vm2909, %v2757, 0.0
      %v2942 = vsel %vm2910, %v2756, 0.0
      %v2943 = vsel %vm2911, %v2755, 0.0
      %v2944 = vsel %vm2912, %v2754, 0.0
      %v2945 = vadd.f32 %v2592, %v2913
      %v2946 = vadd.f32 %v2593, %v2914
      %v2947 = vadd.f32 %v2594, %v2915
      %v2948 = vadd.f32 %v2595, %v2916
      %v2949 = vadd.f32 %v2596, %v2917
      %v2950 = vadd.f32 %v2597, %v2918
      %v2951 = vadd.f32 %v2598, %v2919
      %v2952 = vadd.f32 %v2599, %v2920
      %v2953 = vadd.f32 %v2600, %v2921
      %v2954 = vadd.f32 %v2601, %v2922
      %v2955 = vadd.f32 %v2602, %v2923
      %v2956 = vadd.f32 %v2603, %v2924
      %v2957 = vadd.f32 %v2604, %v2925
      %v2958 = vadd.f32 %v2605, %v2926
      %v2959 = vadd.f32 %v2606, %v2927
      %v2960 = vadd.f32 %v2607, %v2928
      %v2961 = vadd.f32 %v2608, %v2929
      %v2962 = vadd.f32 %v2609, %v2930
      %v2963 = vadd.f32 %v2610, %v2931
      %v2964 = vadd.f32 %v2611, %v2932
      %v2965 = vadd.f32 %v2612, %v2933
      %v2966 = vadd.f32 %v2613, %v2934
      %v2967 = vadd.f32 %v2614, %v2935
      %v2968 = vadd.f32 %v2615, %v2936
      %v2969 = vadd.f32 %v2616, %v2937
      %v2970 = vadd.f32 %v2617, %v2938
      %v2971 = vadd.f32 %v2618, %v2939
      %v2972 = vadd.f32 %v2619, %v2940
      %v2973 = vadd.f32 %v2620, %v2941
      %v2974 = vadd.f32 %v2621, %v2942
      %v2975 = vadd.f32 %v2622, %v2943
      %v2976 = vadd.f32 %v2623, %v2944
      %2977 = vrot.lane.b32.xlu0 %v1504, 104
      %v2978 = vpop.permute.xlu0 %2977
      %2979 = vrot.lane.b32.xlu0 %v1509, 104
      %v2980 = vpop.permute.xlu0 %2979
      %2981 = vrot.lane.b32.xlu0 %v1514, 104
      %v2982 = vpop.permute.xlu0 %2981
      %2983 = vrot.lane.b32.xlu0 %v1519, 104
      %v2984 = vpop.permute.xlu0 %2983
      %2985 = vrot.lane.b32.xlu0 %v1524, 104
      %v2986 = vpop.permute.xlu0 %2985
      %2987 = vrot.lane.b32.xlu0 %v1529, 104
      %v2988 = vpop.permute.xlu0 %2987
      %2989 = vrot.lane.b32.xlu0 %v1534, 104
      %v2990 = vpop.permute.xlu0 %2989
      %2991 = vrot.lane.b32.xlu0 %v1539, 104
      %v2992 = vpop.permute.xlu0 %2991
      %2993 = vrot.lane.b32.xlu0 %v1544, 104
      %v2994 = vpop.permute.xlu0 %2993
      %2995 = vrot.lane.b32.xlu0 %v1549, 104
      %v2996 = vpop.permute.xlu0 %2995
      %2997 = vrot.lane.b32.xlu0 %v1554, 104
      %v2998 = vpop.permute.xlu0 %2997
      %2999 = vrot.lane.b32.xlu0 %v1559, 104
      %v3000 = vpop.permute.xlu0 %2999
      %3001 = vrot.lane.b32.xlu0 %v1564, 104
      %v3002 = vpop.permute.xlu0 %3001
      %3003 = vrot.lane.b32.xlu0 %v1569, 104
      %v3004 = vpop.permute.xlu0 %3003
      %3005 = vrot.lane.b32.xlu0 %v1574, 104
      %v3006 = vpop.permute.xlu0 %3005
      %3007 = vrot.lane.b32.xlu0 %v1579, 104
      %v3008 = vpop.permute.xlu0 %3007
      %3009 = vrot.lane.b32.xlu0 %v1584, 104
      %v3010 = vpop.permute.xlu0 %3009
      %3011 = vrot.lane.b32.xlu0 %v1589, 104
      %v3012 = vpop.permute.xlu0 %3011
      %3013 = vrot.lane.b32.xlu0 %v1594, 104
      %v3014 = vpop.permute.xlu0 %3013
      %3015 = vrot.lane.b32.xlu0 %v1599, 104
      %v3016 = vpop.permute.xlu0 %3015
      %3017 = vrot.lane.b32.xlu0 %v1604, 104
      %v3018 = vpop.permute.xlu0 %3017
      %3019 = vrot.lane.b32.xlu0 %v1609, 104
      %v3020 = vpop.permute.xlu0 %3019
      %3021 = vrot.lane.b32.xlu0 %v1614, 104
      %v3022 = vpop.permute.xlu0 %3021
      %3023 = vrot.lane.b32.xlu0 %v1619, 104
      %v3024 = vpop.permute.xlu0 %3023
      %3025 = vrot.lane.b32.xlu0 %v1624, 104
      %v3026 = vpop.permute.xlu0 %3025
      %3027 = vrot.lane.b32.xlu0 %v1629, 104
      %v3028 = vpop.permute.xlu0 %3027
      %3029 = vrot.lane.b32.xlu0 %v1634, 104
      %v3030 = vpop.permute.xlu0 %3029
      %3031 = vrot.lane.b32.xlu0 %v1639, 104
      %v3032 = vpop.permute.xlu0 %3031
      %3033 = vrot.lane.b32.xlu0 %v1644, 104
      %v3034 = vpop.permute.xlu0 %3033
      %3035 = vrot.lane.b32.xlu0 %v1649, 104
      %v3036 = vpop.permute.xlu0 %3035
      %3037 = vrot.lane.b32.xlu0 %v1654, 104
      %v3038 = vpop.permute.xlu0 %3037
      %3039 = vrot.lane.b32.xlu0 %v1659, 104
      %v3040 = vpop.permute.xlu0 %3039
      %v3073 = vrot.slane %v2978, 7
      %v3074 = vrot.slane %v2980, 7
      %v3075 = vrot.slane %v2982, 7
      %v3076 = vrot.slane %v2984, 7
      %v3077 = vrot.slane %v2986, 7
      %v3078 = vrot.slane %v2988, 7
      %v3079 = vrot.slane %v2990, 7
      %v3080 = vrot.slane %v2992, 7
      %v3081 = vrot.slane %v2994, 7
      %v3082 = vrot.slane %v2996, 7
      %v3083 = vrot.slane %v2998, 7
      %v3084 = vrot.slane %v3000, 7
      %v3085 = vrot.slane %v3002, 7
      %v3086 = vrot.slane %v3004, 7
      %v3087 = vrot.slane %v3006, 7
      %v3088 = vrot.slane %v3008, 7
      %v3089 = vrot.slane %v3010, 7
      %v3090 = vrot.slane %v3012, 7
      %v3091 = vrot.slane %v3014, 7
      %v3092 = vrot.slane %v3016, 7
      %v3093 = vrot.slane %v3018, 7
      %v3094 = vrot.slane %v3020, 7
      %v3095 = vrot.slane %v3022, 7
      %v3096 = vrot.slane %v3024, 7
      %v3097 = vrot.slane %v3026, 7
      %v3098 = vrot.slane %v3028, 7
      %v3099 = vrot.slane %v3030, 7
      %v3100 = vrot.slane %v3032, 7
      %v3101 = vrot.slane %v3034, 7
      %v3102 = vrot.slane %v3036, 7
      %v3103 = vrot.slane %v3038, 7
      %v3104 = vrot.slane %v3040, 7
      %v3105 = vsel %vm2111, %v3103, %v3104
      %v3106 = vsel %vm2111, %v3102, %v3103
      %v3107 = vsel %vm2111, %v3101, %v3102
      %v3108 = vsel %vm2111, %v3100, %v3101
      %v3109 = vsel %vm2111, %v3099, %v3100
      %v3110 = vsel %vm2111, %v3098, %v3099
      %v3111 = vsel %vm2111, %v3097, %v3098
      %v3112 = vsel %vm2111, %v3096, %v3097
      %v3113 = vsel %vm2111, %v3095, %v3096
      %v3114 = vsel %vm2111, %v3094, %v3095
      %v3115 = vsel %vm2111, %v3093, %v3094
      %v3116 = vsel %vm2111, %v3092, %v3093
      %v3117 = vsel %vm2111, %v3091, %v3092
      %v3118 = vsel %vm2111, %v3090, %v3091
      %v3119 = vsel %vm2111, %v3089, %v3090
      %v3120 = vsel %vm2111, %v3088, %v3089
      %v3121 = vsel %vm2111, %v3087, %v3088
      %v3122 = vsel %vm2111, %v3086, %v3087
      %v3123 = vsel %vm2111, %v3085, %v3086
      %v3124 = vsel %vm2111, %v3084, %v3085
      %v3125 = vsel %vm2111, %v3083, %v3084
      %v3126 = vsel %vm2111, %v3082, %v3083
      %v3127 = vsel %vm2111, %v3081, %v3082
      %v3128 = vsel %vm2111, %v3080, %v3081
      %v3129 = vsel %vm2111, %v3079, %v3080
      %v3130 = vsel %vm2111, %v3078, %v3079
      %v3131 = vsel %vm2111, %v3077, %v3078
      %v3132 = vsel %vm2111, %v3076, %v3077
      %v3133 = vsel %vm2111, %v3075, %v3076
      %v3134 = vsel %vm2111, %v3074, %v3075
      %v3135 = vsel %vm2111, %v3073, %v3074
      %v3136 = vsel %vm2111, %v3104, %v3073
      %v3137 = vsel %vm2176, 1, 0
      %v3138 = vsel %vm2177, 1, 0
      %v3139 = vsel %vm2178, 1, 0
      %v3140 = vsel %vm2179, 1, 0
      %v3141 = vsel %vm2180, 1, 0
      %v3142 = vsel %vm2181, 1, 0
      %v3143 = vsel %vm2182, 1, 0
      %v3144 = vsel %vm2183, 1, 0
      %v3145 = vsel %vm2184, 1, 0
      %v3146 = vsel %vm2185, 1, 0
      %v3147 = vsel %vm2186, 1, 0
      %v3148 = vsel %vm2187, 1, 0
      %v3149 = vsel %vm2188, 1, 0
      %v3150 = vsel %vm2189, 1, 0
      %v3151 = vsel %vm2190, 1, 0
      %v3152 = vsel %vm2191, 1, 0
      %v3153 = vsel %vm2192, 1, 0
      %v3154 = vsel %vm2193, 1, 0
      %v3155 = vsel %vm2194, 1, 0
      %v3156 = vsel %vm2195, 1, 0
      %v3157 = vsel %vm2196, 1, 0
      %v3158 = vsel %vm2197, 1, 0
      %v3159 = vsel %vm2198, 1, 0
      %v3160 = vsel %vm2199, 1, 0
      %v3161 = vsel %vm2200, 1, 0
      %v3162 = vsel %vm2201, 1, 0
      %v3163 = vsel %vm2202, 1, 0
      %v3164 = vsel %vm2203, 1, 0
      %v3165 = vsel %vm2204, 1, 0
      %v3166 = vsel %vm2205, 1, 0
      %v3167 = vsel %vm2206, 1, 0
      %v3168 = vsel %vm2207, 1, 0
      %vm3169 = vcmp.eq.s32.totalorder %v3137, 1
      %vm3170 = vcmp.eq.s32.totalorder %v3138, 1
      %vm3171 = vcmp.eq.s32.totalorder %v3139, 1
      %vm3172 = vcmp.eq.s32.totalorder %v3140, 1
      %vm3173 = vcmp.eq.s32.totalorder %v3141, 1
      %vm3174 = vcmp.eq.s32.totalorder %v3142, 1
      %vm3175 = vcmp.eq.s32.totalorder %v3143, 1
      %vm3176 = vcmp.eq.s32.totalorder %v3144, 1
      %vm3177 = vcmp.eq.s32.totalorder %v3145, 1
      %vm3178 = vcmp.eq.s32.totalorder %v3146, 1
      %vm3179 = vcmp.eq.s32.totalorder %v3147, 1
      %vm3180 = vcmp.eq.s32.totalorder %v3148, 1
      %vm3181 = vcmp.eq.s32.totalorder %v3149, 1
      %vm3182 = vcmp.eq.s32.totalorder %v3150, 1
      %vm3183 = vcmp.eq.s32.totalorder %v3151, 1
      %vm3184 = vcmp.eq.s32.totalorder %v3152, 1
      %vm3185 = vcmp.eq.s32.totalorder %v3153, 1
      %vm3186 = vcmp.eq.s32.totalorder %v3154, 1
      %vm3187 = vcmp.eq.s32.totalorder %v3155, 1
      %vm3188 = vcmp.eq.s32.totalorder %v3156, 1
      %vm3189 = vcmp.eq.s32.totalorder %v3157, 1
      %vm3190 = vcmp.eq.s32.totalorder %v3158, 1
      %vm3191 = vcmp.eq.s32.totalorder %v3159, 1
      %vm3192 = vcmp.eq.s32.totalorder %v3160, 1
      %vm3193 = vcmp.eq.s32.totalorder %v3161, 1
      %vm3194 = vcmp.eq.s32.totalorder %v3162, 1
      %vm3195 = vcmp.eq.s32.totalorder %v3163, 1
      %vm3196 = vcmp.eq.s32.totalorder %v3164, 1
      %vm3197 = vcmp.eq.s32.totalorder %v3165, 1
      %vm3198 = vcmp.eq.s32.totalorder %v3166, 1
      %vm3199 = vcmp.eq.s32.totalorder %v3167, 1
      %vm3200 = vcmp.eq.s32.totalorder %v3168, 1
      %v3201 = vsel %vm3169, %v3136, 0.0
      %v3202 = vsel %vm3170, %v3135, 0.0
      %v3203 = vsel %vm3171, %v3134, 0.0
      %v3204 = vsel %vm3172, %v3133, 0.0
      %v3205 = vsel %vm3173, %v3132, 0.0
      %v3206 = vsel %vm3174, %v3131, 0.0
      %v3207 = vsel %vm3175, %v3130, 0.0
      %v3208 = vsel %vm3176, %v3129, 0.0
      %v3209 = vsel %vm3177, %v3128, 0.0
      %v3210 = vsel %vm3178, %v3127, 0.0
      %v3211 = vsel %vm3179, %v3126, 0.0
      %v3212 = vsel %vm3180, %v3125, 0.0
      %v3213 = vsel %vm3181, %v3124, 0.0
      %v3214 = vsel %vm3182, %v3123, 0.0
      %v3215 = vsel %vm3183, %v3122, 0.0
      %v3216 = vsel %vm3184, %v3121, 0.0
      %v3217 = vsel %vm3185, %v3120, 0.0
      %v3218 = vsel %vm3186, %v3119, 0.0
      %v3219 = vsel %vm3187, %v3118, 0.0
      %v3220 = vsel %vm3188, %v3117, 0.0
      %v3221 = vsel %vm3189, %v3116, 0.0
      %v3222 = vsel %vm3190, %v3115, 0.0
      %v3223 = vsel %vm3191, %v3114, 0.0
      %v3224 = vsel %vm3192, %v3113, 0.0
      %v3225 = vsel %vm3193, %v3112, 0.0
      %v3226 = vsel %vm3194, %v3111, 0.0
      %v3227 = vsel %vm3195, %v3110, 0.0
      %v3228 = vsel %vm3196, %v3109, 0.0
      %v3229 = vsel %vm3197, %v3108, 0.0
      %v3230 = vsel %vm3198, %v3107, 0.0
      %v3231 = vsel %vm3199, %v3106, 0.0
      %v3232 = vsel %vm3200, %v3105, 0.0
      %v3233 = vadd.f32 %v2945, %v3201
      %v3234 = vadd.f32 %v2946, %v3202
      %v3235 = vadd.f32 %v2947, %v3203
      %v3236 = vadd.f32 %v2948, %v3204
      %v3237 = vadd.f32 %v2949, %v3205
      %v3238 = vadd.f32 %v2950, %v3206
      %v3239 = vadd.f32 %v2951, %v3207
      %v3240 = vadd.f32 %v2952, %v3208
      %v3241 = vadd.f32 %v2953, %v3209
      %v3242 = vadd.f32 %v2954, %v3210
      %v3243 = vadd.f32 %v2955, %v3211
      %v3244 = vadd.f32 %v2956, %v3212
      %v3245 = vadd.f32 %v2957, %v3213
      %v3246 = vadd.f32 %v2958, %v3214
      %v3247 = vadd.f32 %v2959, %v3215
      %v3248 = vadd.f32 %v2960, %v3216
      %v3249 = vadd.f32 %v2961, %v3217
      %v3250 = vadd.f32 %v2962, %v3218
      %v3251 = vadd.f32 %v2963, %v3219
      %v3252 = vadd.f32 %v2964, %v3220
      %v3253 = vadd.f32 %v2965, %v3221
      %v3254 = vadd.f32 %v2966, %v3222
      %v3255 = vadd.f32 %v2967, %v3223
      %v3256 = vadd.f32 %v2968, %v3224
      %v3257 = vadd.f32 %v2969, %v3225
      %v3258 = vadd.f32 %v2970, %v3226
      %v3259 = vadd.f32 %v2971, %v3227
      %v3260 = vadd.f32 %v2972, %v3228
      %v3261 = vadd.f32 %v2973, %v3229
      %v3262 = vadd.f32 %v2974, %v3230
      %v3263 = vadd.f32 %v2975, %v3231
      %v3264 = vadd.f32 %v2976, %v3232
      %3265 = vrot.lane.b32.xlu0 %v1504, 96
      %v3266 = vpop.permute.xlu0 %3265
      %3267 = vrot.lane.b32.xlu0 %v1509, 96
      %v3268 = vpop.permute.xlu0 %3267
      %3269 = vrot.lane.b32.xlu0 %v1514, 96
      %v3270 = vpop.permute.xlu0 %3269
      %3271 = vrot.lane.b32.xlu0 %v1519, 96
      %v3272 = vpop.permute.xlu0 %3271
      %3273 = vrot.lane.b32.xlu0 %v1524, 96
      %v3274 = vpop.permute.xlu0 %3273
      %3275 = vrot.lane.b32.xlu0 %v1529, 96
      %v3276 = vpop.permute.xlu0 %3275
      %3277 = vrot.lane.b32.xlu0 %v1534, 96
      %v3278 = vpop.permute.xlu0 %3277
      %3279 = vrot.lane.b32.xlu0 %v1539, 96
      %v3280 = vpop.permute.xlu0 %3279
      %3281 = vrot.lane.b32.xlu0 %v1544, 96
      %v3282 = vpop.permute.xlu0 %3281
      %3283 = vrot.lane.b32.xlu0 %v1549, 96
      %v3284 = vpop.permute.xlu0 %3283
      %3285 = vrot.lane.b32.xlu0 %v1554, 96
      %v3286 = vpop.permute.xlu0 %3285
      %3287 = vrot.lane.b32.xlu0 %v1559, 96
      %v3288 = vpop.permute.xlu0 %3287
      %3289 = vrot.lane.b32.xlu0 %v1564, 96
      %v3290 = vpop.permute.xlu0 %3289
      %3291 = vrot.lane.b32.xlu0 %v1569, 96
      %v3292 = vpop.permute.xlu0 %3291
      %3293 = vrot.lane.b32.xlu0 %v1574, 96
      %v3294 = vpop.permute.xlu0 %3293
      %3295 = vrot.lane.b32.xlu0 %v1579, 96
      %v3296 = vpop.permute.xlu0 %3295
      %3297 = vrot.lane.b32.xlu0 %v1584, 96
      %v3298 = vpop.permute.xlu0 %3297
      %3299 = vrot.lane.b32.xlu0 %v1589, 96
      %v3300 = vpop.permute.xlu0 %3299
      %3301 = vrot.lane.b32.xlu0 %v1594, 96
      %v3302 = vpop.permute.xlu0 %3301
      %3303 = vrot.lane.b32.xlu0 %v1599, 96
      %v3304 = vpop.permute.xlu0 %3303
      %3305 = vrot.lane.b32.xlu0 %v1604, 96
      %v3306 = vpop.permute.xlu0 %3305
      %3307 = vrot.lane.b32.xlu0 %v1609, 96
      %v3308 = vpop.permute.xlu0 %3307
      %3309 = vrot.lane.b32.xlu0 %v1614, 96
      %v3310 = vpop.permute.xlu0 %3309
      %3311 = vrot.lane.b32.xlu0 %v1619, 96
      %v3312 = vpop.permute.xlu0 %3311
      %3313 = vrot.lane.b32.xlu0 %v1624, 96
      %v3314 = vpop.permute.xlu0 %3313
      %3315 = vrot.lane.b32.xlu0 %v1629, 96
      %v3316 = vpop.permute.xlu0 %3315
      %3317 = vrot.lane.b32.xlu0 %v1634, 96
      %v3318 = vpop.permute.xlu0 %3317
      %3319 = vrot.lane.b32.xlu0 %v1639, 96
      %v3320 = vpop.permute.xlu0 %3319
      %3321 = vrot.lane.b32.xlu0 %v1644, 96
      %v3322 = vpop.permute.xlu0 %3321
      %3323 = vrot.lane.b32.xlu0 %v1649, 96
      %v3324 = vpop.permute.xlu0 %3323
      %3325 = vrot.lane.b32.xlu0 %v1654, 96
      %v3326 = vpop.permute.xlu0 %3325
      %3327 = vrot.lane.b32.xlu0 %v1659, 96
      %v3328 = vpop.permute.xlu0 %3327
      %v3361 = vadd.f32 %v3233, %v3266
      %v3362 = vadd.f32 %v3234, %v3268
      %v3363 = vadd.f32 %v3235, %v3270
      %v3364 = vadd.f32 %v3236, %v3272
      %v3365 = vadd.f32 %v3237, %v3274
      %v3366 = vadd.f32 %v3238, %v3276
      %v3367 = vadd.f32 %v3239, %v3278
      %v3368 = vadd.f32 %v3240, %v3280
      %v3369 = vadd.f32 %v3241, %v3282
      %v3370 = vadd.f32 %v3242, %v3284
      %v3371 = vadd.f32 %v3243, %v3286
      %v3372 = vadd.f32 %v3244, %v3288
      %v3373 = vadd.f32 %v3245, %v3290
      %v3374 = vadd.f32 %v3246, %v3292
      %v3375 = vadd.f32 %v3247, %v3294
      %v3376 = vadd.f32 %v3248, %v3296
      %v3377 = vadd.f32 %v3249, %v3298
      %v3378 = vadd.f32 %v3250, %v3300
      %v3379 = vadd.f32 %v3251, %v3302
      %v3380 = vadd.f32 %v3252, %v3304
      %v3381 = vadd.f32 %v3253, %v3306
      %v3382 = vadd.f32 %v3254, %v3308
      %v3383 = vadd.f32 %v3255, %v3310
      %v3384 = vadd.f32 %v3256, %v3312
      %v3385 = vadd.f32 %v3257, %v3314
      %v3386 = vadd.f32 %v3258, %v3316
      %v3387 = vadd.f32 %v3259, %v3318
      %v3388 = vadd.f32 %v3260, %v3320
      %v3389 = vadd.f32 %v3261, %v3322
      %v3390 = vadd.f32 %v3262, %v3324
      %v3391 = vadd.f32 %v3263, %v3326
      %v3392 = vadd.f32 %v3264, %v3328
      %3393 = vrot.lane.b32.xlu0 %v1504, 88
      %v3394 = vpop.permute.xlu0 %3393
      %3395 = vrot.lane.b32.xlu0 %v1509, 88
      %v3396 = vpop.permute.xlu0 %3395
      %3397 = vrot.lane.b32.xlu0 %v1514, 88
      %v3398 = vpop.permute.xlu0 %3397
      %3399 = vrot.lane.b32.xlu0 %v1519, 88
      %v3400 = vpop.permute.xlu0 %3399
      %3401 = vrot.lane.b32.xlu0 %v1524, 88
      %v3402 = vpop.permute.xlu0 %3401
      %3403 = vrot.lane.b32.xlu0 %v1529, 88
      %v3404 = vpop.permute.xlu0 %3403
      %3405 = vrot.lane.b32.xlu0 %v1534, 88
      %v3406 = vpop.permute.xlu0 %3405
      %3407 = vrot.lane.b32.xlu0 %v1539, 88
      %v3408 = vpop.permute.xlu0 %3407
      %3409 = vrot.lane.b32.xlu0 %v1544, 88
      %v3410 = vpop.permute.xlu0 %3409
      %3411 = vrot.lane.b32.xlu0 %v1549, 88
      %v3412 = vpop.permute.xlu0 %3411
      %3413 = vrot.lane.b32.xlu0 %v1554, 88
      %v3414 = vpop.permute.xlu0 %3413
      %3415 = vrot.lane.b32.xlu0 %v1559, 88
      %v3416 = vpop.permute.xlu0 %3415
      %3417 = vrot.lane.b32.xlu0 %v1564, 88
      %v3418 = vpop.permute.xlu0 %3417
      %3419 = vrot.lane.b32.xlu0 %v1569, 88
      %v3420 = vpop.permute.xlu0 %3419
      %3421 = vrot.lane.b32.xlu0 %v1574, 88
      %v3422 = vpop.permute.xlu0 %3421
      %3423 = vrot.lane.b32.xlu0 %v1579, 88
      %v3424 = vpop.permute.xlu0 %3423
      %3425 = vrot.lane.b32.xlu0 %v1584, 88
      %v3426 = vpop.permute.xlu0 %3425
      %3427 = vrot.lane.b32.xlu0 %v1589, 88
      %v3428 = vpop.permute.xlu0 %3427
      %3429 = vrot.lane.b32.xlu0 %v1594, 88
      %v3430 = vpop.permute.xlu0 %3429
      %3431 = vrot.lane.b32.xlu0 %v1599, 88
      %v3432 = vpop.permute.xlu0 %3431
      %3433 = vrot.lane.b32.xlu0 %v1604, 88
      %v3434 = vpop.permute.xlu0 %3433
      %3435 = vrot.lane.b32.xlu0 %v1609, 88
      %v3436 = vpop.permute.xlu0 %3435
      %3437 = vrot.lane.b32.xlu0 %v1614, 88
      %v3438 = vpop.permute.xlu0 %3437
      %3439 = vrot.lane.b32.xlu0 %v1619, 88
      %v3440 = vpop.permute.xlu0 %3439
      %3441 = vrot.lane.b32.xlu0 %v1624, 88
      %v3442 = vpop.permute.xlu0 %3441
      %3443 = vrot.lane.b32.xlu0 %v1629, 88
      %v3444 = vpop.permute.xlu0 %3443
      %3445 = vrot.lane.b32.xlu0 %v1634, 88
      %v3446 = vpop.permute.xlu0 %3445
      %3447 = vrot.lane.b32.xlu0 %v1639, 88
      %v3448 = vpop.permute.xlu0 %3447
      %3449 = vrot.lane.b32.xlu0 %v1644, 88
      %v3450 = vpop.permute.xlu0 %3449
      %3451 = vrot.lane.b32.xlu0 %v1649, 88
      %v3452 = vpop.permute.xlu0 %3451
      %3453 = vrot.lane.b32.xlu0 %v1654, 88
      %v3454 = vpop.permute.xlu0 %3453
      %3455 = vrot.lane.b32.xlu0 %v1659, 88
      %v3456 = vpop.permute.xlu0 %3455
      %v3489 = vrot.slane %v3394, 1
      %v3490 = vrot.slane %v3396, 1
      %v3491 = vrot.slane %v3398, 1
      %v3492 = vrot.slane %v3400, 1
      %v3493 = vrot.slane %v3402, 1
      %v3494 = vrot.slane %v3404, 1
      %v3495 = vrot.slane %v3406, 1
      %v3496 = vrot.slane %v3408, 1
      %v3497 = vrot.slane %v3410, 1
      %v3498 = vrot.slane %v3412, 1
      %v3499 = vrot.slane %v3414, 1
      %v3500 = vrot.slane %v3416, 1
      %v3501 = vrot.slane %v3418, 1
      %v3502 = vrot.slane %v3420, 1
      %v3503 = vrot.slane %v3422, 1
      %v3504 = vrot.slane %v3424, 1
      %v3505 = vrot.slane %v3426, 1
      %v3506 = vrot.slane %v3428, 1
      %v3507 = vrot.slane %v3430, 1
      %v3508 = vrot.slane %v3432, 1
      %v3509 = vrot.slane %v3434, 1
      %v3510 = vrot.slane %v3436, 1
      %v3511 = vrot.slane %v3438, 1
      %v3512 = vrot.slane %v3440, 1
      %v3513 = vrot.slane %v3442, 1
      %v3514 = vrot.slane %v3444, 1
      %v3515 = vrot.slane %v3446, 1
      %v3516 = vrot.slane %v3448, 1
      %v3517 = vrot.slane %v3450, 1
      %v3518 = vrot.slane %v3452, 1
      %v3519 = vrot.slane %v3454, 1
      %v3520 = vrot.slane %v3456, 1
      %v3521 = vsel %vm2752, %v3519, %v3520
      %v3522 = vsel %vm2752, %v3518, %v3519
      %v3523 = vsel %vm2752, %v3517, %v3518
      %v3524 = vsel %vm2752, %v3516, %v3517
      %v3525 = vsel %vm2752, %v3515, %v3516
      %v3526 = vsel %vm2752, %v3514, %v3515
      %v3527 = vsel %vm2752, %v3513, %v3514
      %v3528 = vsel %vm2752, %v3512, %v3513
      %v3529 = vsel %vm2752, %v3511, %v3512
      %v3530 = vsel %vm2752, %v3510, %v3511
      %v3531 = vsel %vm2752, %v3509, %v3510
      %v3532 = vsel %vm2752, %v3508, %v3509
      %v3533 = vsel %vm2752, %v3507, %v3508
      %v3534 = vsel %vm2752, %v3506, %v3507
      %v3535 = vsel %vm2752, %v3505, %v3506
      %v3536 = vsel %vm2752, %v3504, %v3505
      %v3537 = vsel %vm2752, %v3503, %v3504
      %v3538 = vsel %vm2752, %v3502, %v3503
      %v3539 = vsel %vm2752, %v3501, %v3502
      %v3540 = vsel %vm2752, %v3500, %v3501
      %v3541 = vsel %vm2752, %v3499, %v3500
      %v3542 = vsel %vm2752, %v3498, %v3499
      %v3543 = vsel %vm2752, %v3497, %v3498
      %v3544 = vsel %vm2752, %v3496, %v3497
      %v3545 = vsel %vm2752, %v3495, %v3496
      %v3546 = vsel %vm2752, %v3494, %v3495
      %v3547 = vsel %vm2752, %v3493, %v3494
      %v3548 = vsel %vm2752, %v3492, %v3493
      %v3549 = vsel %vm2752, %v3491, %v3492
      %v3550 = vsel %vm2752, %v3490, %v3491
      %v3551 = vsel %vm2752, %v3489, %v3490
      %v3552 = vsel %vm2752, %v3520, %v3489
      %v3553 = vsel %vm2785, 1, 0
      %v3554 = vsel %vm2786, 1, 0
      %v3555 = vsel %vm2787, 1, 0
      %v3556 = vsel %vm2788, 1, 0
      %v3557 = vsel %vm2789, 1, 0
      %v3558 = vsel %vm2790, 1, 0
      %v3559 = vsel %vm2791, 1, 0
      %v3560 = vsel %vm2792, 1, 0
      %v3561 = vsel %vm2793, 1, 0
      %v3562 = vsel %vm2794, 1, 0
      %v3563 = vsel %vm2795, 1, 0
      %v3564 = vsel %vm2796, 1, 0
      %v3565 = vsel %vm2797, 1, 0
      %v3566 = vsel %vm2798, 1, 0
      %v3567 = vsel %vm2799, 1, 0
      %v3568 = vsel %vm2800, 1, 0
      %v3569 = vsel %vm2801, 1, 0
      %v3570 = vsel %vm2802, 1, 0
      %v3571 = vsel %vm2803, 1, 0
      %v3572 = vsel %vm2804, 1, 0
      %v3573 = vsel %vm2805, 1, 0
      %v3574 = vsel %vm2806, 1, 0
      %v3575 = vsel %vm2807, 1, 0
      %v3576 = vsel %vm2808, 1, 0
      %v3577 = vsel %vm2809, 1, 0
      %v3578 = vsel %vm2810, 1, 0
      %v3579 = vsel %vm2811, 1, 0
      %v3580 = vsel %vm2812, 1, 0
      %v3581 = vsel %vm2813, 1, 0
      %v3582 = vsel %vm2814, 1, 0
      %v3583 = vsel %vm2815, 1, 0
      %v3584 = vsel %vm2816, 1, 0
      %vm3585 = vcmp.eq.s32.totalorder %v3553, 1
      %vm3586 = vcmp.eq.s32.totalorder %v3554, 1
      %vm3587 = vcmp.eq.s32.totalorder %v3555, 1
      %vm3588 = vcmp.eq.s32.totalorder %v3556, 1
      %vm3589 = vcmp.eq.s32.totalorder %v3557, 1
      %vm3590 = vcmp.eq.s32.totalorder %v3558, 1
      %vm3591 = vcmp.eq.s32.totalorder %v3559, 1
      %vm3592 = vcmp.eq.s32.totalorder %v3560, 1
      %vm3593 = vcmp.eq.s32.totalorder %v3561, 1
      %vm3594 = vcmp.eq.s32.totalorder %v3562, 1
      %vm3595 = vcmp.eq.s32.totalorder %v3563, 1
      %vm3596 = vcmp.eq.s32.totalorder %v3564, 1
      %vm3597 = vcmp.eq.s32.totalorder %v3565, 1
      %vm3598 = vcmp.eq.s32.totalorder %v3566, 1
      %vm3599 = vcmp.eq.s32.totalorder %v3567, 1
      %vm3600 = vcmp.eq.s32.totalorder %v3568, 1
      %vm3601 = vcmp.eq.s32.totalorder %v3569, 1
      %vm3602 = vcmp.eq.s32.totalorder %v3570, 1
      %vm3603 = vcmp.eq.s32.totalorder %v3571, 1
      %vm3604 = vcmp.eq.s32.totalorder %v3572, 1
      %vm3605 = vcmp.eq.s32.totalorder %v3573, 1
      %vm3606 = vcmp.eq.s32.totalorder %v3574, 1
      %vm3607 = vcmp.eq.s32.totalorder %v3575, 1
      %vm3608 = vcmp.eq.s32.totalorder %v3576, 1
      %vm3609 = vcmp.eq.s32.totalorder %v3577, 1
      %vm3610 = vcmp.eq.s32.totalorder %v3578, 1
      %vm3611 = vcmp.eq.s32.totalorder %v3579, 1
      %vm3612 = vcmp.eq.s32.totalorder %v3580, 1
      %vm3613 = vcmp.eq.s32.totalorder %v3581, 1
      %vm3614 = vcmp.eq.s32.totalorder %v3582, 1
      %vm3615 = vcmp.eq.s32.totalorder %v3583, 1
      %vm3616 = vcmp.eq.s32.totalorder %v3584, 1
      %v3617 = vsel %vm3585, %v3551, 0.0
      %v3618 = vsel %vm3586, %v3550, 0.0
      %v3619 = vsel %vm3587, %v3549, 0.0
      %v3620 = vsel %vm3588, %v3548, 0.0
      %v3621 = vsel %vm3589, %v3547, 0.0
      %v3622 = vsel %vm3590, %v3546, 0.0
      %v3623 = vsel %vm3591, %v3545, 0.0
      %v3624 = vsel %vm3592, %v3544, 0.0
      %v3625 = vsel %vm3593, %v3543, 0.0
      %v3626 = vsel %vm3594, %v3542, 0.0
      %v3627 = vsel %vm3595, %v3541, 0.0
      %v3628 = vsel %vm3596, %v3540, 0.0
      %v3629 = vsel %vm3597, %v3539, 0.0
      %v3630 = vsel %vm3598, %v3538, 0.0
      %v3631 = vsel %vm3599, %v3537, 0.0
      %v3632 = vsel %vm3600, %v3536, 0.0
      %v3633 = vsel %vm3601, %v3535, 0.0
      %v3634 = vsel %vm3602, %v3534, 0.0
      %v3635 = vsel %vm3603, %v3533, 0.0
      %v3636 = vsel %vm3604, %v3532, 0.0
      %v3637 = vsel %vm3605, %v3531, 0.0
      %v3638 = vsel %vm3606, %v3530, 0.0
      %v3639 = vsel %vm3607, %v3529, 0.0
      %v3640 = vsel %vm3608, %v3528, 0.0
      %v3641 = vsel %vm3609, %v3527, 0.0
      %v3642 = vsel %vm3610, %v3526, 0.0
      %v3643 = vsel %vm3611, %v3525, 0.0
      %v3644 = vsel %vm3612, %v3524, 0.0
      %v3645 = vsel %vm3613, %v3523, 0.0
      %v3646 = vsel %vm3614, %v3522, 0.0
      %v3647 = vsel %vm3615, %v3521, 0.0
      %v3648 = vsel %vm3616, %v3552, 0.0
      %v3649 = vadd.f32 %v3361, %v3617
      %v3650 = vadd.f32 %v3362, %v3618
      %v3651 = vadd.f32 %v3363, %v3619
      %v3652 = vadd.f32 %v3364, %v3620
      %v3653 = vadd.f32 %v3365, %v3621
      %v3654 = vadd.f32 %v3366, %v3622
      %v3655 = vadd.f32 %v3367, %v3623
      %v3656 = vadd.f32 %v3368, %v3624
      %v3657 = vadd.f32 %v3369, %v3625
      %v3658 = vadd.f32 %v3370, %v3626
      %v3659 = vadd.f32 %v3371, %v3627
      %v3660 = vadd.f32 %v3372, %v3628
      %v3661 = vadd.f32 %v3373, %v3629
      %v3662 = vadd.f32 %v3374, %v3630
      %v3663 = vadd.f32 %v3375, %v3631
      %v3664 = vadd.f32 %v3376, %v3632
      %v3665 = vadd.f32 %v3377, %v3633
      %v3666 = vadd.f32 %v3378, %v3634
      %v3667 = vadd.f32 %v3379, %v3635
      %v3668 = vadd.f32 %v3380, %v3636
      %v3669 = vadd.f32 %v3381, %v3637
      %v3670 = vadd.f32 %v3382, %v3638
      %v3671 = vadd.f32 %v3383, %v3639
      %v3672 = vadd.f32 %v3384, %v3640
      %v3673 = vadd.f32 %v3385, %v3641
      %v3674 = vadd.f32 %v3386, %v3642
      %v3675 = vadd.f32 %v3387, %v3643
      %v3676 = vadd.f32 %v3388, %v3644
      %v3677 = vadd.f32 %v3389, %v3645
      %v3678 = vadd.f32 %v3390, %v3646
      %v3679 = vadd.f32 %v3391, %v3647
      %v3680 = vadd.f32 %v3392, %v3648
      %3681 = vrot.lane.b32.xlu0 %v1504, 80
      %v3682 = vpop.permute.xlu0 %3681
      %3683 = vrot.lane.b32.xlu0 %v1509, 80
      %v3684 = vpop.permute.xlu0 %3683
      %3685 = vrot.lane.b32.xlu0 %v1514, 80
      %v3686 = vpop.permute.xlu0 %3685
      %3687 = vrot.lane.b32.xlu0 %v1519, 80
      %v3688 = vpop.permute.xlu0 %3687
      %3689 = vrot.lane.b32.xlu0 %v1524, 80
      %v3690 = vpop.permute.xlu0 %3689
      %3691 = vrot.lane.b32.xlu0 %v1529, 80
      %v3692 = vpop.permute.xlu0 %3691
      %3693 = vrot.lane.b32.xlu0 %v1534, 80
      %v3694 = vpop.permute.xlu0 %3693
      %3695 = vrot.lane.b32.xlu0 %v1539, 80
      %v3696 = vpop.permute.xlu0 %3695
      %3697 = vrot.lane.b32.xlu0 %v1544, 80
      %v3698 = vpop.permute.xlu0 %3697
      %3699 = vrot.lane.b32.xlu0 %v1549, 80
      %v3700 = vpop.permute.xlu0 %3699
      %3701 = vrot.lane.b32.xlu0 %v1554, 80
      %v3702 = vpop.permute.xlu0 %3701
      %3703 = vrot.lane.b32.xlu0 %v1559, 80
      %v3704 = vpop.permute.xlu0 %3703
      %3705 = vrot.lane.b32.xlu0 %v1564, 80
      %v3706 = vpop.permute.xlu0 %3705
      %3707 = vrot.lane.b32.xlu0 %v1569, 80
      %v3708 = vpop.permute.xlu0 %3707
      %3709 = vrot.lane.b32.xlu0 %v1574, 80
      %v3710 = vpop.permute.xlu0 %3709
      %3711 = vrot.lane.b32.xlu0 %v1579, 80
      %v3712 = vpop.permute.xlu0 %3711
      %3713 = vrot.lane.b32.xlu0 %v1584, 80
      %v3714 = vpop.permute.xlu0 %3713
      %3715 = vrot.lane.b32.xlu0 %v1589, 80
      %v3716 = vpop.permute.xlu0 %3715
      %3717 = vrot.lane.b32.xlu0 %v1594, 80
      %v3718 = vpop.permute.xlu0 %3717
      %3719 = vrot.lane.b32.xlu0 %v1599, 80
      %v3720 = vpop.permute.xlu0 %3719
      %3721 = vrot.lane.b32.xlu0 %v1604, 80
      %v3722 = vpop.permute.xlu0 %3721
      %3723 = vrot.lane.b32.xlu0 %v1609, 80
      %v3724 = vpop.permute.xlu0 %3723
      %3725 = vrot.lane.b32.xlu0 %v1614, 80
      %v3726 = vpop.permute.xlu0 %3725
      %3727 = vrot.lane.b32.xlu0 %v1619, 80
      %v3728 = vpop.permute.xlu0 %3727
      %3729 = vrot.lane.b32.xlu0 %v1624, 80
      %v3730 = vpop.permute.xlu0 %3729
      %3731 = vrot.lane.b32.xlu0 %v1629, 80
      %v3732 = vpop.permute.xlu0 %3731
      %3733 = vrot.lane.b32.xlu0 %v1634, 80
      %v3734 = vpop.permute.xlu0 %3733
      %3735 = vrot.lane.b32.xlu0 %v1639, 80
      %v3736 = vpop.permute.xlu0 %3735
      %3737 = vrot.lane.b32.xlu0 %v1644, 80
      %v3738 = vpop.permute.xlu0 %3737
      %3739 = vrot.lane.b32.xlu0 %v1649, 80
      %v3740 = vpop.permute.xlu0 %3739
      %3741 = vrot.lane.b32.xlu0 %v1654, 80
      %v3742 = vpop.permute.xlu0 %3741
      %3743 = vrot.lane.b32.xlu0 %v1659, 80
      %v3744 = vpop.permute.xlu0 %3743
      %v3777 = vrot.slane %v3682, 7
      %v3778 = vrot.slane %v3684, 7
      %v3779 = vrot.slane %v3686, 7
      %v3780 = vrot.slane %v3688, 7
      %v3781 = vrot.slane %v3690, 7
      %v3782 = vrot.slane %v3692, 7
      %v3783 = vrot.slane %v3694, 7
      %v3784 = vrot.slane %v3696, 7
      %v3785 = vrot.slane %v3698, 7
      %v3786 = vrot.slane %v3700, 7
      %v3787 = vrot.slane %v3702, 7
      %v3788 = vrot.slane %v3704, 7
      %v3789 = vrot.slane %v3706, 7
      %v3790 = vrot.slane %v3708, 7
      %v3791 = vrot.slane %v3710, 7
      %v3792 = vrot.slane %v3712, 7
      %v3793 = vrot.slane %v3714, 7
      %v3794 = vrot.slane %v3716, 7
      %v3795 = vrot.slane %v3718, 7
      %v3796 = vrot.slane %v3720, 7
      %v3797 = vrot.slane %v3722, 7
      %v3798 = vrot.slane %v3724, 7
      %v3799 = vrot.slane %v3726, 7
      %v3800 = vrot.slane %v3728, 7
      %v3801 = vrot.slane %v3730, 7
      %v3802 = vrot.slane %v3732, 7
      %v3803 = vrot.slane %v3734, 7
      %v3804 = vrot.slane %v3736, 7
      %v3805 = vrot.slane %v3738, 7
      %v3806 = vrot.slane %v3740, 7
      %v3807 = vrot.slane %v3742, 7
      %v3808 = vrot.slane %v3744, 7
      %v3809 = vsel %vm2111, %v3807, %v3808
      %v3810 = vsel %vm2111, %v3806, %v3807
      %v3811 = vsel %vm2111, %v3805, %v3806
      %v3812 = vsel %vm2111, %v3804, %v3805
      %v3813 = vsel %vm2111, %v3803, %v3804
      %v3814 = vsel %vm2111, %v3802, %v3803
      %v3815 = vsel %vm2111, %v3801, %v3802
      %v3816 = vsel %vm2111, %v3800, %v3801
      %v3817 = vsel %vm2111, %v3799, %v3800
      %v3818 = vsel %vm2111, %v3798, %v3799
      %v3819 = vsel %vm2111, %v3797, %v3798
      %v3820 = vsel %vm2111, %v3796, %v3797
      %v3821 = vsel %vm2111, %v3795, %v3796
      %v3822 = vsel %vm2111, %v3794, %v3795
      %v3823 = vsel %vm2111, %v3793, %v3794
      %v3824 = vsel %vm2111, %v3792, %v3793
      %v3825 = vsel %vm2111, %v3791, %v3792
      %v3826 = vsel %vm2111, %v3790, %v3791
      %v3827 = vsel %vm2111, %v3789, %v3790
      %v3828 = vsel %vm2111, %v3788, %v3789
      %v3829 = vsel %vm2111, %v3787, %v3788
      %v3830 = vsel %vm2111, %v3786, %v3787
      %v3831 = vsel %vm2111, %v3785, %v3786
      %v3832 = vsel %vm2111, %v3784, %v3785
      %v3833 = vsel %vm2111, %v3783, %v3784
      %v3834 = vsel %vm2111, %v3782, %v3783
      %v3835 = vsel %vm2111, %v3781, %v3782
      %v3836 = vsel %vm2111, %v3780, %v3781
      %v3837 = vsel %vm2111, %v3779, %v3780
      %v3838 = vsel %vm2111, %v3778, %v3779
      %v3839 = vsel %vm2111, %v3777, %v3778
      %v3840 = vsel %vm2111, %v3808, %v3777
      %vm3841 = vcmp.lt.s32.totalorder %v1663, 240
      %vm3842 = vcmp.lt.s32.totalorder %v1664, 240
      %vm3843 = vcmp.lt.s32.totalorder %v1665, 240
      %vm3844 = vcmp.lt.s32.totalorder %v1666, 240
      %vm3845 = vcmp.lt.s32.totalorder %v1667, 240
      %vm3846 = vcmp.lt.s32.totalorder %v1668, 240
      %vm3847 = vcmp.lt.s32.totalorder %v1669, 240
      %vm3848 = vcmp.lt.s32.totalorder %v1670, 240
      %vm3849 = vcmp.lt.s32.totalorder %v1671, 240
      %vm3850 = vcmp.lt.s32.totalorder %v1672, 240
      %vm3851 = vcmp.lt.s32.totalorder %v1673, 240
      %vm3852 = vcmp.lt.s32.totalorder %v1674, 240
      %vm3853 = vcmp.lt.s32.totalorder %v1675, 240
      %vm3854 = vcmp.lt.s32.totalorder %v1676, 240
      %vm3855 = vcmp.lt.s32.totalorder %v1677, 240
      %vm3856 = vcmp.lt.s32.totalorder %v1678, 240
      %vm3857 = vcmp.lt.s32.totalorder %v1679, 240
      %vm3858 = vcmp.lt.s32.totalorder %v1680, 240
      %vm3859 = vcmp.lt.s32.totalorder %v1681, 240
      %vm3860 = vcmp.lt.s32.totalorder %v1682, 240
      %vm3861 = vcmp.lt.s32.totalorder %v1683, 240
      %vm3862 = vcmp.lt.s32.totalorder %v1684, 240
      %vm3863 = vcmp.lt.s32.totalorder %v1685, 240
      %vm3864 = vcmp.lt.s32.totalorder %v1686, 240
      %vm3865 = vcmp.lt.s32.totalorder %v1687, 240
      %vm3866 = vcmp.lt.s32.totalorder %v1688, 240
      %vm3867 = vcmp.lt.s32.totalorder %v1689, 240
      %vm3868 = vcmp.lt.s32.totalorder %v1690, 240
      %vm3869 = vcmp.lt.s32.totalorder %v1691, 240
      %vm3870 = vcmp.lt.s32.totalorder %v1692, 240
      %vm3871 = vcmp.lt.s32.totalorder %v1693, 240
      %vm3872 = vcmp.lt.s32.totalorder %v1694, 240
      %vm3873 = vmand %vm3841, %vm2176
      %vm3874 = vmand %vm3842, %vm2177
      %vm3875 = vmand %vm3843, %vm2178
      %vm3876 = vmand %vm3844, %vm2179
      %vm3877 = vmand %vm3845, %vm2180
      %vm3878 = vmand %vm3846, %vm2181
      %vm3879 = vmand %vm3847, %vm2182
      %vm3880 = vmand %vm3848, %vm2183
      %vm3881 = vmand %vm3849, %vm2184
      %vm3882 = vmand %vm3850, %vm2185
      %vm3883 = vmand %vm3851, %vm2186
      %vm3884 = vmand %vm3852, %vm2187
      %vm3885 = vmand %vm3853, %vm2188
      %vm3886 = vmand %vm3854, %vm2189
      %vm3887 = vmand %vm3855, %vm2190
      %vm3888 = vmand %vm3856, %vm2191
      %vm3889 = vmand %vm3857, %vm2192
      %vm3890 = vmand %vm3858, %vm2193
      %vm3891 = vmand %vm3859, %vm2194
      %vm3892 = vmand %vm3860, %vm2195
      %vm3893 = vmand %vm3861, %vm2196
      %vm3894 = vmand %vm3862, %vm2197
      %vm3895 = vmand %vm3863, %vm2198
      %vm3896 = vmand %vm3864, %vm2199
      %vm3897 = vmand %vm3865, %vm2200
      %vm3898 = vmand %vm3866, %vm2201
      %vm3899 = vmand %vm3867, %vm2202
      %vm3900 = vmand %vm3868, %vm2203
      %vm3901 = vmand %vm3869, %vm2204
      %vm3902 = vmand %vm3870, %vm2205
      %vm3903 = vmand %vm3871, %vm2206
      %vm3904 = vmand %vm3872, %vm2207
      %v3905 = vsel %vm3873, 1, 0
      %v3906 = vsel %vm3874, 1, 0
      %v3907 = vsel %vm3875, 1, 0
      %v3908 = vsel %vm3876, 1, 0
      %v3909 = vsel %vm3877, 1, 0
      %v3910 = vsel %vm3878, 1, 0
      %v3911 = vsel %vm3879, 1, 0
      %v3912 = vsel %vm3880, 1, 0
      %v3913 = vsel %vm3881, 1, 0
      %v3914 = vsel %vm3882, 1, 0
      %v3915 = vsel %vm3883, 1, 0
      %v3916 = vsel %vm3884, 1, 0
      %v3917 = vsel %vm3885, 1, 0
      %v3918 = vsel %vm3886, 1, 0
      %v3919 = vsel %vm3887, 1, 0
      %v3920 = vsel %vm3888, 1, 0
      %v3921 = vsel %vm3889, 1, 0
      %v3922 = vsel %vm3890, 1, 0
      %v3923 = vsel %vm3891, 1, 0
      %v3924 = vsel %vm3892, 1, 0
      %v3925 = vsel %vm3893, 1, 0
      %v3926 = vsel %vm3894, 1, 0
      %v3927 = vsel %vm3895, 1, 0
      %v3928 = vsel %vm3896, 1, 0
      %v3929 = vsel %vm3897, 1, 0
      %v3930 = vsel %vm3898, 1, 0
      %v3931 = vsel %vm3899, 1, 0
      %v3932 = vsel %vm3900, 1, 0
      %v3933 = vsel %vm3901, 1, 0
      %v3934 = vsel %vm3902, 1, 0
      %v3935 = vsel %vm3903, 1, 0
      %v3936 = vsel %vm3904, 1, 0
      %vm3937 = vcmp.eq.s32.totalorder %v3905, 1
      %vm3938 = vcmp.eq.s32.totalorder %v3906, 1
      %vm3939 = vcmp.eq.s32.totalorder %v3907, 1
      %vm3940 = vcmp.eq.s32.totalorder %v3908, 1
      %vm3941 = vcmp.eq.s32.totalorder %v3909, 1
      %vm3942 = vcmp.eq.s32.totalorder %v3910, 1
      %vm3943 = vcmp.eq.s32.totalorder %v3911, 1
      %vm3944 = vcmp.eq.s32.totalorder %v3912, 1
      %vm3945 = vcmp.eq.s32.totalorder %v3913, 1
      %vm3946 = vcmp.eq.s32.totalorder %v3914, 1
      %vm3947 = vcmp.eq.s32.totalorder %v3915, 1
      %vm3948 = vcmp.eq.s32.totalorder %v3916, 1
      %vm3949 = vcmp.eq.s32.totalorder %v3917, 1
      %vm3950 = vcmp.eq.s32.totalorder %v3918, 1
      %vm3951 = vcmp.eq.s32.totalorder %v3919, 1
      %vm3952 = vcmp.eq.s32.totalorder %v3920, 1
      %vm3953 = vcmp.eq.s32.totalorder %v3921, 1
      %vm3954 = vcmp.eq.s32.totalorder %v3922, 1
      %vm3955 = vcmp.eq.s32.totalorder %v3923, 1
      %vm3956 = vcmp.eq.s32.totalorder %v3924, 1
      %vm3957 = vcmp.eq.s32.totalorder %v3925, 1
      %vm3958 = vcmp.eq.s32.totalorder %v3926, 1
      %vm3959 = vcmp.eq.s32.totalorder %v3927, 1
      %vm3960 = vcmp.eq.s32.totalorder %v3928, 1
      %vm3961 = vcmp.eq.s32.totalorder %v3929, 1
      %vm3962 = vcmp.eq.s32.totalorder %v3930, 1
      %vm3963 = vcmp.eq.s32.totalorder %v3931, 1
      %vm3964 = vcmp.eq.s32.totalorder %v3932, 1
      %vm3965 = vcmp.eq.s32.totalorder %v3933, 1
      %vm3966 = vcmp.eq.s32.totalorder %v3934, 1
      %vm3967 = vcmp.eq.s32.totalorder %v3935, 1
      %vm3968 = vcmp.eq.s32.totalorder %v3936, 1
      %v3969 = vsel %vm3937, %v3838, 0.0
      %v3970 = vsel %vm3938, %v3837, 0.0
      %v3971 = vsel %vm3939, %v3836, 0.0
      %v3972 = vsel %vm3940, %v3835, 0.0
      %v3973 = vsel %vm3941, %v3834, 0.0
      %v3974 = vsel %vm3942, %v3833, 0.0
      %v3975 = vsel %vm3943, %v3832, 0.0
      %v3976 = vsel %vm3944, %v3831, 0.0
      %v3977 = vsel %vm3945, %v3830, 0.0
      %v3978 = vsel %vm3946, %v3829, 0.0
      %v3979 = vsel %vm3947, %v3828, 0.0
      %v3980 = vsel %vm3948, %v3827, 0.0
      %v3981 = vsel %vm3949, %v3826, 0.0
      %v3982 = vsel %vm3950, %v3825, 0.0
      %v3983 = vsel %vm3951, %v3824, 0.0
      %v3984 = vsel %vm3952, %v3823, 0.0
      %v3985 = vsel %vm3953, %v3822, 0.0
      %v3986 = vsel %vm3954, %v3821, 0.0
      %v3987 = vsel %vm3955, %v3820, 0.0
      %v3988 = vsel %vm3956, %v3819, 0.0
      %v3989 = vsel %vm3957, %v3818, 0.0
      %v3990 = vsel %vm3958, %v3817, 0.0
      %v3991 = vsel %vm3959, %v3816, 0.0
      %v3992 = vsel %vm3960, %v3815, 0.0
      %v3993 = vsel %vm3961, %v3814, 0.0
      %v3994 = vsel %vm3962, %v3813, 0.0
      %v3995 = vsel %vm3963, %v3812, 0.0
      %v3996 = vsel %vm3964, %v3811, 0.0
      %v3997 = vsel %vm3965, %v3810, 0.0
      %v3998 = vsel %vm3966, %v3809, 0.0
      %v3999 = vsel %vm3967, %v3840, 0.0
      %v4000 = vsel %vm3968, %v3839, 0.0
      %v4001 = vadd.f32 %v3649, %v3969
      %v4002 = vadd.f32 %v3650, %v3970
      %v4003 = vadd.f32 %v3651, %v3971
      %v4004 = vadd.f32 %v3652, %v3972
      %v4005 = vadd.f32 %v3653, %v3973
      %v4006 = vadd.f32 %v3654, %v3974
      %v4007 = vadd.f32 %v3655, %v3975
      %v4008 = vadd.f32 %v3656, %v3976
      %v4009 = vadd.f32 %v3657, %v3977
      %v4010 = vadd.f32 %v3658, %v3978
      %v4011 = vadd.f32 %v3659, %v3979
      %v4012 = vadd.f32 %v3660, %v3980
      %v4013 = vadd.f32 %v3661, %v3981
      %v4014 = vadd.f32 %v3662, %v3982
      %v4015 = vadd.f32 %v3663, %v3983
      %v4016 = vadd.f32 %v3664, %v3984
      %v4017 = vadd.f32 %v3665, %v3985
      %v4018 = vadd.f32 %v3666, %v3986
      %v4019 = vadd.f32 %v3667, %v3987
      %v4020 = vadd.f32 %v3668, %v3988
      %v4021 = vadd.f32 %v3669, %v3989
      %v4022 = vadd.f32 %v3670, %v3990
      %v4023 = vadd.f32 %v3671, %v3991
      %v4024 = vadd.f32 %v3672, %v3992
      %v4025 = vadd.f32 %v3673, %v3993
      %v4026 = vadd.f32 %v3674, %v3994
      %v4027 = vadd.f32 %v3675, %v3995
      %v4028 = vadd.f32 %v3676, %v3996
      %v4029 = vadd.f32 %v3677, %v3997
      %v4030 = vadd.f32 %v3678, %v3998
      %v4031 = vadd.f32 %v3679, %v3999
      %v4032 = vadd.f32 %v3680, %v4000
      %4033 = vrot.lane.b32.xlu0 %v1504, 72
      %v4034 = vpop.permute.xlu0 %4033
      %4035 = vrot.lane.b32.xlu0 %v1509, 72
      %v4036 = vpop.permute.xlu0 %4035
      %4037 = vrot.lane.b32.xlu0 %v1514, 72
      %v4038 = vpop.permute.xlu0 %4037
      %4039 = vrot.lane.b32.xlu0 %v1519, 72
      %v4040 = vpop.permute.xlu0 %4039
      %4041 = vrot.lane.b32.xlu0 %v1524, 72
      %v4042 = vpop.permute.xlu0 %4041
      %4043 = vrot.lane.b32.xlu0 %v1529, 72
      %v4044 = vpop.permute.xlu0 %4043
      %4045 = vrot.lane.b32.xlu0 %v1534, 72
      %v4046 = vpop.permute.xlu0 %4045
      %4047 = vrot.lane.b32.xlu0 %v1539, 72
      %v4048 = vpop.permute.xlu0 %4047
      %4049 = vrot.lane.b32.xlu0 %v1544, 72
      %v4050 = vpop.permute.xlu0 %4049
      %4051 = vrot.lane.b32.xlu0 %v1549, 72
      %v4052 = vpop.permute.xlu0 %4051
      %4053 = vrot.lane.b32.xlu0 %v1554, 72
      %v4054 = vpop.permute.xlu0 %4053
      %4055 = vrot.lane.b32.xlu0 %v1559, 72
      %v4056 = vpop.permute.xlu0 %4055
      %4057 = vrot.lane.b32.xlu0 %v1564, 72
      %v4058 = vpop.permute.xlu0 %4057
      %4059 = vrot.lane.b32.xlu0 %v1569, 72
      %v4060 = vpop.permute.xlu0 %4059
      %4061 = vrot.lane.b32.xlu0 %v1574, 72
      %v4062 = vpop.permute.xlu0 %4061
      %4063 = vrot.lane.b32.xlu0 %v1579, 72
      %v4064 = vpop.permute.xlu0 %4063
      %4065 = vrot.lane.b32.xlu0 %v1584, 72
      %v4066 = vpop.permute.xlu0 %4065
      %4067 = vrot.lane.b32.xlu0 %v1589, 72
      %v4068 = vpop.permute.xlu0 %4067
      %4069 = vrot.lane.b32.xlu0 %v1594, 72
      %v4070 = vpop.permute.xlu0 %4069
      %4071 = vrot.lane.b32.xlu0 %v1599, 72
      %v4072 = vpop.permute.xlu0 %4071
      %4073 = vrot.lane.b32.xlu0 %v1604, 72
      %v4074 = vpop.permute.xlu0 %4073
      %4075 = vrot.lane.b32.xlu0 %v1609, 72
      %v4076 = vpop.permute.xlu0 %4075
      %4077 = vrot.lane.b32.xlu0 %v1614, 72
      %v4078 = vpop.permute.xlu0 %4077
      %4079 = vrot.lane.b32.xlu0 %v1619, 72
      %v4080 = vpop.permute.xlu0 %4079
      %4081 = vrot.lane.b32.xlu0 %v1624, 72
      %v4082 = vpop.permute.xlu0 %4081
      %4083 = vrot.lane.b32.xlu0 %v1629, 72
      %v4084 = vpop.permute.xlu0 %4083
      %4085 = vrot.lane.b32.xlu0 %v1634, 72
      %v4086 = vpop.permute.xlu0 %4085
      %4087 = vrot.lane.b32.xlu0 %v1639, 72
      %v4088 = vpop.permute.xlu0 %4087
      %4089 = vrot.lane.b32.xlu0 %v1644, 72
      %v4090 = vpop.permute.xlu0 %4089
      %4091 = vrot.lane.b32.xlu0 %v1649, 72
      %v4092 = vpop.permute.xlu0 %4091
      %4093 = vrot.lane.b32.xlu0 %v1654, 72
      %v4094 = vpop.permute.xlu0 %4093
      %4095 = vrot.lane.b32.xlu0 %v1659, 72
      %v4096 = vpop.permute.xlu0 %4095
      %v4129 = vsel %vm3841, 1, 0
      %v4130 = vsel %vm3842, 1, 0
      %v4131 = vsel %vm3843, 1, 0
      %v4132 = vsel %vm3844, 1, 0
      %v4133 = vsel %vm3845, 1, 0
      %v4134 = vsel %vm3846, 1, 0
      %v4135 = vsel %vm3847, 1, 0
      %v4136 = vsel %vm3848, 1, 0
      %v4137 = vsel %vm3849, 1, 0
      %v4138 = vsel %vm3850, 1, 0
      %v4139 = vsel %vm3851, 1, 0
      %v4140 = vsel %vm3852, 1, 0
      %v4141 = vsel %vm3853, 1, 0
      %v4142 = vsel %vm3854, 1, 0
      %v4143 = vsel %vm3855, 1, 0
      %v4144 = vsel %vm3856, 1, 0
      %v4145 = vsel %vm3857, 1, 0
      %v4146 = vsel %vm3858, 1, 0
      %v4147 = vsel %vm3859, 1, 0
      %v4148 = vsel %vm3860, 1, 0
      %v4149 = vsel %vm3861, 1, 0
      %v4150 = vsel %vm3862, 1, 0
      %v4151 = vsel %vm3863, 1, 0
      %v4152 = vsel %vm3864, 1, 0
      %v4153 = vsel %vm3865, 1, 0
      %v4154 = vsel %vm3866, 1, 0
      %v4155 = vsel %vm3867, 1, 0
      %v4156 = vsel %vm3868, 1, 0
      %v4157 = vsel %vm3869, 1, 0
      %v4158 = vsel %vm3870, 1, 0
      %v4159 = vsel %vm3871, 1, 0
      %v4160 = vsel %vm3872, 1, 0
      %vm4161 = vcmp.eq.s32.totalorder %v4129, 1
      %vm4162 = vcmp.eq.s32.totalorder %v4130, 1
      %vm4163 = vcmp.eq.s32.totalorder %v4131, 1
      %vm4164 = vcmp.eq.s32.totalorder %v4132, 1
      %vm4165 = vcmp.eq.s32.totalorder %v4133, 1
      %vm4166 = vcmp.eq.s32.totalorder %v4134, 1
      %vm4167 = vcmp.eq.s32.totalorder %v4135, 1
      %vm4168 = vcmp.eq.s32.totalorder %v4136, 1
      %vm4169 = vcmp.eq.s32.totalorder %v4137, 1
      %vm4170 = vcmp.eq.s32.totalorder %v4138, 1
      %vm4171 = vcmp.eq.s32.totalorder %v4139, 1
      %vm4172 = vcmp.eq.s32.totalorder %v4140, 1
      %vm4173 = vcmp.eq.s32.totalorder %v4141, 1
      %vm4174 = vcmp.eq.s32.totalorder %v4142, 1
      %vm4175 = vcmp.eq.s32.totalorder %v4143, 1
      %vm4176 = vcmp.eq.s32.totalorder %v4144, 1
      %vm4177 = vcmp.eq.s32.totalorder %v4145, 1
      %vm4178 = vcmp.eq.s32.totalorder %v4146, 1
      %vm4179 = vcmp.eq.s32.totalorder %v4147, 1
      %vm4180 = vcmp.eq.s32.totalorder %v4148, 1
      %vm4181 = vcmp.eq.s32.totalorder %v4149, 1
      %vm4182 = vcmp.eq.s32.totalorder %v4150, 1
      %vm4183 = vcmp.eq.s32.totalorder %v4151, 1
      %vm4184 = vcmp.eq.s32.totalorder %v4152, 1
      %vm4185 = vcmp.eq.s32.totalorder %v4153, 1
      %vm4186 = vcmp.eq.s32.totalorder %v4154, 1
      %vm4187 = vcmp.eq.s32.totalorder %v4155, 1
      %vm4188 = vcmp.eq.s32.totalorder %v4156, 1
      %vm4189 = vcmp.eq.s32.totalorder %v4157, 1
      %vm4190 = vcmp.eq.s32.totalorder %v4158, 1
      %vm4191 = vcmp.eq.s32.totalorder %v4159, 1
      %vm4192 = vcmp.eq.s32.totalorder %v4160, 1
      %v4193 = vsel %vm4161, %v4038, 0.0
      %v4194 = vsel %vm4162, %v4040, 0.0
      %v4195 = vsel %vm4163, %v4042, 0.0
      %v4196 = vsel %vm4164, %v4044, 0.0
      %v4197 = vsel %vm4165, %v4046, 0.0
      %v4198 = vsel %vm4166, %v4048, 0.0
      %v4199 = vsel %vm4167, %v4050, 0.0
      %v4200 = vsel %vm4168, %v4052, 0.0
      %v4201 = vsel %vm4169, %v4054, 0.0
      %v4202 = vsel %vm4170, %v4056, 0.0
      %v4203 = vsel %vm4171, %v4058, 0.0
      %v4204 = vsel %vm4172, %v4060, 0.0
      %v4205 = vsel %vm4173, %v4062, 0.0
      %v4206 = vsel %vm4174, %v4064, 0.0
      %v4207 = vsel %vm4175, %v4066, 0.0
      %v4208 = vsel %vm4176, %v4068, 0.0
      %v4209 = vsel %vm4177, %v4070, 0.0
      %v4210 = vsel %vm4178, %v4072, 0.0
      %v4211 = vsel %vm4179, %v4074, 0.0
      %v4212 = vsel %vm4180, %v4076, 0.0
      %v4213 = vsel %vm4181, %v4078, 0.0
      %v4214 = vsel %vm4182, %v4080, 0.0
      %v4215 = vsel %vm4183, %v4082, 0.0
      %v4216 = vsel %vm4184, %v4084, 0.0
      %v4217 = vsel %vm4185, %v4086, 0.0
      %v4218 = vsel %vm4186, %v4088, 0.0
      %v4219 = vsel %vm4187, %v4090, 0.0
      %v4220 = vsel %vm4188, %v4092, 0.0
      %v4221 = vsel %vm4189, %v4094, 0.0
      %v4222 = vsel %vm4190, %v4096, 0.0
      %v4223 = vsel %vm4191, %v4034, 0.0
      %v4224 = vsel %vm4192, %v4036, 0.0
      %v4225 = vadd.f32 %v4001, %v4193
      %v4226 = vadd.f32 %v4002, %v4194
      %v4227 = vadd.f32 %v4003, %v4195
      %v4228 = vadd.f32 %v4004, %v4196
      %v4229 = vadd.f32 %v4005, %v4197
      %v4230 = vadd.f32 %v4006, %v4198
      %v4231 = vadd.f32 %v4007, %v4199
      %v4232 = vadd.f32 %v4008, %v4200
      %v4233 = vadd.f32 %v4009, %v4201
      %v4234 = vadd.f32 %v4010, %v4202
      %v4235 = vadd.f32 %v4011, %v4203
      %v4236 = vadd.f32 %v4012, %v4204
      %v4237 = vadd.f32 %v4013, %v4205
      %v4238 = vadd.f32 %v4014, %v4206
      %v4239 = vadd.f32 %v4015, %v4207
      %v4240 = vadd.f32 %v4016, %v4208
      %v4241 = vadd.f32 %v4017, %v4209
      %v4242 = vadd.f32 %v4018, %v4210
      %v4243 = vadd.f32 %v4019, %v4211
      %v4244 = vadd.f32 %v4020, %v4212
      %v4245 = vadd.f32 %v4021, %v4213
      %v4246 = vadd.f32 %v4022, %v4214
      %v4247 = vadd.f32 %v4023, %v4215
      %v4248 = vadd.f32 %v4024, %v4216
      %v4249 = vadd.f32 %v4025, %v4217
      %v4250 = vadd.f32 %v4026, %v4218
      %v4251 = vadd.f32 %v4027, %v4219
      %v4252 = vadd.f32 %v4028, %v4220
      %v4253 = vadd.f32 %v4029, %v4221
      %v4254 = vadd.f32 %v4030, %v4222
      %v4255 = vadd.f32 %v4031, %v4223
      %v4256 = vadd.f32 %v4032, %v4224
      %4257 = vrot.lane.b32.xlu0 %v1504, 64
      %v4258 = vpop.permute.xlu0 %4257
      %4259 = vrot.lane.b32.xlu0 %v1509, 64
      %v4260 = vpop.permute.xlu0 %4259
      %4261 = vrot.lane.b32.xlu0 %v1514, 64
      %v4262 = vpop.permute.xlu0 %4261
      %4263 = vrot.lane.b32.xlu0 %v1519, 64
      %v4264 = vpop.permute.xlu0 %4263
      %4265 = vrot.lane.b32.xlu0 %v1524, 64
      %v4266 = vpop.permute.xlu0 %4265
      %4267 = vrot.lane.b32.xlu0 %v1529, 64
      %v4268 = vpop.permute.xlu0 %4267
      %4269 = vrot.lane.b32.xlu0 %v1534, 64
      %v4270 = vpop.permute.xlu0 %4269
      %4271 = vrot.lane.b32.xlu0 %v1539, 64
      %v4272 = vpop.permute.xlu0 %4271
      %4273 = vrot.lane.b32.xlu0 %v1544, 64
      %v4274 = vpop.permute.xlu0 %4273
      %4275 = vrot.lane.b32.xlu0 %v1549, 64
      %v4276 = vpop.permute.xlu0 %4275
      %4277 = vrot.lane.b32.xlu0 %v1554, 64
      %v4278 = vpop.permute.xlu0 %4277
      %4279 = vrot.lane.b32.xlu0 %v1559, 64
      %v4280 = vpop.permute.xlu0 %4279
      %4281 = vrot.lane.b32.xlu0 %v1564, 64
      %v4282 = vpop.permute.xlu0 %4281
      %4283 = vrot.lane.b32.xlu0 %v1569, 64
      %v4284 = vpop.permute.xlu0 %4283
      %4285 = vrot.lane.b32.xlu0 %v1574, 64
      %v4286 = vpop.permute.xlu0 %4285
      %4287 = vrot.lane.b32.xlu0 %v1579, 64
      %v4288 = vpop.permute.xlu0 %4287
      %4289 = vrot.lane.b32.xlu0 %v1584, 64
      %v4290 = vpop.permute.xlu0 %4289
      %4291 = vrot.lane.b32.xlu0 %v1589, 64
      %v4292 = vpop.permute.xlu0 %4291
      %4293 = vrot.lane.b32.xlu0 %v1594, 64
      %v4294 = vpop.permute.xlu0 %4293
      %4295 = vrot.lane.b32.xlu0 %v1599, 64
      %v4296 = vpop.permute.xlu0 %4295
      %4297 = vrot.lane.b32.xlu0 %v1604, 64
      %v4298 = vpop.permute.xlu0 %4297
      %4299 = vrot.lane.b32.xlu0 %v1609, 64
      %v4300 = vpop.permute.xlu0 %4299
      %4301 = vrot.lane.b32.xlu0 %v1614, 64
      %v4302 = vpop.permute.xlu0 %4301
      %4303 = vrot.lane.b32.xlu0 %v1619, 64
      %v4304 = vpop.permute.xlu0 %4303
      %4305 = vrot.lane.b32.xlu0 %v1624, 64
      %v4306 = vpop.permute.xlu0 %4305
      %4307 = vrot.lane.b32.xlu0 %v1629, 64
      %v4308 = vpop.permute.xlu0 %4307
      %4309 = vrot.lane.b32.xlu0 %v1634, 64
      %v4310 = vpop.permute.xlu0 %4309
      %4311 = vrot.lane.b32.xlu0 %v1639, 64
      %v4312 = vpop.permute.xlu0 %4311
      %4313 = vrot.lane.b32.xlu0 %v1644, 64
      %v4314 = vpop.permute.xlu0 %4313
      %4315 = vrot.lane.b32.xlu0 %v1649, 64
      %v4316 = vpop.permute.xlu0 %4315
      %4317 = vrot.lane.b32.xlu0 %v1654, 64
      %v4318 = vpop.permute.xlu0 %4317
      %4319 = vrot.lane.b32.xlu0 %v1659, 64
      %v4320 = vpop.permute.xlu0 %4319
      %v4353 = vrot.slane %v4258, 1
      %v4354 = vrot.slane %v4260, 1
      %v4355 = vrot.slane %v4262, 1
      %v4356 = vrot.slane %v4264, 1
      %v4357 = vrot.slane %v4266, 1
      %v4358 = vrot.slane %v4268, 1
      %v4359 = vrot.slane %v4270, 1
      %v4360 = vrot.slane %v4272, 1
      %v4361 = vrot.slane %v4274, 1
      %v4362 = vrot.slane %v4276, 1
      %v4363 = vrot.slane %v4278, 1
      %v4364 = vrot.slane %v4280, 1
      %v4365 = vrot.slane %v4282, 1
      %v4366 = vrot.slane %v4284, 1
      %v4367 = vrot.slane %v4286, 1
      %v4368 = vrot.slane %v4288, 1
      %v4369 = vrot.slane %v4290, 1
      %v4370 = vrot.slane %v4292, 1
      %v4371 = vrot.slane %v4294, 1
      %v4372 = vrot.slane %v4296, 1
      %v4373 = vrot.slane %v4298, 1
      %v4374 = vrot.slane %v4300, 1
      %v4375 = vrot.slane %v4302, 1
      %v4376 = vrot.slane %v4304, 1
      %v4377 = vrot.slane %v4306, 1
      %v4378 = vrot.slane %v4308, 1
      %v4379 = vrot.slane %v4310, 1
      %v4380 = vrot.slane %v4312, 1
      %v4381 = vrot.slane %v4314, 1
      %v4382 = vrot.slane %v4316, 1
      %v4383 = vrot.slane %v4318, 1
      %v4384 = vrot.slane %v4320, 1
      %v4385 = vsel %vm2752, %v4383, %v4384
      %v4386 = vsel %vm2752, %v4382, %v4383
      %v4387 = vsel %vm2752, %v4381, %v4382
      %v4388 = vsel %vm2752, %v4380, %v4381
      %v4389 = vsel %vm2752, %v4379, %v4380
      %v4390 = vsel %vm2752, %v4378, %v4379
      %v4391 = vsel %vm2752, %v4377, %v4378
      %v4392 = vsel %vm2752, %v4376, %v4377
      %v4393 = vsel %vm2752, %v4375, %v4376
      %v4394 = vsel %vm2752, %v4374, %v4375
      %v4395 = vsel %vm2752, %v4373, %v4374
      %v4396 = vsel %vm2752, %v4372, %v4373
      %v4397 = vsel %vm2752, %v4371, %v4372
      %v4398 = vsel %vm2752, %v4370, %v4371
      %v4399 = vsel %vm2752, %v4369, %v4370
      %v4400 = vsel %vm2752, %v4368, %v4369
      %v4401 = vsel %vm2752, %v4367, %v4368
      %v4402 = vsel %vm2752, %v4366, %v4367
      %v4403 = vsel %vm2752, %v4365, %v4366
      %v4404 = vsel %vm2752, %v4364, %v4365
      %v4405 = vsel %vm2752, %v4363, %v4364
      %v4406 = vsel %vm2752, %v4362, %v4363
      %v4407 = vsel %vm2752, %v4361, %v4362
      %v4408 = vsel %vm2752, %v4360, %v4361
      %v4409 = vsel %vm2752, %v4359, %v4360
      %v4410 = vsel %vm2752, %v4358, %v4359
      %v4411 = vsel %vm2752, %v4357, %v4358
      %v4412 = vsel %vm2752, %v4356, %v4357
      %v4413 = vsel %vm2752, %v4355, %v4356
      %v4414 = vsel %vm2752, %v4354, %v4355
      %v4415 = vsel %vm2752, %v4353, %v4354
      %v4416 = vsel %vm2752, %v4384, %v4353
      %vm4417 = vmand %vm3841, %vm2785
      %vm4418 = vmand %vm3842, %vm2786
      %vm4419 = vmand %vm3843, %vm2787
      %vm4420 = vmand %vm3844, %vm2788
      %vm4421 = vmand %vm3845, %vm2789
      %vm4422 = vmand %vm3846, %vm2790
      %vm4423 = vmand %vm3847, %vm2791
      %vm4424 = vmand %vm3848, %vm2792
      %vm4425 = vmand %vm3849, %vm2793
      %vm4426 = vmand %vm3850, %vm2794
      %vm4427 = vmand %vm3851, %vm2795
      %vm4428 = vmand %vm3852, %vm2796
      %vm4429 = vmand %vm3853, %vm2797
      %vm4430 = vmand %vm3854, %vm2798
      %vm4431 = vmand %vm3855, %vm2799
      %vm4432 = vmand %vm3856, %vm2800
      %vm4433 = vmand %vm3857, %vm2801
      %vm4434 = vmand %vm3858, %vm2802
      %vm4435 = vmand %vm3859, %vm2803
      %vm4436 = vmand %vm3860, %vm2804
      %vm4437 = vmand %vm3861, %vm2805
      %vm4438 = vmand %vm3862, %vm2806
      %vm4439 = vmand %vm3863, %vm2807
      %vm4440 = vmand %vm3864, %vm2808
      %vm4441 = vmand %vm3865, %vm2809
      %vm4442 = vmand %vm3866, %vm2810
      %vm4443 = vmand %vm3867, %vm2811
      %vm4444 = vmand %vm3868, %vm2812
      %vm4445 = vmand %vm3869, %vm2813
      %vm4446 = vmand %vm3870, %vm2814
      %vm4447 = vmand %vm3871, %vm2815
      %vm4448 = vmand %vm3872, %vm2816
      %v4449 = vsel %vm4417, 1, 0
      %v4450 = vsel %vm4418, 1, 0
      %v4451 = vsel %vm4419, 1, 0
      %v4452 = vsel %vm4420, 1, 0
      %v4453 = vsel %vm4421, 1, 0
      %v4454 = vsel %vm4422, 1, 0
      %v4455 = vsel %vm4423, 1, 0
      %v4456 = vsel %vm4424, 1, 0
      %v4457 = vsel %vm4425, 1, 0
      %v4458 = vsel %vm4426, 1, 0
      %v4459 = vsel %vm4427, 1, 0
      %v4460 = vsel %vm4428, 1, 0
      %v4461 = vsel %vm4429, 1, 0
      %v4462 = vsel %vm4430, 1, 0
      %v4463 = vsel %vm4431, 1, 0
      %v4464 = vsel %vm4432, 1, 0
      %v4465 = vsel %vm4433, 1, 0
      %v4466 = vsel %vm4434, 1, 0
      %v4467 = vsel %vm4435, 1, 0
      %v4468 = vsel %vm4436, 1, 0
      %v4469 = vsel %vm4437, 1, 0
      %v4470 = vsel %vm4438, 1, 0
      %v4471 = vsel %vm4439, 1, 0
      %v4472 = vsel %vm4440, 1, 0
      %v4473 = vsel %vm4441, 1, 0
      %v4474 = vsel %vm4442, 1, 0
      %v4475 = vsel %vm4443, 1, 0
      %v4476 = vsel %vm4444, 1, 0
      %v4477 = vsel %vm4445, 1, 0
      %v4478 = vsel %vm4446, 1, 0
      %v4479 = vsel %vm4447, 1, 0
      %v4480 = vsel %vm4448, 1, 0
      %vm4481 = vcmp.eq.s32.totalorder %v4449, 1
      %vm4482 = vcmp.eq.s32.totalorder %v4450, 1
      %vm4483 = vcmp.eq.s32.totalorder %v4451, 1
      %vm4484 = vcmp.eq.s32.totalorder %v4452, 1
      %vm4485 = vcmp.eq.s32.totalorder %v4453, 1
      %vm4486 = vcmp.eq.s32.totalorder %v4454, 1
      %vm4487 = vcmp.eq.s32.totalorder %v4455, 1
      %vm4488 = vcmp.eq.s32.totalorder %v4456, 1
      %vm4489 = vcmp.eq.s32.totalorder %v4457, 1
      %vm4490 = vcmp.eq.s32.totalorder %v4458, 1
      %vm4491 = vcmp.eq.s32.totalorder %v4459, 1
      %vm4492 = vcmp.eq.s32.totalorder %v4460, 1
      %vm4493 = vcmp.eq.s32.totalorder %v4461, 1
      %vm4494 = vcmp.eq.s32.totalorder %v4462, 1
      %vm4495 = vcmp.eq.s32.totalorder %v4463, 1
      %vm4496 = vcmp.eq.s32.totalorder %v4464, 1
      %vm4497 = vcmp.eq.s32.totalorder %v4465, 1
      %vm4498 = vcmp.eq.s32.totalorder %v4466, 1
      %vm4499 = vcmp.eq.s32.totalorder %v4467, 1
      %vm4500 = vcmp.eq.s32.totalorder %v4468, 1
      %vm4501 = vcmp.eq.s32.totalorder %v4469, 1
      %vm4502 = vcmp.eq.s32.totalorder %v4470, 1
      %vm4503 = vcmp.eq.s32.totalorder %v4471, 1
      %vm4504 = vcmp.eq.s32.totalorder %v4472, 1
      %vm4505 = vcmp.eq.s32.totalorder %v4473, 1
      %vm4506 = vcmp.eq.s32.totalorder %v4474, 1
      %vm4507 = vcmp.eq.s32.totalorder %v4475, 1
      %vm4508 = vcmp.eq.s32.totalorder %v4476, 1
      %vm4509 = vcmp.eq.s32.totalorder %v4477, 1
      %vm4510 = vcmp.eq.s32.totalorder %v4478, 1
      %vm4511 = vcmp.eq.s32.totalorder %v4479, 1
      %vm4512 = vcmp.eq.s32.totalorder %v4480, 1
      %v4513 = vsel %vm4481, %v4413, 0.0
      %v4514 = vsel %vm4482, %v4412, 0.0
      %v4515 = vsel %vm4483, %v4411, 0.0
      %v4516 = vsel %vm4484, %v4410, 0.0
      %v4517 = vsel %vm4485, %v4409, 0.0
      %v4518 = vsel %vm4486, %v4408, 0.0
      %v4519 = vsel %vm4487, %v4407, 0.0
      %v4520 = vsel %vm4488, %v4406, 0.0
      %v4521 = vsel %vm4489, %v4405, 0.0
      %v4522 = vsel %vm4490, %v4404, 0.0
      %v4523 = vsel %vm4491, %v4403, 0.0
      %v4524 = vsel %vm4492, %v4402, 0.0
      %v4525 = vsel %vm4493, %v4401, 0.0
      %v4526 = vsel %vm4494, %v4400, 0.0
      %v4527 = vsel %vm4495, %v4399, 0.0
      %v4528 = vsel %vm4496, %v4398, 0.0
      %v4529 = vsel %vm4497, %v4397, 0.0
      %v4530 = vsel %vm4498, %v4396, 0.0
      %v4531 = vsel %vm4499, %v4395, 0.0
      %v4532 = vsel %vm4500, %v4394, 0.0
      %v4533 = vsel %vm4501, %v4393, 0.0
      %v4534 = vsel %vm4502, %v4392, 0.0
      %v4535 = vsel %vm4503, %v4391, 0.0
      %v4536 = vsel %vm4504, %v4390, 0.0
      %v4537 = vsel %vm4505, %v4389, 0.0
      %v4538 = vsel %vm4506, %v4388, 0.0
      %v4539 = vsel %vm4507, %v4387, 0.0
      %v4540 = vsel %vm4508, %v4386, 0.0
      %v4541 = vsel %vm4509, %v4385, 0.0
      %v4542 = vsel %vm4510, %v4416, 0.0
      %v4543 = vsel %vm4511, %v4415, 0.0
      %v4544 = vsel %vm4512, %v4414, 0.0
      %v4545 = vadd.f32 %v4225, %v4513
      %v4546 = vadd.f32 %v4226, %v4514
      %v4547 = vadd.f32 %v4227, %v4515
      %v4548 = vadd.f32 %v4228, %v4516
      %v4549 = vadd.f32 %v4229, %v4517
      %v4550 = vadd.f32 %v4230, %v4518
      %v4551 = vadd.f32 %v4231, %v4519
      %v4552 = vadd.f32 %v4232, %v4520
      %v4553 = vadd.f32 %v4233, %v4521
      %v4554 = vadd.f32 %v4234, %v4522
      %v4555 = vadd.f32 %v4235, %v4523
      %v4556 = vadd.f32 %v4236, %v4524
      %v4557 = vadd.f32 %v4237, %v4525
      %v4558 = vadd.f32 %v4238, %v4526
      %v4559 = vadd.f32 %v4239, %v4527
      %v4560 = vadd.f32 %v4240, %v4528
      %v4561 = vadd.f32 %v4241, %v4529
      %v4562 = vadd.f32 %v4242, %v4530
      %v4563 = vadd.f32 %v4243, %v4531
      %v4564 = vadd.f32 %v4244, %v4532
      %v4565 = vadd.f32 %v4245, %v4533
      %v4566 = vadd.f32 %v4246, %v4534
      %v4567 = vadd.f32 %v4247, %v4535
      %v4568 = vadd.f32 %v4248, %v4536
      %v4569 = vadd.f32 %v4249, %v4537
      %v4570 = vadd.f32 %v4250, %v4538
      %v4571 = vadd.f32 %v4251, %v4539
      %v4572 = vadd.f32 %v4252, %v4540
      %v4573 = vadd.f32 %v4253, %v4541
      %v4574 = vadd.f32 %v4254, %v4542
      %v4575 = vadd.f32 %v4255, %v4543
      %v4576 = vadd.f32 %v4256, %v4544
      %v4577 = vld [vmem:[%s7] sm:$0x1]
      %v4579 = vlaneseq
      %v4580 = vshrl.u32 %v4579, 7
      %v4581 = vsub.s32 0, %v4580
      %v4582 = vrot.slane %v4577, %v4581
      %v4584 = vmul.f32 %v4545, %v4582
      %v4585 = vmul.f32 %v4546, %v4582
      %v4586 = vmul.f32 %v4547, %v4582
      %v4587 = vmul.f32 %v4548, %v4582
      %v4588 = vmul.f32 %v4549, %v4582
      %v4589 = vmul.f32 %v4550, %v4582
      %v4590 = vmul.f32 %v4551, %v4582
      %v4591 = vmul.f32 %v4552, %v4582
      %v4592 = vmul.f32 %v4553, %v4582
      %v4593 = vmul.f32 %v4554, %v4582
      %v4594 = vmul.f32 %v4555, %v4582
      %v4595 = vmul.f32 %v4556, %v4582
      %v4596 = vmul.f32 %v4557, %v4582
      %v4597 = vmul.f32 %v4558, %v4582
      %v4598 = vmul.f32 %v4559, %v4582
      %v4599 = vmul.f32 %v4560, %v4582
      %v4600 = vmul.f32 %v4561, %v4582
      %v4601 = vmul.f32 %v4562, %v4582
      %v4602 = vmul.f32 %v4563, %v4582
      %v4603 = vmul.f32 %v4564, %v4582
      %v4604 = vmul.f32 %v4565, %v4582
      %v4605 = vmul.f32 %v4566, %v4582
      %v4606 = vmul.f32 %v4567, %v4582
      %v4607 = vmul.f32 %v4568, %v4582
      %v4608 = vmul.f32 %v4569, %v4582
      %v4609 = vmul.f32 %v4570, %v4582
      %v4610 = vmul.f32 %v4571, %v4582
      %v4611 = vmul.f32 %v4572, %v4582
      %v4612 = vmul.f32 %v4573, %v4582
      %v4613 = vmul.f32 %v4574, %v4582
      %v4614 = vmul.f32 %v4575, %v4582
      %v4615 = vmul.f32 %v4576, %v4582
      %v4616 = vld [vmem:[%s8] sm:$0x1]
      %v4618 = vlaneseq
      %v4619 = vshrl.u32 %v4618, 7
      %v4620 = vsub.s32 0, %v4619
      %v4621 = vrot.slane %v4616, %v4620
      %v4623 = vadd.f32 %v4584, %v4621
      %v4624 = vadd.f32 %v4585, %v4621
      %v4625 = vadd.f32 %v4586, %v4621
      %v4626 = vadd.f32 %v4587, %v4621
      %v4627 = vadd.f32 %v4588, %v4621
      %v4628 = vadd.f32 %v4589, %v4621
      %v4629 = vadd.f32 %v4590, %v4621
      %v4630 = vadd.f32 %v4591, %v4621
      %v4631 = vadd.f32 %v4592, %v4621
      %v4632 = vadd.f32 %v4593, %v4621
      %v4633 = vadd.f32 %v4594, %v4621
      %v4634 = vadd.f32 %v4595, %v4621
      %v4635 = vadd.f32 %v4596, %v4621
      %v4636 = vadd.f32 %v4597, %v4621
      %v4637 = vadd.f32 %v4598, %v4621
      %v4638 = vadd.f32 %v4599, %v4621
      %v4639 = vadd.f32 %v4600, %v4621
      %v4640 = vadd.f32 %v4601, %v4621
      %v4641 = vadd.f32 %v4602, %v4621
      %v4642 = vadd.f32 %v4603, %v4621
      %v4643 = vadd.f32 %v4604, %v4621
      %v4644 = vadd.f32 %v4605, %v4621
      %v4645 = vadd.f32 %v4606, %v4621
      %v4646 = vadd.f32 %v4607, %v4621
      %v4647 = vadd.f32 %v4608, %v4621
      %v4648 = vadd.f32 %v4609, %v4621
      %v4649 = vadd.f32 %v4610, %v4621
      %v4650 = vadd.f32 %v4611, %v4621
      %v4651 = vadd.f32 %v4612, %v4621
      %v4652 = vadd.f32 %v4613, %v4621
      %v4653 = vadd.f32 %v4614, %v4621
      %v4654 = vadd.f32 %v4615, %v4621
      %v4655 = vsub.f32 0.0, %v4623
      %v4656 = vsub.f32 0.0, %v4624
      %v4657 = vsub.f32 0.0, %v4625
      %v4658 = vsub.f32 0.0, %v4626
      %v4659 = vsub.f32 0.0, %v4627
      %v4660 = vsub.f32 0.0, %v4628
      %v4661 = vsub.f32 0.0, %v4629
      %v4662 = vsub.f32 0.0, %v4630
      %v4663 = vsub.f32 0.0, %v4631
      %v4664 = vsub.f32 0.0, %v4632
      %v4665 = vsub.f32 0.0, %v4633
      %v4666 = vsub.f32 0.0, %v4634
      %v4667 = vsub.f32 0.0, %v4635
      %v4668 = vsub.f32 0.0, %v4636
      %v4669 = vsub.f32 0.0, %v4637
      %v4670 = vsub.f32 0.0, %v4638
      %v4671 = vsub.f32 0.0, %v4639
      %v4672 = vsub.f32 0.0, %v4640
      %v4673 = vsub.f32 0.0, %v4641
      %v4674 = vsub.f32 0.0, %v4642
      %v4675 = vsub.f32 0.0, %v4643
      %v4676 = vsub.f32 0.0, %v4644
      %v4677 = vsub.f32 0.0, %v4645
      %v4678 = vsub.f32 0.0, %v4646
      %v4679 = vsub.f32 0.0, %v4647
      %v4680 = vsub.f32 0.0, %v4648
      %v4681 = vsub.f32 0.0, %v4649
      %v4682 = vsub.f32 0.0, %v4650
      %v4683 = vsub.f32 0.0, %v4651
      %v4684 = vsub.f32 0.0, %v4652
      %v4685 = vsub.f32 0.0, %v4653
      %v4686 = vsub.f32 0.0, %v4654
      %v4687 = vmul.f32 %v4655, 1.442695
      %v4688 = vpow.pop %v4687
      %v4689 = vmul.f32 %v4656, 1.442695
      %v4690 = vpow.pop %v4689
      %v4691 = vmul.f32 %v4657, 1.442695
      %v4692 = vpow.pop %v4691
      %v4693 = vmul.f32 %v4658, 1.442695
      %v4694 = vpow.pop %v4693
      %v4695 = vmul.f32 %v4659, 1.442695
      %v4696 = vpow.pop %v4695
      %v4697 = vmul.f32 %v4660, 1.442695
      %v4698 = vpow.pop %v4697
      %v4699 = vmul.f32 %v4661, 1.442695
      %v4700 = vpow.pop %v4699
      %v4701 = vmul.f32 %v4662, 1.442695
      %v4702 = vpow.pop %v4701
      %v4703 = vmul.f32 %v4663, 1.442695
      %v4704 = vpow.pop %v4703
      %v4705 = vmul.f32 %v4664, 1.442695
      %v4706 = vpow.pop %v4705
      %v4707 = vmul.f32 %v4665, 1.442695
      %v4708 = vpow.pop %v4707
      %v4709 = vmul.f32 %v4666, 1.442695
      %v4710 = vpow.pop %v4709
      %v4711 = vmul.f32 %v4667, 1.442695
      %v4712 = vpow.pop %v4711
      %v4713 = vmul.f32 %v4668, 1.442695
      %v4714 = vpow.pop %v4713
      %v4715 = vmul.f32 %v4669, 1.442695
      %v4716 = vpow.pop %v4715
      %v4717 = vmul.f32 %v4670, 1.442695
      %v4718 = vpow.pop %v4717
      %v4719 = vmul.f32 %v4671, 1.442695
      %v4720 = vpow.pop %v4719
      %v4721 = vmul.f32 %v4672, 1.442695
      %v4722 = vpow.pop %v4721
      %v4723 = vmul.f32 %v4673, 1.442695
      %v4724 = vpow.pop %v4723
      %v4725 = vmul.f32 %v4674, 1.442695
      %v4726 = vpow.pop %v4725
      %v4727 = vmul.f32 %v4675, 1.442695
      %v4728 = vpow.pop %v4727
      %v4729 = vmul.f32 %v4676, 1.442695
      %v4730 = vpow.pop %v4729
      %v4731 = vmul.f32 %v4677, 1.442695
      %v4732 = vpow.pop %v4731
      %v4733 = vmul.f32 %v4678, 1.442695
      %v4734 = vpow.pop %v4733
      %v4735 = vmul.f32 %v4679, 1.442695
      %v4736 = vpow.pop %v4735
      %v4737 = vmul.f32 %v4680, 1.442695
      %v4738 = vpow.pop %v4737
      %v4739 = vmul.f32 %v4681, 1.442695
      %v4740 = vpow.pop %v4739
      %v4741 = vmul.f32 %v4682, 1.442695
      %v4742 = vpow.pop %v4741
      %v4743 = vmul.f32 %v4683, 1.442695
      %v4744 = vpow.pop %v4743
      %v4745 = vmul.f32 %v4684, 1.442695
      %v4746 = vpow.pop %v4745
      %v4747 = vmul.f32 %v4685, 1.442695
      %v4748 = vpow.pop %v4747
      %v4749 = vmul.f32 %v4686, 1.442695
      %v4750 = vpow.pop %v4749
      %v4751 = vadd.f32 %v4688, 1.0
      %v4752 = vadd.f32 %v4690, 1.0
      %v4753 = vadd.f32 %v4692, 1.0
      %v4754 = vadd.f32 %v4694, 1.0
      %v4755 = vadd.f32 %v4696, 1.0
      %v4756 = vadd.f32 %v4698, 1.0
      %v4757 = vadd.f32 %v4700, 1.0
      %v4758 = vadd.f32 %v4702, 1.0
      %v4759 = vadd.f32 %v4704, 1.0
      %v4760 = vadd.f32 %v4706, 1.0
      %v4761 = vadd.f32 %v4708, 1.0
      %v4762 = vadd.f32 %v4710, 1.0
      %v4763 = vadd.f32 %v4712, 1.0
      %v4764 = vadd.f32 %v4714, 1.0
      %v4765 = vadd.f32 %v4716, 1.0
      %v4766 = vadd.f32 %v4718, 1.0
      %v4767 = vadd.f32 %v4720, 1.0
      %v4768 = vadd.f32 %v4722, 1.0
      %v4769 = vadd.f32 %v4724, 1.0
      %v4770 = vadd.f32 %v4726, 1.0
      %v4771 = vadd.f32 %v4728, 1.0
      %v4772 = vadd.f32 %v4730, 1.0
      %v4773 = vadd.f32 %v4732, 1.0
      %v4774 = vadd.f32 %v4734, 1.0
      %v4775 = vadd.f32 %v4736, 1.0
      %v4776 = vadd.f32 %v4738, 1.0
      %v4777 = vadd.f32 %v4740, 1.0
      %v4778 = vadd.f32 %v4742, 1.0
      %v4779 = vadd.f32 %v4744, 1.0
      %v4780 = vadd.f32 %v4746, 1.0
      %v4781 = vadd.f32 %v4748, 1.0
      %v4782 = vadd.f32 %v4750, 1.0
      %v4783 = vrcp.pop %v4751
      %v4784 = vrcp.pop %v4752
      %v4785 = vrcp.pop %v4753
      %v4786 = vrcp.pop %v4754
      %v4787 = vrcp.pop %v4755
      %v4788 = vrcp.pop %v4756
      %v4789 = vrcp.pop %v4757
      %v4790 = vrcp.pop %v4758
      %v4791 = vrcp.pop %v4759
      %v4792 = vrcp.pop %v4760
      %v4793 = vrcp.pop %v4761
      %v4794 = vrcp.pop %v4762
      %v4795 = vrcp.pop %v4763
      %v4796 = vrcp.pop %v4764
      %v4797 = vrcp.pop %v4765
      %v4798 = vrcp.pop %v4766
      %v4799 = vrcp.pop %v4767
      %v4800 = vrcp.pop %v4768
      %v4801 = vrcp.pop %v4769
      %v4802 = vrcp.pop %v4770
      %v4803 = vrcp.pop %v4771
      %v4804 = vrcp.pop %v4772
      %v4805 = vrcp.pop %v4773
      %v4806 = vrcp.pop %v4774
      %v4807 = vrcp.pop %v4775
      %v4808 = vrcp.pop %v4776
      %v4809 = vrcp.pop %v4777
      %v4810 = vrcp.pop %v4778
      %v4811 = vrcp.pop %v4779
      %v4812 = vrcp.pop %v4780
      %v4813 = vrcp.pop %v4781
      %v4814 = vrcp.pop %v4782
      %v4815 = vmul.f32 %v4623, %v4783
      %v4816 = vmul.f32 %v4624, %v4784
      %v4817 = vmul.f32 %v4625, %v4785
      %v4818 = vmul.f32 %v4626, %v4786
      %v4819 = vmul.f32 %v4627, %v4787
      %v4820 = vmul.f32 %v4628, %v4788
      %v4821 = vmul.f32 %v4629, %v4789
      %v4822 = vmul.f32 %v4630, %v4790
      %v4823 = vmul.f32 %v4631, %v4791
      %v4824 = vmul.f32 %v4632, %v4792
      %v4825 = vmul.f32 %v4633, %v4793
      %v4826 = vmul.f32 %v4634, %v4794
      %v4827 = vmul.f32 %v4635, %v4795
      %v4828 = vmul.f32 %v4636, %v4796
      %v4829 = vmul.f32 %v4637, %v4797
      %v4830 = vmul.f32 %v4638, %v4798
      %v4831 = vmul.f32 %v4639, %v4799
      %v4832 = vmul.f32 %v4640, %v4800
      %v4833 = vmul.f32 %v4641, %v4801
      %v4834 = vmul.f32 %v4642, %v4802
      %v4835 = vmul.f32 %v4643, %v4803
      %v4836 = vmul.f32 %v4644, %v4804
      %v4837 = vmul.f32 %v4645, %v4805
      %v4838 = vmul.f32 %v4646, %v4806
      %v4839 = vmul.f32 %v4647, %v4807
      %v4840 = vmul.f32 %v4648, %v4808
      %v4841 = vmul.f32 %v4649, %v4809
      %v4842 = vmul.f32 %v4650, %v4810
      %v4843 = vmul.f32 %v4651, %v4811
      %v4844 = vmul.f32 %v4652, %v4812
      %v4845 = vmul.f32 %v4653, %v4813
      %v4846 = vmul.f32 %v4654, %v4814
      %4847 = vst.msk [vmem:[%s352] sm:$0xff] %vm1340, %v4815
      %4848 = vst.msk [vmem:[%s352 + $0x8] sm:$0xff] %vm1340, %v4816
      %4849 = vst.msk [vmem:[%s352 + $0x10] sm:$0xff] %vm1340, %v4817
      %4850 = vst.msk [vmem:[%s352 + $0x18] sm:$0xff] %vm1340, %v4818
      %4851 = vst.msk [vmem:[%s352 + $0x20] sm:$0xff] %vm1340, %v4819
      %4852 = vst.msk [vmem:[%s352 + $0x28] sm:$0xff] %vm1340, %v4820
      %4853 = vst.msk [vmem:[%s352 + $0x30] sm:$0xff] %vm1340, %v4821
      %4854 = vst.msk [vmem:[%s352 + $0x38] sm:$0xff] %vm1340, %v4822
      %4855 = vst.msk [vmem:[%s352 + $0x40] sm:$0xff] %vm1340, %v4823
      %4856 = vst.msk [vmem:[%s352 + $0x48] sm:$0xff] %vm1340, %v4824
      %4857 = vst.msk [vmem:[%s352 + $0x50] sm:$0xff] %vm1340, %v4825
      %4858 = vst.msk [vmem:[%s352 + $0x58] sm:$0xff] %vm1340, %v4826
      %4859 = vst.msk [vmem:[%s352 + $0x60] sm:$0xff] %vm1340, %v4827
      %4860 = vst.msk [vmem:[%s352 + $0x68] sm:$0xff] %vm1340, %v4828
      %4861 = vst.msk [vmem:[%s352 + $0x70] sm:$0xff] %vm1340, %v4829
      %4862 = vst.msk [vmem:[%s352 + $0x78] sm:$0xff] %vm1340, %v4830
      %4863 = vst.msk [vmem:[%s352 + $0x80] sm:$0xff] %vm1340, %v4831
      %4864 = vst.msk [vmem:[%s352 + $0x88] sm:$0xff] %vm1340, %v4832
      %4865 = vst.msk [vmem:[%s352 + $0x90] sm:$0xff] %vm1340, %v4833
      %4866 = vst.msk [vmem:[%s352 + $0x98] sm:$0xff] %vm1340, %v4834
      %4867 = vst.msk [vmem:[%s352 + $0xa0] sm:$0xff] %vm1340, %v4835
      %4868 = vst.msk [vmem:[%s352 + $0xa8] sm:$0xff] %vm1340, %v4836
      %4869 = vst.msk [vmem:[%s352 + $0xb0] sm:$0xff] %vm1340, %v4837
      %4870 = vst.msk [vmem:[%s352 + $0xb8] sm:$0xff] %vm1340, %v4838
      %4871 = vst.msk [vmem:[%s352 + $0xc0] sm:$0xff] %vm1340, %v4839
      %4872 = vst.msk [vmem:[%s352 + $0xc8] sm:$0xff] %vm1340, %v4840
      %4873 = vst.msk [vmem:[%s352 + $0xd0] sm:$0xff] %vm1340, %v4841
      %4874 = vst.msk [vmem:[%s352 + $0xd8] sm:$0xff] %vm1340, %v4842
      %4875 = vst.msk [vmem:[%s352 + $0xe0] sm:$0xff] %vm1340, %v4843
      %4876 = vst.msk [vmem:[%s352 + $0xe8] sm:$0xff] %vm1340, %v4844
      %4877 = vst.msk [vmem:[%s352 + $0xf0] sm:$0xff] %vm1340, %v4845
      %4878 = vst.msk [vmem:[%s352 + $0xf8] sm:$0xff] %vm1340, %v4846
      %p4879 = scmp.lt.s32.totalorder %s20, 1
      %s4880 = scalar_select %p4879, %s20, 1
      %s4881 = smul.addr %s4880, 32
      %s4882 = smul.addr %s4881, 8
      %s4883 = scalar_lea.vmem %s9, %s4882
      // Predicated region
      $region57: #{tpu_custom_call.1} parent=55 // pred_check
        %p4884 = pneg %p237
      $region58: #{tpu_custom_call.1} parent=55 // pred_check_branch
        %4886 = sbr.rel (%p4884) target = $region60
      $region59: #{tpu_custom_call.1} parent=55 // pred_region
        _
      $region60: #{tpu_custom_call.1} parent=55 // pred_fallthru
        _
    $region56: #{tpu_custom_call.1} parent=5 // pred_fallthru
      _
    %p4887 = scmp.le.s32.totalorder 2, %s15
    // Predicated region
    $region61: #{tpu_custom_call.1} parent=5 // pred_check
      %p4888 = pneg %p4887
    $region62: #{tpu_custom_call.1} parent=5 // pred_check_branch
      %4890 = sbr.rel (%p4888) target = $region64
    $region63: #{tpu_custom_call.1} parent=5 // pred_region
      %s4891 = ssub.s32 %s15, 2
      // Predicated region
      $region65: #{tpu_custom_call.1} parent=63 // pred_check
        %p4892 = pneg %p243
      $region66: #{tpu_custom_call.1} parent=63 // pred_check_branch
        %4894 = sbr.rel (%p4892) target = $region68
      $region67: #{tpu_custom_call.1} parent=63 // pred_region
        %p4895 = scmp.lt.s32.totalorder %s21, 1
        %s4896 = scalar_select %p4895, %s21, 1
        %s4897 = smul.addr %s4896, 32
        %s4898 = smul.addr %s4897, 8
        %s4899 = scalar_lea.vmem %s9, %s4898
      $region68: #{tpu_custom_call.1} parent=63 // pred_fallthru
        _
    $region64: #{tpu_custom_call.1} parent=5 // pred_fallthru
      _
  $region6: #{tpu_custom_call.1} parent=0 // loop_footer
    %s19 = sadd.s32 1, %s15
  $region7: #{tpu_custom_call.1} parent=0 // loop_footer_branch
    %14 = sbr.rel target = $region3
  $region8: #{tpu_custom_call.1} parent=0 // loop_exit
    _

</llo_original>
